<compile_context>
chip_gen: v7x
topology: tpu7x:2x2x1
jax: 0.10.0
libtpu: 0.0.40
codegen_flags: <defaults>
</compile_context>

<pallas_src>
import functools

import jax
import jax.numpy as jnp
from jax.experimental import pallas as pl
from jax.experimental.pallas import tpu as pltpu

EPS = 1e-5


def _hw_budget():
    """(rows-per-step target, scoped-VMEM limit) per TPU generation.

    v5e/v6e: 128 MiB physical VMEM  -> TR~4096, 64 MiB scoped limit.
    v7x:      64 MiB per TensorCore -> TR~2048, 40 MiB scoped limit.
    Falls back to the conservative (v7x-safe) setting if the query fails.
    """
    try:
        vmem = getattr(pltpu.get_tpu_info(), "vmem_capacity_bytes", 0) or 0
    except Exception:
        vmem = 0
    if vmem >= 100 * 1024 * 1024:
        return 4096, 64 * 1024 * 1024
    return 2048, 40 * 1024 * 1024


def _pick_tg(bg, n, tr_target):
    """Groups per grid step.

    tg must divide BG and keep the (tg, C) stage-3 output block sublane-legal
    (tg % 8 == 0, or tg == BG).  Among legal candidates with tg*N <= tr_target
    pick the largest, preferring nblk = BG/tg >= 2 so both v7x TensorCores
    (the megacore 'parallel' axis) get work.
    """
    cands = [t for t in range(1, bg + 1)
             if bg % t == 0 and (t % 8 == 0 or t == bg) and t * n <= tr_target]
    if not cands:
        # TODO(synk): pad BG to a multiple of 8 instead of falling back to
        # one giant block for large, oddly-shaped BG.
        return bg
    multi = [t for t in cands if bg // t >= 2]
    return max(multi) if multi else max(cands)


# ---------------------------------------------------------------------------
# Stage 2: conv1 (BN1 folded) + ReLU + conv2(128->256) + per-group max
#          + split-w3 conv(->512) + BN2 partial stats.  h3 stored bf16.
# ---------------------------------------------------------------------------
def _mid_kernel(tg, n, x_ref, w1_ref, b1_ref, w2_ref, b2_ref,
                w3l_ref, w3g_ref, b3_ref, h3_ref, s_ref, q_ref):
    tr = tg * n
    # conv1 with BN1 pre-folded into (w1, b1), then ReLU.
    h1 = jnp.maximum(
        jnp.dot(x_ref[...], w1_ref[...], preferred_element_type=jnp.float32)
        + b1_ref[...], 0.0)                                               # (TR,128) f32
    feat = jnp.dot(h1.astype(jnp.bfloat16), w2_ref[...],
                   preferred_element_type=jnp.float32) + b2_ref[...]      # (TR,256)
    fg = jnp.max(feat.reshape(tg, n, 256), axis=1)                        # (TG,256)
    h3_loc = jnp.dot(feat.astype(jnp.bfloat16), w3l_ref[...],
                     preferred_element_type=jnp.float32)                  # (TR,512)
    h3_glo = jnp.dot(fg.astype(jnp.bfloat16), w3g_ref[...],
                     preferred_element_type=jnp.float32)                  # (TG,512)
    # Implicit-broadcast add: no materialized (TR,512) broadcast buffer.
    h3 = h3_loc.reshape(tg, n, 512) + h3_glo[:, None, :] + b3_ref[...]    # (TG,N,512)
    h3_ref[...] = h3.reshape(tr, 512).astype(jnp.bfloat16)
    s_ref[...] = jnp.sum(h3, axis=(0, 1)).reshape(1, 1, 512)
    q_ref[...] = jnp.sum(h3 * h3, axis=(0, 1)).reshape(1, 1, 512)


# ---------------------------------------------------------------------------
# Stage 3: BN2 + ReLU + conv4(512->C) + per-group max over N.
# ---------------------------------------------------------------------------
def _out_kernel(tg, n, c, h3_ref, s2_ref, t2_ref, w4_ref, b4_ref, o_ref):
    h3 = h3_ref[...].astype(jnp.float32)                                  # (TR,512)
    h3n = jnp.maximum(h3 * s2_ref[...] + t2_ref[...], 0.0)                # f32 BN+ReLU
    h4 = jnp.dot(h3n.astype(jnp.bfloat16), w4_ref[...],
                 preferred_element_type=jnp.float32) + b4_ref[...]        # (TR,C)
    o_ref[...] = jnp.max(h4.reshape(tg, n, c), axis=1)                    # (TG,C)


# ---------------------------------------------------------------------------
# Host-side glue
# ---------------------------------------------------------------------------
def _bn_fold(s, q, count, gamma, beta):
    mean = s / count
    var = jnp.maximum(q / count - mean * mean, 0.0)   # biased var, clamp >= 0
    inv = jax.lax.rsqrt(var + EPS)
    scale = gamma * inv
    shift = beta - mean * scale
    return scale, shift


def encoder_forward(point_groups, params, *, tg=None):
    B, G, N, C_in = point_groups.shape
    assert C_in == 6
    # TODO(synk): pad N if not a multiple of 8 (true for Uni3D group size 32).
    assert N % 8 == 0, "N must be a multiple of 8 (pad otherwise)"
    BG = B * G
    C = params["w4"].shape[1]
    tr_target, vmem_limit = _hw_budget()
    if tg is None:
        tg = _pick_tg(BG, N, tr_target)
    assert BG % tg == 0
    nblk = BG // tg
    TR = tg * N
    count = float(BG * N)

    x2d_f32 = point_groups.reshape(BG * N, 6).astype(jnp.float32)
    x2d = x2d_f32.astype(jnp.bfloat16)        # halves the x DMA; conv1 runs bf16 on MXU

    w1 = params["w1"].astype(jnp.float32)
    b1 = params["b1"].astype(jnp.float32)

    # ---- BN1 batch statistics via a 7x7 Gram matrix (exact, f32) ------------
    # With X~ = [x, 1] and W~ = [w1; b1]:  sum_r h1 = M[6,:] @ W~,
    # sum_r h1^2 = sum_i W~[i,:] * (M @ W~)[i,:],  where M = X~^T X~.
    xt = jnp.concatenate([x2d_f32, jnp.ones((BG * N, 1), jnp.float32)], axis=1)
    M = jnp.dot(xt.T, xt, precision=jax.lax.Precision.HIGHEST)            # (7,7)
    Wb = jnp.concatenate([w1, b1], axis=0)                                # (7,128)
    MW = jnp.dot(M, Wb, precision=jax.lax.Precision.HIGHEST)              # (7,128)
    s1 = MW[6:7, :]
    q1 = jnp.sum(Wb * MW, axis=0, keepdims=True)
    scale1, shift1 = _bn_fold(s1, q1, count, params["g1"], params["be1"])

    # Fold BN1 into conv1: bn1(x@w1 + b1) = x@(w1*scale1) + (b1*scale1 + shift1)
    w1f = (w1 * scale1).astype(jnp.bfloat16)
    b1f = (b1 * scale1 + shift1).astype(jnp.float32)

    w2 = params["w2"].astype(jnp.bfloat16)
    b2 = params["b2"].astype(jnp.float32)
    # torch.cat([global, local]) => first 256 input rows of w3 multiply the
    # broadcast global feature, last 256 multiply the local feature.
    w3g = params["w3"][:256].astype(jnp.bfloat16)
    w3l = params["w3"][256:].astype(jnp.bfloat16)
    b3 = params["b3"].astype(jnp.float32)

    # Lane-dense stage-3 output: pad C to a multiple of 128 and slice after.
    Cp = max(128, ((C + 127) // 128) * 128)
    w4 = params["w4"].astype(jnp.bfloat16)
    b4 = params["b4"].astype(jnp.float32)
    if Cp != C:
        w4 = jnp.pad(w4, ((0, 0), (0, Cp - C)))
        b4 = jnp.pad(b4, ((0, 0), (0, Cp - C)))

    cparams = pltpu.CompilerParams(
        dimension_semantics=("parallel",),
        vmem_limit_bytes=vmem_limit)

    # ---- stage 2: conv1(folded BN1)+ReLU, conv2, group-max, split-w3 --------
    h3, s2p, q2p = pl.pallas_call(
        functools.partial(_mid_kernel, tg, N),
        out_shape=(jax.ShapeDtypeStruct((BG * N, 512), jnp.bfloat16),
                   jax.ShapeDtypeStruct((nblk, 1, 512), jnp.float32),
                   jax.ShapeDtypeStruct((nblk, 1, 512), jnp.float32)),
        grid_spec=pltpu.PrefetchScalarGridSpec(
            num_scalar_prefetch=0, grid=(nblk,),
            in_specs=[pl.BlockSpec((TR, 6), lambda i: (i, 0)),
                      pl.BlockSpec((6, 128), lambda i: (0, 0)),
                      pl.BlockSpec((1, 128), lambda i: (0, 0)),
                      pl.BlockSpec((128, 256), lambda i: (0, 0)),
                      pl.BlockSpec((1, 256), lambda i: (0, 0)),
                      pl.BlockSpec((256, 512), lambda i: (0, 0)),
                      pl.BlockSpec((256, 512), lambda i: (0, 0)),
                      pl.BlockSpec((1, 512), lambda i: (0, 0))],
            out_specs=(pl.BlockSpec((TR, 512), lambda i: (i, 0)),
                       pl.BlockSpec((1, 1, 512), lambda i: (i, 0, 0)),
                       pl.BlockSpec((1, 1, 512), lambda i: (i, 0, 0)))),
        compiler_params=cparams,
    )(x2d, w1f, b1f, w2, b2, w3l, w3g, b3)

    scale2, shift2 = _bn_fold(jnp.sum(s2p, axis=0), jnp.sum(q2p, axis=0),
                              count, params["g2"], params["be2"])

    # ---- stage 3: BN2+ReLU, conv4(512->C), max over N ------------------------
    out = pl.pallas_call(
        functools.partial(_out_kernel, tg, N, Cp),
        out_shape=jax.ShapeDtypeStruct((BG, Cp), jnp.float32),
        grid_spec=pltpu.PrefetchScalarGridSpec(
            num_scalar_prefetch=0, grid=(nblk,),
            in_specs=[pl.BlockSpec((TR, 512), lambda i: (i, 0)),
                      pl.BlockSpec((1, 512), lambda i: (0, 0)),
                      pl.BlockSpec((1, 512), lambda i: (0, 0)),
                      pl.BlockSpec((512, Cp), lambda i: (0, 0)),
                      pl.BlockSpec((1, Cp), lambda i: (0, 0))],
            out_specs=pl.BlockSpec((tg, Cp), lambda i: (i, 0))),
        compiler_params=cparams,
    )(h3, scale2, shift2, w4, b4)

    if Cp != C:
        out = out[:, :C]
    return out.reshape(B, G, C)


# ---------------------------------------------------------------------------
# Pure-JAX f32 reference (same semantics) for a correctness check
# ---------------------------------------------------------------------------
def encoder_reference(point_groups, params):
    B, G, N, _ = point_groups.shape
    x = point_groups.reshape(B * G, N, 6).astype(jnp.float32)
    h1 = x @ params["w1"] + params["b1"]
    m, v = jnp.mean(h1, axis=(0, 1)), jnp.var(h1, axis=(0, 1))
    h1 = jnp.maximum((h1 - m) / jnp.sqrt(v + EPS) * params["g1"] + params["be1"], 0.0)
    feat = h1 @ params["w2"] + params["b2"]
    fg = jnp.max(feat, axis=1, keepdims=True)
    cat = jnp.concatenate([jnp.broadcast_to(fg, feat.shape), feat], axis=-1)
    h3 = cat @ params["w3"] + params["b3"]
    m2, v2 = jnp.mean(h3, axis=(0, 1)), jnp.var(h3, axis=(0, 1))
    h3 = jnp.maximum((h3 - m2) / jnp.sqrt(v2 + EPS) * params["g2"] + params["be2"], 0.0)
    h4 = h3 @ params["w4"] + params["b4"]
    return jnp.max(h4, axis=1).reshape(B, G, -1)


def make_params(key, encoder_channel):
    ks = jax.random.split(key, 8)
    return {
        "w1": jax.random.normal(ks[0], (6, 128), jnp.float32) * 0.20,
        "b1": jax.random.normal(ks[1], (1, 128), jnp.float32) * 0.05,
        "w2": jax.random.normal(ks[2], (128, 256), jnp.float32) * 0.05,
        "b2": jax.random.normal(ks[3], (1, 256), jnp.float32) * 0.05,
        "w3": jax.random.normal(ks[4], (512, 512), jnp.float32) * 0.03,
        "b3": jax.random.normal(ks[5], (1, 512), jnp.float32) * 0.05,
        "w4": jax.random.normal(ks[6], (512, encoder_channel), jnp.float32) * 0.03,
        "b4": jax.random.normal(ks[7], (1, encoder_channel), jnp.float32) * 0.05,
        # BatchNorm affine params (PyTorch default init: gamma=1, beta=0)
        "g1": jnp.ones((1, 128), jnp.float32),
        "be1": jnp.zeros((1, 128), jnp.float32),
        "g2": jnp.ones((1, 512), jnp.float32),
        "be2": jnp.zeros((1, 512), jnp.float32),
    }


if __name__ == "__main__":
    B, G, N, C_enc = 2, 4, 32, 256
    key = jax.random.PRNGKey(0)
    k_pts, k_par = jax.random.split(key)
    point_groups = jax.random.normal(k_pts, (B, G, N, 6), jnp.float32)
    params = make_params(k_par, C_enc)

    out = jax.jit(encoder_forward)(point_groups, params)
    out = jax.block_until_ready(out)
    assert out.shape == (B, G, C_enc), out.shape

    ref = jax.block_until_ready(encoder_reference(point_groups, params))
    max_err = float(jnp.max(jnp.abs(out - ref)))
    ref_scale = float(jnp.maximum(jnp.max(jnp.abs(ref)), 1.0))
    # bf16 MXU operands / bf16 h3 storage => compare with a bf16-appropriate
    # tolerance against the pure-f32 reference.
    assert max_err / ref_scale < 5e-2, f"mismatch vs reference: {max_err}"

    print("KERNEL_OK")
</pallas_src>

<mosaic_0001>
module attributes {stable_mosaic.version = 11 : i64} {
  func.func @_out_kernel(%arg0: i32, %arg1: memref<256x512xbf16, #tpu.memory_space<vmem>>, %arg2: memref<1x512xf32, #tpu.memory_space<vmem>>, %arg3: memref<1x512xf32, #tpu.memory_space<vmem>>, %arg4: memref<512x256xbf16, #tpu.memory_space<vmem>>, %arg5: memref<1x256xf32, #tpu.memory_space<vmem>>, %arg6: memref<8x256xf32, #tpu.memory_space<vmem>>) attributes {dimension_semantics = [#tpu.dimension_semantics<parallel>], iteration_bounds = array<i64: 1>, scalar_prefetch = 0 : i64, scratch_operands = 0 : i64, tpu.core_type = #tpu.core_type<tc>, window_params = [{transform_indices = @transform_0, window_bounds = array<i64: 256, 512>}, {pipeline_mode = #tpu.pipeline_mode<synchronous>, transform_indices = @transform_1, window_bounds = array<i64: 1, 512>}, {pipeline_mode = #tpu.pipeline_mode<synchronous>, transform_indices = @transform_2, window_bounds = array<i64: 1, 512>}, {pipeline_mode = #tpu.pipeline_mode<synchronous>, transform_indices = @transform_3, window_bounds = array<i64: 512, 256>}, {pipeline_mode = #tpu.pipeline_mode<synchronous>, transform_indices = @transform_4, window_bounds = array<i64: 1, 256>}, {transform_indices = @transform_5, window_bounds = array<i64: 8, 256>}]} {
    %c0 = arith.constant 0 : index
    %c0_0 = arith.constant 0 : index
    %0 = vector.load %arg1[%c0, %c0_0] : memref<256x512xbf16, #tpu.memory_space<vmem>>, vector<256x512xbf16>
    %1 = arith.extf %0 : vector<256x512xbf16> to vector<256x512xf32>
    %c0_1 = arith.constant 0 : index
    %c0_2 = arith.constant 0 : index
    %2 = vector.load %arg2[%c0_1, %c0_2] : memref<1x512xf32, #tpu.memory_space<vmem>>, vector<1x512xf32>
    %3 = vector.broadcast %2 : vector<1x512xf32> to vector<256x512xf32>
    %4 = arith.mulf %1, %3 : vector<256x512xf32>
    %c0_3 = arith.constant 0 : index
    %c0_4 = arith.constant 0 : index
    %5 = vector.load %arg3[%c0_3, %c0_4] : memref<1x512xf32, #tpu.memory_space<vmem>>, vector<1x512xf32>
    %6 = vector.broadcast %5 : vector<1x512xf32> to vector<256x512xf32>
    %7 = arith.addf %4, %6 : vector<256x512xf32>
    %cst = arith.constant 0.000000e+00 : f32
    %8 = vector.broadcast %cst : f32 to vector<256x512xf32>
    %9 = arith.maximumf %7, %8 : vector<256x512xf32>
    %10 = arith.truncf %9 : vector<256x512xf32> to vector<256x512xbf16>
    %c0_5 = arith.constant 0 : index
    %c0_6 = arith.constant 0 : index
    %11 = vector.load %arg4[%c0_5, %c0_6] : memref<512x256xbf16, #tpu.memory_space<vmem>>, vector<512x256xbf16>
    %cst_7 = arith.constant dense<0.000000e+00> : vector<256x256xf32>
    %12 = tpu.matmul %10, %11, %cst_7 {dimension_numbers = #tpu.dot_dimension_numbers<[1], [0], [0], [1], [0, 0, 1, 1], [], []>} : vector<256x512xbf16>, vector<512x256xbf16>, vector<256x256xf32> -> vector<256x256xf32>
    %c0_8 = arith.constant 0 : index
    %c0_9 = arith.constant 0 : index
    %13 = vector.load %arg5[%c0_8, %c0_9] : memref<1x256xf32, #tpu.memory_space<vmem>>, vector<1x256xf32>
    %14 = vector.broadcast %13 : vector<1x256xf32> to vector<256x256xf32>
    %15 = arith.addf %12, %14 : vector<256x256xf32>
    %16 = vector.shape_cast %15 : vector<256x256xf32> to vector<8x32x256xf32>
    %cst_10 = arith.constant dense<0xFF800000> : vector<8x256xf32>
    %17 = vector.multi_reduction <maximumf>, %16, %cst_10 [1] : vector<8x32x256xf32> to vector<8x256xf32>
    %c0_11 = arith.constant 0 : index
    %c0_12 = arith.constant 0 : index
    %18 = vector.load %arg6[%c0_11, %c0_12] : memref<8x256xf32, #tpu.memory_space<vmem>>, vector<8x256xf32>
    tpu.vector_store %arg6[%c0_11, %c0_12], %17 {strides = array<i32>} : memref<8x256xf32, #tpu.memory_space<vmem>>, vector<8x256xf32>,
    return
  }
  func.func @transform_0(%arg0: i32) -> (i32, i32) {
    %c0_i32 = arith.constant 0 : i32
    %c0_i32_0 = arith.constant 0 : i32
    return %arg0, %c0_i32 : i32, i32
  }
  func.func @transform_1(%arg0: i32) -> (i32, i32) {
    %c0_i32 = arith.constant 0 : i32
    %c0_i32_0 = arith.constant 0 : i32
    %c0_i32_1 = arith.constant 0 : i32
    return %c0_i32, %c0_i32_0 : i32, i32
  }
  func.func @transform_2(%arg0: i32) -> (i32, i32) {
    %c0_i32 = arith.constant 0 : i32
    %c0_i32_0 = arith.constant 0 : i32
    %c0_i32_1 = arith.constant 0 : i32
    return %c0_i32, %c0_i32_0 : i32, i32
  }
  func.func @transform_3(%arg0: i32) -> (i32, i32) {
    %c0_i32 = arith.constant 0 : i32
    %c0_i32_0 = arith.constant 0 : i32
    %c0_i32_1 = arith.constant 0 : i32
    return %c0_i32, %c0_i32_0 : i32, i32
  }
  func.func @transform_4(%arg0: i32) -> (i32, i32) {
    %c0_i32 = arith.constant 0 : i32
    %c0_i32_0 = arith.constant 0 : i32
    %c0_i32_1 = arith.constant 0 : i32
    return %c0_i32, %c0_i32_0 : i32, i32
  }
  func.func @transform_5(%arg0: i32) -> (i32, i32) {
    %c0_i32 = arith.constant 0 : i32
    %c0_i32_0 = arith.constant 0 : i32
    return %arg0, %c0_i32 : i32, i32
  }
}

module attributes {stable_mosaic.version = 11 : i64} {
  func.func @_mid_kernel(%arg0: i32, %arg1: memref<256x6xbf16, #tpu.memory_space<vmem>>, %arg2: memref<6x128xbf16, #tpu.memory_space<vmem>>, %arg3: memref<1x128xf32, #tpu.memory_space<vmem>>, %arg4: memref<128x256xbf16, #tpu.memory_space<vmem>>, %arg5: memref<1x256xf32, #tpu.memory_space<vmem>>, %arg6: memref<256x512xbf16, #tpu.memory_space<vmem>>, %arg7: memref<256x512xbf16, #tpu.memory_space<vmem>>, %arg8: memref<1x512xf32, #tpu.memory_space<vmem>>, %arg9: memref<256x512xbf16, #tpu.memory_space<vmem>>, %arg10: memref<1x1x512xf32, #tpu.memory_space<vmem>>, %arg11: memref<1x1x512xf32, #tpu.memory_space<vmem>>) attributes {dimension_semantics = [#tpu.dimension_semantics<parallel>], iteration_bounds = array<i64: 1>, scalar_prefetch = 0 : i64, scratch_operands = 0 : i64, tpu.core_type = #tpu.core_type<tc>, window_params = [{transform_indices = @transform_0, window_bounds = array<i64: 256, 6>}, {pipeline_mode = #tpu.pipeline_mode<synchronous>, transform_indices = @transform_1, window_bounds = array<i64: 6, 128>}, {pipeline_mode = #tpu.pipeline_mode<synchronous>, transform_indices = @transform_2, window_bounds = array<i64: 1, 128>}, {pipeline_mode = #tpu.pipeline_mode<synchronous>, transform_indices = @transform_3, window_bounds = array<i64: 128, 256>}, {pipeline_mode = #tpu.pipeline_mode<synchronous>, transform_indices = @transform_4, window_bounds = array<i64: 1, 256>}, {pipeline_mode = #tpu.pipeline_mode<synchronous>, transform_indices = @transform_5, window_bounds = array<i64: 256, 512>}, {pipeline_mode = #tpu.pipeline_mode<synchronous>, transform_indices = @transform_6, window_bounds = array<i64: 256, 512>}, {pipeline_mode = #tpu.pipeline_mode<synchronous>, transform_indices = @transform_7, window_bounds = array<i64: 1, 512>}, {transform_indices = @transform_8, window_bounds = array<i64: 256, 512>}, {transform_indices = @transform_9, window_bounds = array<i64: 1, 1, 512>}, {transform_indices = @transform_10, window_bounds = array<i64: 1, 1, 512>}]} {
    %c0 = arith.constant 0 : index
    %c0_0 = arith.constant 0 : index
    %0 = vector.load %arg1[%c0, %c0_0] : memref<256x6xbf16, #tpu.memory_space<vmem>>, vector<256x6xbf16>
    %c0_1 = arith.constant 0 : index
    %c0_2 = arith.constant 0 : index
    %1 = vector.load %arg2[%c0_1, %c0_2] : memref<6x128xbf16, #tpu.memory_space<vmem>>, vector<6x128xbf16>
    %cst = arith.constant dense<0.000000e+00> : vector<256x128xf32>
    %2 = tpu.matmul %0, %1, %cst {dimension_numbers = #tpu.dot_dimension_numbers<[1], [0], [0], [1], [0, 0, 1, 1], [], []>} : vector<256x6xbf16>, vector<6x128xbf16>, vector<256x128xf32> -> vector<256x128xf32>
    %c0_3 = arith.constant 0 : index
    %c0_4 = arith.constant 0 : index
    %3 = vector.load %arg3[%c0_3, %c0_4] : memref<1x128xf32, #tpu.memory_space<vmem>>, vector<1x128xf32>
    %4 = vector.broadcast %3 : vector<1x128xf32> to vector<256x128xf32>
    %5 = arith.addf %2, %4 : vector<256x128xf32>
    %cst_5 = arith.constant 0.000000e+00 : f32
    %6 = vector.broadcast %cst_5 : f32 to vector<256x128xf32>
    %7 = arith.maximumf %5, %6 : vector<256x128xf32>
    %8 = arith.truncf %7 : vector<256x128xf32> to vector<256x128xbf16>
    %c0_6 = arith.constant 0 : index
    %c0_7 = arith.constant 0 : index
    %9 = vector.load %arg4[%c0_6, %c0_7] : memref<128x256xbf16, #tpu.memory_space<vmem>>, vector<128x256xbf16>
    %cst_8 = arith.constant dense<0.000000e+00> : vector<256x256xf32>
    %10 = tpu.matmul %8, %9, %cst_8 {dimension_numbers = #tpu.dot_dimension_numbers<[1], [0], [0], [1], [0, 0, 1, 1], [], []>} : vector<256x128xbf16>, vector<128x256xbf16>, vector<256x256xf32> -> vector<256x256xf32>
    %c0_9 = arith.constant 0 : index
    %c0_10 = arith.constant 0 : index
    %11 = vector.load %arg5[%c0_9, %c0_10] : memref<1x256xf32, #tpu.memory_space<vmem>>, vector<1x256xf32>
    %12 = vector.broadcast %11 : vector<1x256xf32> to vector<256x256xf32>
    %13 = arith.addf %10, %12 : vector<256x256xf32>
    %14 = vector.shape_cast %13 : vector<256x256xf32> to vector<8x32x256xf32>
    %cst_11 = arith.constant dense<0xFF800000> : vector<8x256xf32>
    %15 = vector.multi_reduction <maximumf>, %14, %cst_11 [1] : vector<8x32x256xf32> to vector<8x256xf32>
    %16 = arith.truncf %13 : vector<256x256xf32> to vector<256x256xbf16>
    %c0_12 = arith.constant 0 : index
    %c0_13 = arith.constant 0 : index
    %17 = vector.load %arg6[%c0_12, %c0_13] : memref<256x512xbf16, #tpu.memory_space<vmem>>, vector<256x512xbf16>
    %cst_14 = arith.constant dense<0.000000e+00> : vector<256x512xf32>
    %18 = tpu.matmul %16, %17, %cst_14 {dimension_numbers = #tpu.dot_dimension_numbers<[1], [0], [0], [1], [0, 0, 1, 1], [], []>} : vector<256x256xbf16>, vector<256x512xbf16>, vector<256x512xf32> -> vector<256x512xf32>
    %19 = arith.truncf %15 : vector<8x256xf32> to vector<8x256xbf16>
    %c0_15 = arith.constant 0 : index
    %c0_16 = arith.constant 0 : index
    %20 = vector.load %arg7[%c0_15, %c0_16] : memref<256x512xbf16, #tpu.memory_space<vmem>>, vector<256x512xbf16>
    %cst_17 = arith.constant dense<0.000000e+00> : vector<8x512xf32>
    %21 = tpu.matmul %19, %20, %cst_17 {dimension_numbers = #tpu.dot_dimension_numbers<[1], [0], [0], [1], [0, 0, 1, 1], [], []>} : vector<8x256xbf16>, vector<256x512xbf16>, vector<8x512xf32> -> vector<8x512xf32>
    %22 = vector.shape_cast %18 : vector<256x512xf32> to vector<8x32x512xf32>
    %23 = vector.shape_cast %21 : vector<8x512xf32> to vector<8x1x512xf32>
    %24 = vector.broadcast %23 : vector<8x1x512xf32> to vector<8x32x512xf32>
    %25 = arith.addf %22, %24 : vector<8x32x512xf32>
    %c0_18 = arith.constant 0 : index
    %c0_19 = arith.constant 0 : index
    %26 = vector.load %arg8[%c0_18, %c0_19] : memref<1x512xf32, #tpu.memory_space<vmem>>, vector<1x512xf32>
    %27 = vector.shape_cast %26 : vector<1x512xf32> to vector<1x1x512xf32>
    %28 = vector.broadcast %27 : vector<1x1x512xf32> to vector<8x32x512xf32>
    %29 = arith.addf %25, %28 : vector<8x32x512xf32>
    %30 = vector.shape_cast %29 : vector<8x32x512xf32> to vector<256x512xf32>
    %31 = arith.truncf %30 : vector<256x512xf32> to vector<256x512xbf16>
    %c0_20 = arith.constant 0 : index
    %c0_21 = arith.constant 0 : index
    %32 = vector.load %arg9[%c0_20, %c0_21] : memref<256x512xbf16, #tpu.memory_space<vmem>>, vector<256x512xbf16>
    tpu.vector_store %arg9[%c0_20, %c0_21], %31 {strides = array<i32>} : memref<256x512xbf16, #tpu.memory_space<vmem>>, vector<256x512xbf16>,
    %cst_22 = arith.constant dense<0.000000e+00> : vector<512xf32>
    %33 = vector.multi_reduction <add>, %29, %cst_22 [0, 1] : vector<8x32x512xf32> to vector<512xf32>
    %34 = vector.shape_cast %33 : vector<512xf32> to vector<1x1x512xf32>
    %c0_23 = arith.constant 0 : index
    %c0_24 = arith.constant 0 : index
    %c0_25 = arith.constant 0 : index
    %35 = vector.load %arg10[%c0_23, %c0_24, %c0_25] : memref<1x1x512xf32, #tpu.memory_space<vmem>>, vector<1x1x512xf32>
    tpu.vector_store %arg10[%c0_23, %c0_24, %c0_25], %34 {strides = array<i32>} : memref<1x1x512xf32, #tpu.memory_space<vmem>>, vector<1x1x512xf32>,
    %36 = arith.mulf %29, %29 : vector<8x32x512xf32>
    %cst_26 = arith.constant dense<0.000000e+00> : vector<512xf32>
    %37 = vector.multi_reduction <add>, %36, %cst_26 [0, 1] : vector<8x32x512xf32> to vector<512xf32>
    %38 = vector.shape_cast %37 : vector<512xf32> to vector<1x1x512xf32>
    %c0_27 = arith.constant 0 : index
    %c0_28 = arith.constant 0 : index
    %c0_29 = arith.constant 0 : index
    %39 = vector.load %arg11[%c0_27, %c0_28, %c0_29] : memref<1x1x512xf32, #tpu.memory_space<vmem>>, vector<1x1x512xf32>
    tpu.vector_store %arg11[%c0_27, %c0_28, %c0_29], %38 {strides = array<i32>} : memref<1x1x512xf32, #tpu.memory_space<vmem>>, vector<1x1x512xf32>,
    return
  }
  func.func @transform_0(%arg0: i32) -> (i32, i32) {
    %c0_i32 = arith.constant 0 : i32
    %c0_i32_0 = arith.constant 0 : i32
    return %arg0, %c0_i32 : i32, i32
  }
  func.func @transform_1(%arg0: i32) -> (i32, i32) {
    %c0_i32 = arith.constant 0 : i32
    %c0_i32_0 = arith.constant 0 : i32
    %c0_i32_1 = arith.constant 0 : i32
    return %c0_i32, %c0_i32_0 : i32, i32
  }
  func.func @transform_2(%arg0: i32) -> (i32, i32) {
    %c0_i32 = arith.constant 0 : i32
    %c0_i32_0 = arith.constant 0 : i32
    %c0_i32_1 = arith.constant 0 : i32
    return %c0_i32, %c0_i32_0 : i32, i32
  }
  func.func @transform_3(%arg0: i32) -> (i32, i32) {
    %c0_i32 = arith.constant 0 : i32
    %c0_i32_0 = arith.constant 0 : i32
    %c0_i32_1 = arith.constant 0 : i32
    return %c0_i32, %c0_i32_0 : i32, i32
  }
  func.func @transform_4(%arg0: i32) -> (i32, i32) {
    %c0_i32 = arith.constant 0 : i32
    %c0_i32_0 = arith.constant 0 : i32
    %c0_i32_1 = arith.constant 0 : i32
    return %c0_i32, %c0_i32_0 : i32, i32
  }
  func.func @transform_5(%arg0: i32) -> (i32, i32) {
    %c0_i32 = arith.constant 0 : i32
    %c0_i32_0 = arith.constant 0 : i32
    %c0_i32_1 = arith.constant 0 : i32
    return %c0_i32, %c0_i32_0 : i32, i32
  }
  func.func @transform_6(%arg0: i32) -> (i32, i32) {
    %c0_i32 = arith.constant 0 : i32
    %c0_i32_0 = arith.constant 0 : i32
    %c0_i32_1 = arith.constant 0 : i32
    return %c0_i32, %c0_i32_0 : i32, i32
  }
  func.func @transform_7(%arg0: i32) -> (i32, i32) {
    %c0_i32 = arith.constant 0 : i32
    %c0_i32_0 = arith.constant 0 : i32
    %c0_i32_1 = arith.constant 0 : i32
    return %c0_i32, %c0_i32_0 : i32, i32
  }
  func.func @transform_8(%arg0: i32) -> (i32, i32) {
    %c0_i32 = arith.constant 0 : i32
    %c0_i32_0 = arith.constant 0 : i32
    return %arg0, %c0_i32 : i32, i32
  }
  func.func @transform_9(%arg0: i32) -> (i32, i32, i32) {
    %c0_i32 = arith.constant 0 : i32
    %c0_i32_0 = arith.constant 0 : i32
    %c0_i32_1 = arith.constant 0 : i32
    return %arg0, %c0_i32, %c0_i32_0 : i32, i32, i32
  }
  func.func @transform_10(%arg0: i32) -> (i32, i32, i32) {
    %c0_i32 = arith.constant 0 : i32
    %c0_i32_0 = arith.constant 0 : i32
    %c0_i32_1 = arith.constant 0 : i32
    return %arg0, %c0_i32, %c0_i32_0 : i32, i32, i32
  }
}

</mosaic_0001>

<llo_original>
// kernel: encoder_forward.3
$region0: #{encoder_forward.3}
  #allocation0 [shape = 'u32[]', space=smem, size = 0x4, offset = 0x4, fixed_abs, tag = 'smem constant byte address 0x4 - core index']
  #allocation1 [shape = 'u32[144,128]{1,0:T(1,128)}', space=vmem, size = 0x12000, scoped, tag = 'internal scratch']
  %s0 = inlined_call_operand.vmem [shape: bf16[256,512], index: 0, kind: input, shape index: {}]
  %s1 = inlined_call_operand.vmem [shape: f32[1,512], index: 1, kind: input, shape index: {}]
  %s2 = inlined_call_operand.vmem [shape: f32[1,512], index: 2, kind: input, shape index: {}]
  %s3 = inlined_call_operand.vmem [shape: bf16[512,256], index: 3, kind: input, shape index: {}]
  %s4 = inlined_call_operand.vmem [shape: f32[1,256], index: 4, kind: input, shape index: {}]
  %s5 = inlined_call_operand.vmem [shape: f32[8,256], index: 5, kind: output, shape index: {}]
  %s6 = sld [smem:[#allocation0]]
  $region30: #{encoder_forward.3} parent=0
    _
  %s8 = ssub.s32 1, %s6
  %s9 = scalar_select 0, %s8, %s6
  // Predicated region
  $region2: #{encoder_forward.3} parent=0 // pred_check
    _
  $region3: #{encoder_forward.3} parent=0 // pred_check_branch
    %11 = sbr.rel (0) target = $region5
  $region4: #{encoder_forward.3} parent=0 // pred_region
    _
  $region5: #{encoder_forward.3} parent=0 // pred_fallthru
    _
  // Predicated region
  $region6: #{encoder_forward.3} parent=0 // pred_check
    _
  $region7: #{encoder_forward.3} parent=0 // pred_check_branch
    %13 = sbr.rel (0) target = $region9
  $region8: #{encoder_forward.3} parent=0 // pred_region
    _
  $region9: #{encoder_forward.3} parent=0 // pred_fallthru
    _
  // Predicated region
  $region10: #{encoder_forward.3} parent=0 // pred_check
    _
  $region11: #{encoder_forward.3} parent=0 // pred_check_branch
    %15 = sbr.rel (0) target = $region13
  $region12: #{encoder_forward.3} parent=0 // pred_region
    _
  $region13: #{encoder_forward.3} parent=0 // pred_fallthru
    _
  // Predicated region
  $region14: #{encoder_forward.3} parent=0 // pred_check
    _
  $region15: #{encoder_forward.3} parent=0 // pred_check_branch
    %17 = sbr.rel (0) target = $region17
  $region16: #{encoder_forward.3} parent=0 // pred_region
    _
  $region17: #{encoder_forward.3} parent=0 // pred_fallthru
    _
  // Predicated region
  $region18: #{encoder_forward.3} parent=0 // pred_check
    _
  $region19: #{encoder_forward.3} parent=0 // pred_check_branch
    %19 = sbr.rel (0) target = $region21
  $region20: #{encoder_forward.3} parent=0 // pred_region
    _
  $region21: #{encoder_forward.3} parent=0 // pred_fallthru
    _
  %v20 = vld [vmem:[%s0] sm:$0xff]
  %v21 = vld [vmem:[%s0 + $0x8] sm:$0xff]
  %v22 = vld [vmem:[%s0 + $0x10] sm:$0xff]
  %v23 = vld [vmem:[%s0 + $0x18] sm:$0xff]
  %v24 = vld [vmem:[%s0 + $0x20] sm:$0xff]
  %v25 = vld [vmem:[%s0 + $0x28] sm:$0xff]
  %v26 = vld [vmem:[%s0 + $0x30] sm:$0xff]
  %v27 = vld [vmem:[%s0 + $0x38] sm:$0xff]
  %v28 = vld [vmem:[%s0 + $0x40] sm:$0xff]
  %v29 = vld [vmem:[%s0 + $0x48] sm:$0xff]
  %v30 = vld [vmem:[%s0 + $0x50] sm:$0xff]
  %v31 = vld [vmem:[%s0 + $0x58] sm:$0xff]
  %v32 = vld [vmem:[%s0 + $0x60] sm:$0xff]
  %v33 = vld [vmem:[%s0 + $0x68] sm:$0xff]
  %v34 = vld [vmem:[%s0 + $0x70] sm:$0xff]
  %v35 = vld [vmem:[%s0 + $0x78] sm:$0xff]
  %v36 = vld [vmem:[%s0 + $0x80] sm:$0xff]
  %v37 = vld [vmem:[%s0 + $0x88] sm:$0xff]
  %v38 = vld [vmem:[%s0 + $0x90] sm:$0xff]
  %v39 = vld [vmem:[%s0 + $0x98] sm:$0xff]
  %v40 = vld [vmem:[%s0 + $0xa0] sm:$0xff]
  %v41 = vld [vmem:[%s0 + $0xa8] sm:$0xff]
  %v42 = vld [vmem:[%s0 + $0xb0] sm:$0xff]
  %v43 = vld [vmem:[%s0 + $0xb8] sm:$0xff]
  %v44 = vld [vmem:[%s0 + $0xc0] sm:$0xff]
  %v45 = vld [vmem:[%s0 + $0xc8] sm:$0xff]
  %v46 = vld [vmem:[%s0 + $0xd0] sm:$0xff]
  %v47 = vld [vmem:[%s0 + $0xd8] sm:$0xff]
  %v48 = vld [vmem:[%s0 + $0xe0] sm:$0xff]
  %v49 = vld [vmem:[%s0 + $0xe8] sm:$0xff]
  %v50 = vld [vmem:[%s0 + $0xf0] sm:$0xff]
  %v51 = vld [vmem:[%s0 + $0xf8] sm:$0xff]
  %v52 = vld [vmem:[%s0 + $0x100] sm:$0xff]
  %v53 = vld [vmem:[%s0 + $0x108] sm:$0xff]
  %v54 = vld [vmem:[%s0 + $0x110] sm:$0xff]
  %v55 = vld [vmem:[%s0 + $0x118] sm:$0xff]
  %v56 = vld [vmem:[%s0 + $0x120] sm:$0xff]
  %v57 = vld [vmem:[%s0 + $0x128] sm:$0xff]
  %v58 = vld [vmem:[%s0 + $0x130] sm:$0xff]
  %v59 = vld [vmem:[%s0 + $0x138] sm:$0xff]
  %v60 = vld [vmem:[%s0 + $0x140] sm:$0xff]
  %v61 = vld [vmem:[%s0 + $0x148] sm:$0xff]
  %v62 = vld [vmem:[%s0 + $0x150] sm:$0xff]
  %v63 = vld [vmem:[%s0 + $0x158] sm:$0xff]
  %v64 = vld [vmem:[%s0 + $0x160] sm:$0xff]
  %v65 = vld [vmem:[%s0 + $0x168] sm:$0xff]
  %v66 = vld [vmem:[%s0 + $0x170] sm:$0xff]
  %v67 = vld [vmem:[%s0 + $0x178] sm:$0xff]
  %v68 = vld [vmem:[%s0 + $0x180] sm:$0xff]
  %v69 = vld [vmem:[%s0 + $0x188] sm:$0xff]
  %v70 = vld [vmem:[%s0 + $0x190] sm:$0xff]
  %v71 = vld [vmem:[%s0 + $0x198] sm:$0xff]
  %v72 = vld [vmem:[%s0 + $0x1a0] sm:$0xff]
  %v73 = vld [vmem:[%s0 + $0x1a8] sm:$0xff]
  %v74 = vld [vmem:[%s0 + $0x1b0] sm:$0xff]
  %v75 = vld [vmem:[%s0 + $0x1b8] sm:$0xff]
  %v76 = vld [vmem:[%s0 + $0x1c0] sm:$0xff]
  %v77 = vld [vmem:[%s0 + $0x1c8] sm:$0xff]
  %v78 = vld [vmem:[%s0 + $0x1d0] sm:$0xff]
  %v79 = vld [vmem:[%s0 + $0x1d8] sm:$0xff]
  %v80 = vld [vmem:[%s0 + $0x1e0] sm:$0xff]
  %v81 = vld [vmem:[%s0 + $0x1e8] sm:$0xff]
  %v82 = vld [vmem:[%s0 + $0x1f0] sm:$0xff]
  %v83 = vld [vmem:[%s0 + $0x1f8] sm:$0xff]
  %v84 = vunpack.c.l.bf16 %v20
  %v85 = vunpack.c.h.bf16 %v20
  %v86 = vunpack.c.l.bf16 %v21
  %v87 = vunpack.c.h.bf16 %v21
  %v88 = vunpack.c.l.bf16 %v22
  %v89 = vunpack.c.h.bf16 %v22
  %v90 = vunpack.c.l.bf16 %v23
  %v91 = vunpack.c.h.bf16 %v23
  %v92 = vunpack.c.l.bf16 %v24
  %v93 = vunpack.c.h.bf16 %v24
  %v94 = vunpack.c.l.bf16 %v25
  %v95 = vunpack.c.h.bf16 %v25
  %v96 = vunpack.c.l.bf16 %v26
  %v97 = vunpack.c.h.bf16 %v26
  %v98 = vunpack.c.l.bf16 %v27
  %v99 = vunpack.c.h.bf16 %v27
  %v100 = vunpack.c.l.bf16 %v28
  %v101 = vunpack.c.h.bf16 %v28
  %v102 = vunpack.c.l.bf16 %v29
  %v103 = vunpack.c.h.bf16 %v29
  %v104 = vunpack.c.l.bf16 %v30
  %v105 = vunpack.c.h.bf16 %v30
  %v106 = vunpack.c.l.bf16 %v31
  %v107 = vunpack.c.h.bf16 %v31
  %v108 = vunpack.c.l.bf16 %v32
  %v109 = vunpack.c.h.bf16 %v32
  %v110 = vunpack.c.l.bf16 %v33
  %v111 = vunpack.c.h.bf16 %v33
  %v112 = vunpack.c.l.bf16 %v34
  %v113 = vunpack.c.h.bf16 %v34
  %v114 = vunpack.c.l.bf16 %v35
  %v115 = vunpack.c.h.bf16 %v35
  %v116 = vunpack.c.l.bf16 %v36
  %v117 = vunpack.c.h.bf16 %v36
  %v118 = vunpack.c.l.bf16 %v37
  %v119 = vunpack.c.h.bf16 %v37
  %v120 = vunpack.c.l.bf16 %v38
  %v121 = vunpack.c.h.bf16 %v38
  %v122 = vunpack.c.l.bf16 %v39
  %v123 = vunpack.c.h.bf16 %v39
  %v124 = vunpack.c.l.bf16 %v40
  %v125 = vunpack.c.h.bf16 %v40
  %v126 = vunpack.c.l.bf16 %v41
  %v127 = vunpack.c.h.bf16 %v41
  %v128 = vunpack.c.l.bf16 %v42
  %v129 = vunpack.c.h.bf16 %v42
  %v130 = vunpack.c.l.bf16 %v43
  %v131 = vunpack.c.h.bf16 %v43
  %v132 = vunpack.c.l.bf16 %v44
  %v133 = vunpack.c.h.bf16 %v44
  %v134 = vunpack.c.l.bf16 %v45
  %v135 = vunpack.c.h.bf16 %v45
  %v136 = vunpack.c.l.bf16 %v46
  %v137 = vunpack.c.h.bf16 %v46
  %v138 = vunpack.c.l.bf16 %v47
  %v139 = vunpack.c.h.bf16 %v47
  %v140 = vunpack.c.l.bf16 %v48
  %v141 = vunpack.c.h.bf16 %v48
  %v142 = vunpack.c.l.bf16 %v49
  %v143 = vunpack.c.h.bf16 %v49
  %v144 = vunpack.c.l.bf16 %v50
  %v145 = vunpack.c.h.bf16 %v50
  %v146 = vunpack.c.l.bf16 %v51
  %v147 = vunpack.c.h.bf16 %v51
  %v148 = vunpack.c.l.bf16 %v52
  %v149 = vunpack.c.h.bf16 %v52
  %v150 = vunpack.c.l.bf16 %v53
  %v151 = vunpack.c.h.bf16 %v53
  %v152 = vunpack.c.l.bf16 %v54
  %v153 = vunpack.c.h.bf16 %v54
  %v154 = vunpack.c.l.bf16 %v55
  %v155 = vunpack.c.h.bf16 %v55
  %v156 = vunpack.c.l.bf16 %v56
  %v157 = vunpack.c.h.bf16 %v56
  %v158 = vunpack.c.l.bf16 %v57
  %v159 = vunpack.c.h.bf16 %v57
  %v160 = vunpack.c.l.bf16 %v58
  %v161 = vunpack.c.h.bf16 %v58
  %v162 = vunpack.c.l.bf16 %v59
  %v163 = vunpack.c.h.bf16 %v59
  %v164 = vunpack.c.l.bf16 %v60
  %v165 = vunpack.c.h.bf16 %v60
  %v166 = vunpack.c.l.bf16 %v61
  %v167 = vunpack.c.h.bf16 %v61
  %v168 = vunpack.c.l.bf16 %v62
  %v169 = vunpack.c.h.bf16 %v62
  %v170 = vunpack.c.l.bf16 %v63
  %v171 = vunpack.c.h.bf16 %v63
  %v172 = vunpack.c.l.bf16 %v64
  %v173 = vunpack.c.h.bf16 %v64
  %v174 = vunpack.c.l.bf16 %v65
  %v175 = vunpack.c.h.bf16 %v65
  %v176 = vunpack.c.l.bf16 %v66
  %v177 = vunpack.c.h.bf16 %v66
  %v178 = vunpack.c.l.bf16 %v67
  %v179 = vunpack.c.h.bf16 %v67
  %v180 = vunpack.c.l.bf16 %v68
  %v181 = vunpack.c.h.bf16 %v68
  %v182 = vunpack.c.l.bf16 %v69
  %v183 = vunpack.c.h.bf16 %v69
  %v184 = vunpack.c.l.bf16 %v70
  %v185 = vunpack.c.h.bf16 %v70
  %v186 = vunpack.c.l.bf16 %v71
  %v187 = vunpack.c.h.bf16 %v71
  %v188 = vunpack.c.l.bf16 %v72
  %v189 = vunpack.c.h.bf16 %v72
  %v190 = vunpack.c.l.bf16 %v73
  %v191 = vunpack.c.h.bf16 %v73
  %v192 = vunpack.c.l.bf16 %v74
  %v193 = vunpack.c.h.bf16 %v74
  %v194 = vunpack.c.l.bf16 %v75
  %v195 = vunpack.c.h.bf16 %v75
  %v196 = vunpack.c.l.bf16 %v76
  %v197 = vunpack.c.h.bf16 %v76
  %v198 = vunpack.c.l.bf16 %v77
  %v199 = vunpack.c.h.bf16 %v77
  %v200 = vunpack.c.l.bf16 %v78
  %v201 = vunpack.c.h.bf16 %v78
  %v202 = vunpack.c.l.bf16 %v79
  %v203 = vunpack.c.h.bf16 %v79
  %v204 = vunpack.c.l.bf16 %v80
  %v205 = vunpack.c.h.bf16 %v80
  %v206 = vunpack.c.l.bf16 %v81
  %v207 = vunpack.c.h.bf16 %v81
  %v208 = vunpack.c.l.bf16 %v82
  %v209 = vunpack.c.h.bf16 %v82
  %v210 = vunpack.c.l.bf16 %v83
  %v211 = vunpack.c.h.bf16 %v83
  %v212 = vld [vmem:[%s1] sm:$0xf]
  %v214 = vlaneseq
  %v215 = vshrl.u32 %v214, 7
  %v216 = vsub.s32 0, %v215
  %v217 = vrot.slane %v212, %v216
  %v218 = vlaneseq
  %v219 = vshrl.u32 %v218, 7
  %v220 = vsub.s32 1, %v219
  %v221 = vrot.slane %v212, %v220
  %v222 = vlaneseq
  %v223 = vshrl.u32 %v222, 7
  %v224 = vsub.s32 2, %v223
  %v225 = vrot.slane %v212, %v224
  %v226 = vlaneseq
  %v227 = vshrl.u32 %v226, 7
  %v228 = vsub.s32 3, %v227
  %v229 = vrot.slane %v212, %v228
  %v234 = vmul.f32 %v84, %v217
  %v235 = vmul.f32 %v85, %v221
  %v236 = vmul.f32 %v86, %v225
  %v237 = vmul.f32 %v87, %v229
  %v238 = vmul.f32 %v88, %v217
  %v239 = vmul.f32 %v89, %v221
  %v240 = vmul.f32 %v90, %v225
  %v241 = vmul.f32 %v91, %v229
  %v242 = vmul.f32 %v92, %v217
  %v243 = vmul.f32 %v93, %v221
  %v244 = vmul.f32 %v94, %v225
  %v245 = vmul.f32 %v95, %v229
  %v246 = vmul.f32 %v96, %v217
  %v247 = vmul.f32 %v97, %v221
  %v248 = vmul.f32 %v98, %v225
  %v249 = vmul.f32 %v99, %v229
  %v250 = vmul.f32 %v100, %v217
  %v251 = vmul.f32 %v101, %v221
  %v252 = vmul.f32 %v102, %v225
  %v253 = vmul.f32 %v103, %v229
  %v254 = vmul.f32 %v104, %v217
  %v255 = vmul.f32 %v105, %v221
  %v256 = vmul.f32 %v106, %v225
  %v257 = vmul.f32 %v107, %v229
  %v258 = vmul.f32 %v108, %v217
  %v259 = vmul.f32 %v109, %v221
  %v260 = vmul.f32 %v110, %v225
  %v261 = vmul.f32 %v111, %v229
  %v262 = vmul.f32 %v112, %v217
  %v263 = vmul.f32 %v113, %v221
  %v264 = vmul.f32 %v114, %v225
  %v265 = vmul.f32 %v115, %v229
  %v266 = vmul.f32 %v116, %v217
  %v267 = vmul.f32 %v117, %v221
  %v268 = vmul.f32 %v118, %v225
  %v269 = vmul.f32 %v119, %v229
  %v270 = vmul.f32 %v120, %v217
  %v271 = vmul.f32 %v121, %v221
  %v272 = vmul.f32 %v122, %v225
  %v273 = vmul.f32 %v123, %v229
  %v274 = vmul.f32 %v124, %v217
  %v275 = vmul.f32 %v125, %v221
  %v276 = vmul.f32 %v126, %v225
  %v277 = vmul.f32 %v127, %v229
  %v278 = vmul.f32 %v128, %v217
  %v279 = vmul.f32 %v129, %v221
  %v280 = vmul.f32 %v130, %v225
  %v281 = vmul.f32 %v131, %v229
  %v282 = vmul.f32 %v132, %v217
  %v283 = vmul.f32 %v133, %v221
  %v284 = vmul.f32 %v134, %v225
  %v285 = vmul.f32 %v135, %v229
  %v286 = vmul.f32 %v136, %v217
  %v287 = vmul.f32 %v137, %v221
  %v288 = vmul.f32 %v138, %v225
  %v289 = vmul.f32 %v139, %v229
  %v290 = vmul.f32 %v140, %v217
  %v291 = vmul.f32 %v141, %v221
  %v292 = vmul.f32 %v142, %v225
  %v293 = vmul.f32 %v143, %v229
  %v294 = vmul.f32 %v144, %v217
  %v295 = vmul.f32 %v145, %v221
  %v296 = vmul.f32 %v146, %v225
  %v297 = vmul.f32 %v147, %v229
  %v298 = vmul.f32 %v148, %v217
  %v299 = vmul.f32 %v149, %v221
  %v300 = vmul.f32 %v150, %v225
  %v301 = vmul.f32 %v151, %v229
  %v302 = vmul.f32 %v152, %v217
  %v303 = vmul.f32 %v153, %v221
  %v304 = vmul.f32 %v154, %v225
  %v305 = vmul.f32 %v155, %v229
  %v306 = vmul.f32 %v156, %v217
  %v307 = vmul.f32 %v157, %v221
  %v308 = vmul.f32 %v158, %v225
  %v309 = vmul.f32 %v159, %v229
  %v310 = vmul.f32 %v160, %v217
  %v311 = vmul.f32 %v161, %v221
  %v312 = vmul.f32 %v162, %v225
  %v313 = vmul.f32 %v163, %v229
  %v314 = vmul.f32 %v164, %v217
  %v315 = vmul.f32 %v165, %v221
  %v316 = vmul.f32 %v166, %v225
  %v317 = vmul.f32 %v167, %v229
  %v318 = vmul.f32 %v168, %v217
  %v319 = vmul.f32 %v169, %v221
  %v320 = vmul.f32 %v170, %v225
  %v321 = vmul.f32 %v171, %v229
  %v322 = vmul.f32 %v172, %v217
  %v323 = vmul.f32 %v173, %v221
  %v324 = vmul.f32 %v174, %v225
  %v325 = vmul.f32 %v175, %v229
  %v326 = vmul.f32 %v176, %v217
  %v327 = vmul.f32 %v177, %v221
  %v328 = vmul.f32 %v178, %v225
  %v329 = vmul.f32 %v179, %v229
  %v330 = vmul.f32 %v180, %v217
  %v331 = vmul.f32 %v181, %v221
  %v332 = vmul.f32 %v182, %v225
  %v333 = vmul.f32 %v183, %v229
  %v334 = vmul.f32 %v184, %v217
  %v335 = vmul.f32 %v185, %v221
  %v336 = vmul.f32 %v186, %v225
  %v337 = vmul.f32 %v187, %v229
  %v338 = vmul.f32 %v188, %v217
  %v339 = vmul.f32 %v189, %v221
  %v340 = vmul.f32 %v190, %v225
  %v341 = vmul.f32 %v191, %v229
  %v342 = vmul.f32 %v192, %v217
  %v343 = vmul.f32 %v193, %v221
  %v344 = vmul.f32 %v194, %v225
  %v345 = vmul.f32 %v195, %v229
  %v346 = vmul.f32 %v196, %v217
  %v347 = vmul.f32 %v197, %v221
  %v348 = vmul.f32 %v198, %v225
  %v349 = vmul.f32 %v199, %v229
  %v350 = vmul.f32 %v200, %v217
  %v351 = vmul.f32 %v201, %v221
  %v352 = vmul.f32 %v202, %v225
  %v353 = vmul.f32 %v203, %v229
  %v354 = vmul.f32 %v204, %v217
  %v355 = vmul.f32 %v205, %v221
  %v356 = vmul.f32 %v206, %v225
  %v357 = vmul.f32 %v207, %v229
  %v358 = vmul.f32 %v208, %v217
  %v359 = vmul.f32 %v209, %v221
  %v360 = vmul.f32 %v210, %v225
  %v361 = vmul.f32 %v211, %v229
  %v362 = vld [vmem:[%s2] sm:$0xf]
  %v364 = vlaneseq
  %v365 = vshrl.u32 %v364, 7
  %v366 = vsub.s32 0, %v365
  %v367 = vrot.slane %v362, %v366
  %v368 = vlaneseq
  %v369 = vshrl.u32 %v368, 7
  %v370 = vsub.s32 1, %v369
  %v371 = vrot.slane %v362, %v370
  %v372 = vlaneseq
  %v373 = vshrl.u32 %v372, 7
  %v374 = vsub.s32 2, %v373
  %v375 = vrot.slane %v362, %v374
  %v376 = vlaneseq
  %v377 = vshrl.u32 %v376, 7
  %v378 = vsub.s32 3, %v377
  %v379 = vrot.slane %v362, %v378
  %v384 = vadd.f32 %v234, %v367
  %v385 = vadd.f32 %v235, %v371
  %v386 = vadd.f32 %v236, %v375
  %v387 = vadd.f32 %v237, %v379
  %v388 = vadd.f32 %v238, %v367
  %v389 = vadd.f32 %v239, %v371
  %v390 = vadd.f32 %v240, %v375
  %v391 = vadd.f32 %v241, %v379
  %v392 = vadd.f32 %v242, %v367
  %v393 = vadd.f32 %v243, %v371
  %v394 = vadd.f32 %v244, %v375
  %v395 = vadd.f32 %v245, %v379
  %v396 = vadd.f32 %v246, %v367
  %v397 = vadd.f32 %v247, %v371
  %v398 = vadd.f32 %v248, %v375
  %v399 = vadd.f32 %v249, %v379
  %v400 = vadd.f32 %v250, %v367
  %v401 = vadd.f32 %v251, %v371
  %v402 = vadd.f32 %v252, %v375
  %v403 = vadd.f32 %v253, %v379
  %v404 = vadd.f32 %v254, %v367
  %v405 = vadd.f32 %v255, %v371
  %v406 = vadd.f32 %v256, %v375
  %v407 = vadd.f32 %v257, %v379
  %v408 = vadd.f32 %v258, %v367
  %v409 = vadd.f32 %v259, %v371
  %v410 = vadd.f32 %v260, %v375
  %v411 = vadd.f32 %v261, %v379
  %v412 = vadd.f32 %v262, %v367
  %v413 = vadd.f32 %v263, %v371
  %v414 = vadd.f32 %v264, %v375
  %v415 = vadd.f32 %v265, %v379
  %v416 = vadd.f32 %v266, %v367
  %v417 = vadd.f32 %v267, %v371
  %v418 = vadd.f32 %v268, %v375
  %v419 = vadd.f32 %v269, %v379
  %v420 = vadd.f32 %v270, %v367
  %v421 = vadd.f32 %v271, %v371
  %v422 = vadd.f32 %v272, %v375
  %v423 = vadd.f32 %v273, %v379
  %v424 = vadd.f32 %v274, %v367
  %v425 = vadd.f32 %v275, %v371
  %v426 = vadd.f32 %v276, %v375
  %v427 = vadd.f32 %v277, %v379
  %v428 = vadd.f32 %v278, %v367
  %v429 = vadd.f32 %v279, %v371
  %v430 = vadd.f32 %v280, %v375
  %v431 = vadd.f32 %v281, %v379
  %v432 = vadd.f32 %v282, %v367
  %v433 = vadd.f32 %v283, %v371
  %v434 = vadd.f32 %v284, %v375
  %v435 = vadd.f32 %v285, %v379
  %v436 = vadd.f32 %v286, %v367
  %v437 = vadd.f32 %v287, %v371
  %v438 = vadd.f32 %v288, %v375
  %v439 = vadd.f32 %v289, %v379
  %v440 = vadd.f32 %v290, %v367
  %v441 = vadd.f32 %v291, %v371
  %v442 = vadd.f32 %v292, %v375
  %v443 = vadd.f32 %v293, %v379
  %v444 = vadd.f32 %v294, %v367
  %v445 = vadd.f32 %v295, %v371
  %v446 = vadd.f32 %v296, %v375
  %v447 = vadd.f32 %v297, %v379
  %v448 = vadd.f32 %v298, %v367
  %v449 = vadd.f32 %v299, %v371
  %v450 = vadd.f32 %v300, %v375
  %v451 = vadd.f32 %v301, %v379
  %v452 = vadd.f32 %v302, %v367
  %v453 = vadd.f32 %v303, %v371
  %v454 = vadd.f32 %v304, %v375
  %v455 = vadd.f32 %v305, %v379
  %v456 = vadd.f32 %v306, %v367
  %v457 = vadd.f32 %v307, %v371
  %v458 = vadd.f32 %v308, %v375
  %v459 = vadd.f32 %v309, %v379
  %v460 = vadd.f32 %v310, %v367
  %v461 = vadd.f32 %v311, %v371
  %v462 = vadd.f32 %v312, %v375
  %v463 = vadd.f32 %v313, %v379
  %v464 = vadd.f32 %v314, %v367
  %v465 = vadd.f32 %v315, %v371
  %v466 = vadd.f32 %v316, %v375
  %v467 = vadd.f32 %v317, %v379
  %v468 = vadd.f32 %v318, %v367
  %v469 = vadd.f32 %v319, %v371
  %v470 = vadd.f32 %v320, %v375
  %v471 = vadd.f32 %v321, %v379
  %v472 = vadd.f32 %v322, %v367
  %v473 = vadd.f32 %v323, %v371
  %v474 = vadd.f32 %v324, %v375
  %v475 = vadd.f32 %v325, %v379
  %v476 = vadd.f32 %v326, %v367
  %v477 = vadd.f32 %v327, %v371
  %v478 = vadd.f32 %v328, %v375
  %v479 = vadd.f32 %v329, %v379
  %v480 = vadd.f32 %v330, %v367
  %v481 = vadd.f32 %v331, %v371
  %v482 = vadd.f32 %v332, %v375
  %v483 = vadd.f32 %v333, %v379
  %v484 = vadd.f32 %v334, %v367
  %v485 = vadd.f32 %v335, %v371
  %v486 = vadd.f32 %v336, %v375
  %v487 = vadd.f32 %v337, %v379
  %v488 = vadd.f32 %v338, %v367
  %v489 = vadd.f32 %v339, %v371
  %v490 = vadd.f32 %v340, %v375
  %v491 = vadd.f32 %v341, %v379
  %v492 = vadd.f32 %v342, %v367
  %v493 = vadd.f32 %v343, %v371
  %v494 = vadd.f32 %v344, %v375
  %v495 = vadd.f32 %v345, %v379
  %v496 = vadd.f32 %v346, %v367
  %v497 = vadd.f32 %v347, %v371
  %v498 = vadd.f32 %v348, %v375
  %v499 = vadd.f32 %v349, %v379
  %v500 = vadd.f32 %v350, %v367
  %v501 = vadd.f32 %v351, %v371
  %v502 = vadd.f32 %v352, %v375
  %v503 = vadd.f32 %v353, %v379
  %v504 = vadd.f32 %v354, %v367
  %v505 = vadd.f32 %v355, %v371
  %v506 = vadd.f32 %v356, %v375
  %v507 = vadd.f32 %v357, %v379
  %v508 = vadd.f32 %v358, %v367
  %v509 = vadd.f32 %v359, %v371
  %v510 = vadd.f32 %v360, %v375
  %v511 = vadd.f32 %v361, %v379
  %v512 = vmax.f32 %v384, 0.0
  %v513 = vmax.f32 %v385, 0.0
  %v514 = vmax.f32 %v386, 0.0
  %v515 = vmax.f32 %v387, 0.0
  %v516 = vmax.f32 %v388, 0.0
  %v517 = vmax.f32 %v389, 0.0
  %v518 = vmax.f32 %v390, 0.0
  %v519 = vmax.f32 %v391, 0.0
  %v520 = vmax.f32 %v392, 0.0
  %v521 = vmax.f32 %v393, 0.0
  %v522 = vmax.f32 %v394, 0.0
  %v523 = vmax.f32 %v395, 0.0
  %v524 = vmax.f32 %v396, 0.0
  %v525 = vmax.f32 %v397, 0.0
  %v526 = vmax.f32 %v398, 0.0
  %v527 = vmax.f32 %v399, 0.0
  %v528 = vmax.f32 %v400, 0.0
  %v529 = vmax.f32 %v401, 0.0
  %v530 = vmax.f32 %v402, 0.0
  %v531 = vmax.f32 %v403, 0.0
  %v532 = vmax.f32 %v404, 0.0
  %v533 = vmax.f32 %v405, 0.0
  %v534 = vmax.f32 %v406, 0.0
  %v535 = vmax.f32 %v407, 0.0
  %v536 = vmax.f32 %v408, 0.0
  %v537 = vmax.f32 %v409, 0.0
  %v538 = vmax.f32 %v410, 0.0
  %v539 = vmax.f32 %v411, 0.0
  %v540 = vmax.f32 %v412, 0.0
  %v541 = vmax.f32 %v413, 0.0
  %v542 = vmax.f32 %v414, 0.0
  %v543 = vmax.f32 %v415, 0.0
  %v544 = vmax.f32 %v416, 0.0
  %v545 = vmax.f32 %v417, 0.0
  %v546 = vmax.f32 %v418, 0.0
  %v547 = vmax.f32 %v419, 0.0
  %v548 = vmax.f32 %v420, 0.0
  %v549 = vmax.f32 %v421, 0.0
  %v550 = vmax.f32 %v422, 0.0
  %v551 = vmax.f32 %v423, 0.0
  %v552 = vmax.f32 %v424, 0.0
  %v553 = vmax.f32 %v425, 0.0
  %v554 = vmax.f32 %v426, 0.0
  %v555 = vmax.f32 %v427, 0.0
  %v556 = vmax.f32 %v428, 0.0
  %v557 = vmax.f32 %v429, 0.0
  %v558 = vmax.f32 %v430, 0.0
  %v559 = vmax.f32 %v431, 0.0
  %v560 = vmax.f32 %v432, 0.0
  %v561 = vmax.f32 %v433, 0.0
  %v562 = vmax.f32 %v434, 0.0
  %v563 = vmax.f32 %v435, 0.0
  %v564 = vmax.f32 %v436, 0.0
  %v565 = vmax.f32 %v437, 0.0
  %v566 = vmax.f32 %v438, 0.0
  %v567 = vmax.f32 %v439, 0.0
  %v568 = vmax.f32 %v440, 0.0
  %v569 = vmax.f32 %v441, 0.0
  %v570 = vmax.f32 %v442, 0.0
  %v571 = vmax.f32 %v443, 0.0
  %v572 = vmax.f32 %v444, 0.0
  %v573 = vmax.f32 %v445, 0.0
  %v574 = vmax.f32 %v446, 0.0
  %v575 = vmax.f32 %v447, 0.0
  %v576 = vmax.f32 %v448, 0.0
  %v577 = vmax.f32 %v449, 0.0
  %v578 = vmax.f32 %v450, 0.0
  %v579 = vmax.f32 %v451, 0.0
  %v580 = vmax.f32 %v452, 0.0
  %v581 = vmax.f32 %v453, 0.0
  %v582 = vmax.f32 %v454, 0.0
  %v583 = vmax.f32 %v455, 0.0
  %v584 = vmax.f32 %v456, 0.0
  %v585 = vmax.f32 %v457, 0.0
  %v586 = vmax.f32 %v458, 0.0
  %v587 = vmax.f32 %v459, 0.0
  %v588 = vmax.f32 %v460, 0.0
  %v589 = vmax.f32 %v461, 0.0
  %v590 = vmax.f32 %v462, 0.0
  %v591 = vmax.f32 %v463, 0.0
  %v592 = vmax.f32 %v464, 0.0
  %v593 = vmax.f32 %v465, 0.0
  %v594 = vmax.f32 %v466, 0.0
  %v595 = vmax.f32 %v467, 0.0
  %v596 = vmax.f32 %v468, 0.0
  %v597 = vmax.f32 %v469, 0.0
  %v598 = vmax.f32 %v470, 0.0
  %v599 = vmax.f32 %v471, 0.0
  %v600 = vmax.f32 %v472, 0.0
  %v601 = vmax.f32 %v473, 0.0
  %v602 = vmax.f32 %v474, 0.0
  %v603 = vmax.f32 %v475, 0.0
  %v604 = vmax.f32 %v476, 0.0
  %v605 = vmax.f32 %v477, 0.0
  %v606 = vmax.f32 %v478, 0.0
  %v607 = vmax.f32 %v479, 0.0
  %v608 = vmax.f32 %v480, 0.0
  %v609 = vmax.f32 %v481, 0.0
  %v610 = vmax.f32 %v482, 0.0
  %v611 = vmax.f32 %v483, 0.0
  %v612 = vmax.f32 %v484, 0.0
  %v613 = vmax.f32 %v485, 0.0
  %v614 = vmax.f32 %v486, 0.0
  %v615 = vmax.f32 %v487, 0.0
  %v616 = vmax.f32 %v488, 0.0
  %v617 = vmax.f32 %v489, 0.0
  %v618 = vmax.f32 %v490, 0.0
  %v619 = vmax.f32 %v491, 0.0
  %v620 = vmax.f32 %v492, 0.0
  %v621 = vmax.f32 %v493, 0.0
  %v622 = vmax.f32 %v494, 0.0
  %v623 = vmax.f32 %v495, 0.0
  %v624 = vmax.f32 %v496, 0.0
  %v625 = vmax.f32 %v497, 0.0
  %v626 = vmax.f32 %v498, 0.0
  %v627 = vmax.f32 %v499, 0.0
  %v628 = vmax.f32 %v500, 0.0
  %v629 = vmax.f32 %v501, 0.0
  %v630 = vmax.f32 %v502, 0.0
  %v631 = vmax.f32 %v503, 0.0
  %v632 = vmax.f32 %v504, 0.0
  %v633 = vmax.f32 %v505, 0.0
  %v634 = vmax.f32 %v506, 0.0
  %v635 = vmax.f32 %v507, 0.0
  %v636 = vmax.f32 %v508, 0.0
  %v637 = vmax.f32 %v509, 0.0
  %v638 = vmax.f32 %v510, 0.0
  %v639 = vmax.f32 %v511, 0.0
  %v640 = vpack.c.bf16 %v516, %v512
  %v641 = vpack.c.bf16 %v517, %v513
  %v642 = vpack.c.bf16 %v518, %v514
  %v643 = vpack.c.bf16 %v519, %v515
  %v644 = vpack.c.bf16 %v524, %v520
  %v645 = vpack.c.bf16 %v525, %v521
  %v646 = vpack.c.bf16 %v526, %v522
  %v647 = vpack.c.bf16 %v527, %v523
  %v648 = vpack.c.bf16 %v532, %v528
  %v649 = vpack.c.bf16 %v533, %v529
  %v650 = vpack.c.bf16 %v534, %v530
  %v651 = vpack.c.bf16 %v535, %v531
  %v652 = vpack.c.bf16 %v540, %v536
  %v653 = vpack.c.bf16 %v541, %v537
  %v654 = vpack.c.bf16 %v542, %v538
  %v655 = vpack.c.bf16 %v543, %v539
  %v656 = vpack.c.bf16 %v548, %v544
  %v657 = vpack.c.bf16 %v549, %v545
  %v658 = vpack.c.bf16 %v550, %v546
  %v659 = vpack.c.bf16 %v551, %v547
  %v660 = vpack.c.bf16 %v556, %v552
  %v661 = vpack.c.bf16 %v557, %v553
  %v662 = vpack.c.bf16 %v558, %v554
  %v663 = vpack.c.bf16 %v559, %v555
  %v664 = vpack.c.bf16 %v564, %v560
  %v665 = vpack.c.bf16 %v565, %v561
  %v666 = vpack.c.bf16 %v566, %v562
  %v667 = vpack.c.bf16 %v567, %v563
  %v668 = vpack.c.bf16 %v572, %v568
  %v669 = vpack.c.bf16 %v573, %v569
  %v670 = vpack.c.bf16 %v574, %v570
  %v671 = vpack.c.bf16 %v575, %v571
  %v672 = vpack.c.bf16 %v580, %v576
  %v673 = vpack.c.bf16 %v581, %v577
  %v674 = vpack.c.bf16 %v582, %v578
  %v675 = vpack.c.bf16 %v583, %v579
  %v676 = vpack.c.bf16 %v588, %v584
  %v677 = vpack.c.bf16 %v589, %v585
  %v678 = vpack.c.bf16 %v590, %v586
  %v679 = vpack.c.bf16 %v591, %v587
  %v680 = vpack.c.bf16 %v596, %v592
  %v681 = vpack.c.bf16 %v597, %v593
  %v682 = vpack.c.bf16 %v598, %v594
  %v683 = vpack.c.bf16 %v599, %v595
  %v684 = vpack.c.bf16 %v604, %v600
  %v685 = vpack.c.bf16 %v605, %v601
  %v686 = vpack.c.bf16 %v606, %v602
  %v687 = vpack.c.bf16 %v607, %v603
  %v688 = vpack.c.bf16 %v612, %v608
  %v689 = vpack.c.bf16 %v613, %v609
  %v690 = vpack.c.bf16 %v614, %v610
  %v691 = vpack.c.bf16 %v615, %v611
  %v692 = vpack.c.bf16 %v620, %v616
  %v693 = vpack.c.bf16 %v621, %v617
  %v694 = vpack.c.bf16 %v622, %v618
  %v695 = vpack.c.bf16 %v623, %v619
  %v696 = vpack.c.bf16 %v628, %v624
  %v697 = vpack.c.bf16 %v629, %v625
  %v698 = vpack.c.bf16 %v630, %v626
  %v699 = vpack.c.bf16 %v631, %v627
  %v700 = vpack.c.bf16 %v636, %v632
  %v701 = vpack.c.bf16 %v637, %v633
  %v702 = vpack.c.bf16 %v638, %v634
  %v703 = vpack.c.bf16 %v639, %v635
  %v704 = vld [vmem:[%s3] sm:$0xff]
  %v705 = vld [vmem:[%s3 + $0x8] sm:$0xff]
  %v706 = vld [vmem:[%s3 + $0x10] sm:$0xff]
  %v707 = vld [vmem:[%s3 + $0x18] sm:$0xff]
  %v708 = vld [vmem:[%s3 + $0x20] sm:$0xff]
  %v709 = vld [vmem:[%s3 + $0x28] sm:$0xff]
  %v710 = vld [vmem:[%s3 + $0x30] sm:$0xff]
  %v711 = vld [vmem:[%s3 + $0x38] sm:$0xff]
  %v712 = vld [vmem:[%s3 + $0x40] sm:$0xff]
  %v713 = vld [vmem:[%s3 + $0x48] sm:$0xff]
  %v714 = vld [vmem:[%s3 + $0x50] sm:$0xff]
  %v715 = vld [vmem:[%s3 + $0x58] sm:$0xff]
  %v716 = vld [vmem:[%s3 + $0x60] sm:$0xff]
  %v717 = vld [vmem:[%s3 + $0x68] sm:$0xff]
  %v718 = vld [vmem:[%s3 + $0x70] sm:$0xff]
  %v719 = vld [vmem:[%s3 + $0x78] sm:$0xff]
  %v720 = vld [vmem:[%s3 + $0x80] sm:$0xff]
  %v721 = vld [vmem:[%s3 + $0x88] sm:$0xff]
  %v722 = vld [vmem:[%s3 + $0x90] sm:$0xff]
  %v723 = vld [vmem:[%s3 + $0x98] sm:$0xff]
  %v724 = vld [vmem:[%s3 + $0xa0] sm:$0xff]
  %v725 = vld [vmem:[%s3 + $0xa8] sm:$0xff]
  %v726 = vld [vmem:[%s3 + $0xb0] sm:$0xff]
  %v727 = vld [vmem:[%s3 + $0xb8] sm:$0xff]
  %v728 = vld [vmem:[%s3 + $0xc0] sm:$0xff]
  %v729 = vld [vmem:[%s3 + $0xc8] sm:$0xff]
  %v730 = vld [vmem:[%s3 + $0xd0] sm:$0xff]
  %v731 = vld [vmem:[%s3 + $0xd8] sm:$0xff]
  %v732 = vld [vmem:[%s3 + $0xe0] sm:$0xff]
  %v733 = vld [vmem:[%s3 + $0xe8] sm:$0xff]
  %v734 = vld [vmem:[%s3 + $0xf0] sm:$0xff]
  %v735 = vld [vmem:[%s3 + $0xf8] sm:$0xff]
  %v736 = vld [vmem:[%s3 + $0x100] sm:$0xff]
  %v737 = vld [vmem:[%s3 + $0x108] sm:$0xff]
  %v738 = vld [vmem:[%s3 + $0x110] sm:$0xff]
  %v739 = vld [vmem:[%s3 + $0x118] sm:$0xff]
  %v740 = vld [vmem:[%s3 + $0x120] sm:$0xff]
  %v741 = vld [vmem:[%s3 + $0x128] sm:$0xff]
  %v742 = vld [vmem:[%s3 + $0x130] sm:$0xff]
  %v743 = vld [vmem:[%s3 + $0x138] sm:$0xff]
  %v744 = vld [vmem:[%s3 + $0x140] sm:$0xff]
  %v745 = vld [vmem:[%s3 + $0x148] sm:$0xff]
  %v746 = vld [vmem:[%s3 + $0x150] sm:$0xff]
  %v747 = vld [vmem:[%s3 + $0x158] sm:$0xff]
  %v748 = vld [vmem:[%s3 + $0x160] sm:$0xff]
  %v749 = vld [vmem:[%s3 + $0x168] sm:$0xff]
  %v750 = vld [vmem:[%s3 + $0x170] sm:$0xff]
  %v751 = vld [vmem:[%s3 + $0x178] sm:$0xff]
  %v752 = vld [vmem:[%s3 + $0x180] sm:$0xff]
  %v753 = vld [vmem:[%s3 + $0x188] sm:$0xff]
  %v754 = vld [vmem:[%s3 + $0x190] sm:$0xff]
  %v755 = vld [vmem:[%s3 + $0x198] sm:$0xff]
  %v756 = vld [vmem:[%s3 + $0x1a0] sm:$0xff]
  %v757 = vld [vmem:[%s3 + $0x1a8] sm:$0xff]
  %v758 = vld [vmem:[%s3 + $0x1b0] sm:$0xff]
  %v759 = vld [vmem:[%s3 + $0x1b8] sm:$0xff]
  %v760 = vld [vmem:[%s3 + $0x1c0] sm:$0xff]
  %v761 = vld [vmem:[%s3 + $0x1c8] sm:$0xff]
  %v762 = vld [vmem:[%s3 + $0x1d0] sm:$0xff]
  %v763 = vld [vmem:[%s3 + $0x1d8] sm:$0xff]
  %v764 = vld [vmem:[%s3 + $0x1e0] sm:$0xff]
  %v765 = vld [vmem:[%s3 + $0x1e8] sm:$0xff]
  %v766 = vld [vmem:[%s3 + $0x1f0] sm:$0xff]
  %v767 = vld [vmem:[%s3 + $0x1f8] sm:$0xff]
  %v768 = vld [vmem:[%s4] sm:$0x3]
  %v770 = vlaneseq
  %v771 = vshrl.u32 %v770, 7
  %v772 = vsub.s32 0, %v771
  %v773 = vrot.slane %v768, %v772
  %v774 = vlaneseq
  %v775 = vshrl.u32 %v774, 7
  %v776 = vsub.s32 1, %v775
  %v777 = vrot.slane %v768, %v776
  %v844 = vunpack.c.l.b16 %v704
  %v845 = vunpack.c.h.b16 %v704
  %v846 = vunpack.c.l.b16 %v705
  %v847 = vunpack.c.h.b16 %v705
  %v848 = vunpack.c.l.b16 %v706
  %v849 = vunpack.c.h.b16 %v706
  %v850 = vunpack.c.l.b16 %v707
  %v851 = vunpack.c.h.b16 %v707
  %v852 = vunpack.c.l.b16 %v708
  %v853 = vunpack.c.h.b16 %v708
  %v854 = vunpack.c.l.b16 %v709
  %v855 = vunpack.c.h.b16 %v709
  %v856 = vunpack.c.l.b16 %v710
  %v857 = vunpack.c.h.b16 %v710
  %v858 = vunpack.c.l.b16 %v711
  %v859 = vunpack.c.h.b16 %v711
  %v860 = vunpack.c.l.b16 %v712
  %v861 = vunpack.c.h.b16 %v712
  %v862 = vunpack.c.l.b16 %v713
  %v863 = vunpack.c.h.b16 %v713
  %v864 = vunpack.c.l.b16 %v714
  %v865 = vunpack.c.h.b16 %v714
  %v866 = vunpack.c.l.b16 %v715
  %v867 = vunpack.c.h.b16 %v715
  %v868 = vunpack.c.l.b16 %v716
  %v869 = vunpack.c.h.b16 %v716
  %v870 = vunpack.c.l.b16 %v717
  %v871 = vunpack.c.h.b16 %v717
  %v872 = vunpack.c.l.b16 %v718
  %v873 = vunpack.c.h.b16 %v718
  %v874 = vunpack.c.l.b16 %v719
  %v875 = vunpack.c.h.b16 %v719
  %v876 = vunpack.c.l.b16 %v720
  %v877 = vunpack.c.h.b16 %v720
  %v878 = vunpack.c.l.b16 %v721
  %v879 = vunpack.c.h.b16 %v721
  %v880 = vunpack.c.l.b16 %v722
  %v881 = vunpack.c.h.b16 %v722
  %v882 = vunpack.c.l.b16 %v723
  %v883 = vunpack.c.h.b16 %v723
  %v884 = vunpack.c.l.b16 %v724
  %v885 = vunpack.c.h.b16 %v724
  %v886 = vunpack.c.l.b16 %v725
  %v887 = vunpack.c.h.b16 %v725
  %v888 = vunpack.c.l.b16 %v726
  %v889 = vunpack.c.h.b16 %v726
  %v890 = vunpack.c.l.b16 %v727
  %v891 = vunpack.c.h.b16 %v727
  %v892 = vunpack.c.l.b16 %v728
  %v893 = vunpack.c.h.b16 %v728
  %v894 = vunpack.c.l.b16 %v729
  %v895 = vunpack.c.h.b16 %v729
  %v896 = vunpack.c.l.b16 %v730
  %v897 = vunpack.c.h.b16 %v730
  %v898 = vunpack.c.l.b16 %v731
  %v899 = vunpack.c.h.b16 %v731
  %v900 = vunpack.c.l.b16 %v732
  %v901 = vunpack.c.h.b16 %v732
  %v902 = vunpack.c.l.b16 %v733
  %v903 = vunpack.c.h.b16 %v733
  %v904 = vunpack.c.l.b16 %v734
  %v905 = vunpack.c.h.b16 %v734
  %v906 = vunpack.c.l.b16 %v735
  %v907 = vunpack.c.h.b16 %v735
  %v908 = vunpack.c.l.b16 %v736
  %v909 = vunpack.c.h.b16 %v736
  %v910 = vunpack.c.l.b16 %v737
  %v911 = vunpack.c.h.b16 %v737
  %v912 = vunpack.c.l.b16 %v738
  %v913 = vunpack.c.h.b16 %v738
  %v914 = vunpack.c.l.b16 %v739
  %v915 = vunpack.c.h.b16 %v739
  %v916 = vunpack.c.l.b16 %v740
  %v917 = vunpack.c.h.b16 %v740
  %v918 = vunpack.c.l.b16 %v741
  %v919 = vunpack.c.h.b16 %v741
  %v920 = vunpack.c.l.b16 %v742
  %v921 = vunpack.c.h.b16 %v742
  %v922 = vunpack.c.l.b16 %v743
  %v923 = vunpack.c.h.b16 %v743
  %v924 = vunpack.c.l.b16 %v744
  %v925 = vunpack.c.h.b16 %v744
  %v926 = vunpack.c.l.b16 %v745
  %v927 = vunpack.c.h.b16 %v745
  %v928 = vunpack.c.l.b16 %v746
  %v929 = vunpack.c.h.b16 %v746
  %v930 = vunpack.c.l.b16 %v747
  %v931 = vunpack.c.h.b16 %v747
  %v932 = vunpack.c.l.b16 %v748
  %v933 = vunpack.c.h.b16 %v748
  %v934 = vunpack.c.l.b16 %v749
  %v935 = vunpack.c.h.b16 %v749
  %v936 = vunpack.c.l.b16 %v750
  %v937 = vunpack.c.h.b16 %v750
  %v938 = vunpack.c.l.b16 %v751
  %v939 = vunpack.c.h.b16 %v751
  %v940 = vunpack.c.l.b16 %v752
  %v941 = vunpack.c.h.b16 %v752
  %v942 = vunpack.c.l.b16 %v753
  %v943 = vunpack.c.h.b16 %v753
  %v944 = vunpack.c.l.b16 %v754
  %v945 = vunpack.c.h.b16 %v754
  %v946 = vunpack.c.l.b16 %v755
  %v947 = vunpack.c.h.b16 %v755
  %v948 = vunpack.c.l.b16 %v756
  %v949 = vunpack.c.h.b16 %v756
  %v950 = vunpack.c.l.b16 %v757
  %v951 = vunpack.c.h.b16 %v757
  %v952 = vunpack.c.l.b16 %v758
  %v953 = vunpack.c.h.b16 %v758
  %v954 = vunpack.c.l.b16 %v759
  %v955 = vunpack.c.h.b16 %v759
  %v956 = vunpack.c.l.b16 %v760
  %v957 = vunpack.c.h.b16 %v760
  %v958 = vunpack.c.l.b16 %v761
  %v959 = vunpack.c.h.b16 %v761
  %v960 = vunpack.c.l.b16 %v762
  %v961 = vunpack.c.h.b16 %v762
  %v962 = vunpack.c.l.b16 %v763
  %v963 = vunpack.c.h.b16 %v763
  %v964 = vunpack.c.l.b16 %v764
  %v965 = vunpack.c.h.b16 %v764
  %v966 = vunpack.c.l.b16 %v765
  %v967 = vunpack.c.h.b16 %v765
  %v968 = vunpack.c.l.b16 %v766
  %v969 = vunpack.c.h.b16 %v766
  %v970 = vunpack.c.l.b16 %v767
  %v971 = vunpack.c.h.b16 %v767
  %v972 = vpack.c.b16 %v846, %v844
  %v973 = vpack.c.b16 %v847, %v845
  %v974 = vpack.c.b16 %v850, %v848
  %v975 = vpack.c.b16 %v851, %v849
  %v976 = vpack.c.b16 %v854, %v852
  %v977 = vpack.c.b16 %v855, %v853
  %v978 = vpack.c.b16 %v858, %v856
  %v979 = vpack.c.b16 %v859, %v857
  %v980 = vpack.c.b16 %v862, %v860
  %v981 = vpack.c.b16 %v863, %v861
  %v982 = vpack.c.b16 %v866, %v864
  %v983 = vpack.c.b16 %v867, %v865
  %v984 = vpack.c.b16 %v870, %v868
  %v985 = vpack.c.b16 %v871, %v869
  %v986 = vpack.c.b16 %v874, %v872
  %v987 = vpack.c.b16 %v875, %v873
  %v988 = vpack.c.b16 %v878, %v876
  %v989 = vpack.c.b16 %v879, %v877
  %v990 = vpack.c.b16 %v882, %v880
  %v991 = vpack.c.b16 %v883, %v881
  %v992 = vpack.c.b16 %v886, %v884
  %v993 = vpack.c.b16 %v887, %v885
  %v994 = vpack.c.b16 %v890, %v888
  %v995 = vpack.c.b16 %v891, %v889
  %v996 = vpack.c.b16 %v894, %v892
  %v997 = vpack.c.b16 %v895, %v893
  %v998 = vpack.c.b16 %v898, %v896
  %v999 = vpack.c.b16 %v899, %v897
  %v1000 = vpack.c.b16 %v902, %v900
  %v1001 = vpack.c.b16 %v903, %v901
  %v1002 = vpack.c.b16 %v906, %v904
  %v1003 = vpack.c.b16 %v907, %v905
  %v1004 = vpack.c.b16 %v910, %v908
  %v1005 = vpack.c.b16 %v911, %v909
  %v1006 = vpack.c.b16 %v914, %v912
  %v1007 = vpack.c.b16 %v915, %v913
  %v1008 = vpack.c.b16 %v918, %v916
  %v1009 = vpack.c.b16 %v919, %v917
  %v1010 = vpack.c.b16 %v922, %v920
  %v1011 = vpack.c.b16 %v923, %v921
  %v1012 = vpack.c.b16 %v926, %v924
  %v1013 = vpack.c.b16 %v927, %v925
  %v1014 = vpack.c.b16 %v930, %v928
  %v1015 = vpack.c.b16 %v931, %v929
  %v1016 = vpack.c.b16 %v934, %v932
  %v1017 = vpack.c.b16 %v935, %v933
  %v1018 = vpack.c.b16 %v938, %v936
  %v1019 = vpack.c.b16 %v939, %v937
  %v1020 = vpack.c.b16 %v942, %v940
  %v1021 = vpack.c.b16 %v943, %v941
  %v1022 = vpack.c.b16 %v946, %v944
  %v1023 = vpack.c.b16 %v947, %v945
  %v1024 = vpack.c.b16 %v950, %v948
  %v1025 = vpack.c.b16 %v951, %v949
  %v1026 = vpack.c.b16 %v954, %v952
  %v1027 = vpack.c.b16 %v955, %v953
  %v1028 = vpack.c.b16 %v958, %v956
  %v1029 = vpack.c.b16 %v959, %v957
  %v1030 = vpack.c.b16 %v962, %v960
  %v1031 = vpack.c.b16 %v963, %v961
  %v1032 = vpack.c.b16 %v966, %v964
  %v1033 = vpack.c.b16 %v967, %v965
  %v1034 = vpack.c.b16 %v970, %v968
  %v1035 = vpack.c.b16 %v971, %v969
  %1100 = vmatprep.subr.bf16.mxu0 %v973
  %1101 = vmatpush1.bf16.msra.mxu0 %v972
  %1102 = vmatprep.subr.bf16.mxu0 %v975
  %1103 = vmatpush1.bf16.msra.mxu0 %v974
  %1104 = vmatprep.subr.bf16.mxu0 %v977
  %1105 = vmatpush1.bf16.msra.mxu0 %v976
  %1106 = vmatprep.subr.bf16.mxu0 %v979
  %1107 = vmatpush1.bf16.msra.mxu0 %v978
  %1108 = vmatprep.subr.bf16.mxu0 %v981
  %1109 = vmatpush1.bf16.msra.mxu0 %v980
  %1110 = vmatprep.subr.bf16.mxu0 %v983
  %1111 = vmatpush1.bf16.msra.mxu0 %v982
  %1112 = vmatprep.subr.bf16.mxu0 %v985
  %1113 = vmatpush1.bf16.msra.mxu0 %v984
  %1114 = vmatprep.subr.bf16.mxu0 %v987
  %1115 = vmatpush1.bf16.msra.mxu0 %v986
  %1116 = vmatprep.subr.bf16.mxu0 %v989
  %1117 = vmatpush1.bf16.msra.mxu0 %v988
  %1118 = vmatprep.subr.bf16.mxu0 %v991
  %1119 = vmatpush1.bf16.msra.mxu0 %v990
  %1120 = vmatprep.subr.bf16.mxu0 %v993
  %1121 = vmatpush1.bf16.msra.mxu0 %v992
  %1122 = vmatprep.subr.bf16.mxu0 %v995
  %1123 = vmatpush1.bf16.msra.mxu0 %v994
  %1124 = vmatprep.subr.bf16.mxu0 %v997
  %1125 = vmatpush1.bf16.msra.mxu0 %v996
  %1126 = vmatprep.subr.bf16.mxu0 %v999
  %1127 = vmatpush1.bf16.msra.mxu0 %v998
  %1128 = vmatprep.subr.bf16.mxu0 %v1001
  %1129 = vmatpush1.bf16.msra.mxu0 %v1000
  %1130 = vmatprep.subr.bf16.mxu0 %v1003
  %1131 = vmatpush1.bf16.msra.mxu0 %v1002
  %1132 = vmatprep.mubr.bf16.mxu0 %v641
  %1133 = vmatmul.mubr.bf16.gmra.mrb[0].mxu0 %v640
  %v1134 = vpop.f32.mrb[0].mxu0
  %v1135 = vadd.f32 %v773, %v1134
  %v1136 = vpop.f32.mrb[0].mxu0
  %v1137 = vadd.f32 %v777, %v1136
  %v1138 = vpop.f32.mrb[0].mxu0
  %v1139 = vadd.f32 %v773, %v1138
  %v1140 = vpop.f32.mrb[0].mxu0
  %v1141 = vadd.f32 %v777, %v1140
  %1142 = vmatprep.mubr.bf16.mxu0 %v645
  %1143 = vmatmul.mubr.bf16.gmra.mrb[0].mxu0 %v644
  %v1144 = vpop.f32.mrb[0].mxu0
  %v1145 = vadd.f32 %v773, %v1144
  %v1146 = vpop.f32.mrb[0].mxu0
  %v1147 = vadd.f32 %v777, %v1146
  %v1148 = vpop.f32.mrb[0].mxu0
  %v1149 = vadd.f32 %v773, %v1148
  %v1150 = vpop.f32.mrb[0].mxu0
  %v1151 = vadd.f32 %v777, %v1150
  %1152 = vmatprep.mubr.bf16.mxu0 %v649
  %1153 = vmatmul.mubr.bf16.gmra.mrb[0].mxu0 %v648
  %v1154 = vpop.f32.mrb[0].mxu0
  %v1155 = vadd.f32 %v773, %v1154
  %v1156 = vpop.f32.mrb[0].mxu0
  %v1157 = vadd.f32 %v777, %v1156
  %v1158 = vpop.f32.mrb[0].mxu0
  %v1159 = vadd.f32 %v773, %v1158
  %v1160 = vpop.f32.mrb[0].mxu0
  %v1161 = vadd.f32 %v777, %v1160
  %1162 = vmatprep.mubr.bf16.mxu0 %v653
  %1163 = vmatmul.mubr.bf16.gmra.mrb[0].mxu0 %v652
  %v1164 = vpop.f32.mrb[0].mxu0
  %v1165 = vadd.f32 %v773, %v1164
  %v1166 = vpop.f32.mrb[0].mxu0
  %v1167 = vadd.f32 %v777, %v1166
  %v1168 = vpop.f32.mrb[0].mxu0
  %v1169 = vadd.f32 %v773, %v1168
  %v1170 = vpop.f32.mrb[0].mxu0
  %v1171 = vadd.f32 %v777, %v1170
  %1172 = vmatprep.mubr.bf16.mxu0 %v657
  %1173 = vmatmul.mubr.bf16.gmra.mrb[0].mxu0 %v656
  %v1174 = vpop.f32.mrb[0].mxu0
  %v1175 = vadd.f32 %v773, %v1174
  %v1176 = vpop.f32.mrb[0].mxu0
  %v1177 = vadd.f32 %v777, %v1176
  %v1178 = vpop.f32.mrb[0].mxu0
  %v1179 = vadd.f32 %v773, %v1178
  %v1180 = vpop.f32.mrb[0].mxu0
  %v1181 = vadd.f32 %v777, %v1180
  %1182 = vmatprep.mubr.bf16.mxu0 %v661
  %1183 = vmatmul.mubr.bf16.gmra.mrb[0].mxu0 %v660
  %v1184 = vpop.f32.mrb[0].mxu0
  %v1185 = vadd.f32 %v773, %v1184
  %v1186 = vpop.f32.mrb[0].mxu0
  %v1187 = vadd.f32 %v777, %v1186
  %v1188 = vpop.f32.mrb[0].mxu0
  %v1189 = vadd.f32 %v773, %v1188
  %v1190 = vpop.f32.mrb[0].mxu0
  %v1191 = vadd.f32 %v777, %v1190
  %1192 = vmatprep.mubr.bf16.mxu0 %v665
  %1193 = vmatmul.mubr.bf16.gmra.mrb[0].mxu0 %v664
  %v1194 = vpop.f32.mrb[0].mxu0
  %v1195 = vadd.f32 %v773, %v1194
  %v1196 = vpop.f32.mrb[0].mxu0
  %v1197 = vadd.f32 %v777, %v1196
  %v1198 = vpop.f32.mrb[0].mxu0
  %v1199 = vadd.f32 %v773, %v1198
  %v1200 = vpop.f32.mrb[0].mxu0
  %v1201 = vadd.f32 %v777, %v1200
  %1202 = vmatprep.mubr.bf16.mxu0 %v669
  %1203 = vmatmul.mubr.bf16.gmra.mrb[0].mxu0 %v668
  %v1204 = vpop.f32.mrb[0].mxu0
  %v1205 = vadd.f32 %v773, %v1204
  %v1206 = vpop.f32.mrb[0].mxu0
  %v1207 = vadd.f32 %v777, %v1206
  %v1208 = vpop.f32.mrb[0].mxu0
  %v1209 = vadd.f32 %v773, %v1208
  %v1210 = vpop.f32.mrb[0].mxu0
  %v1211 = vadd.f32 %v777, %v1210
  %1212 = vmatprep.mubr.bf16.mxu0 %v673
  %1213 = vmatmul.mubr.bf16.gmra.mrb[0].mxu0 %v672
  %v1214 = vpop.f32.mrb[0].mxu0
  %v1215 = vadd.f32 %v773, %v1214
  %v1216 = vpop.f32.mrb[0].mxu0
  %v1217 = vadd.f32 %v777, %v1216
  %v1218 = vpop.f32.mrb[0].mxu0
  %v1219 = vadd.f32 %v773, %v1218
  %v1220 = vpop.f32.mrb[0].mxu0
  %v1221 = vadd.f32 %v777, %v1220
  %1222 = vmatprep.mubr.bf16.mxu0 %v677
  %1223 = vmatmul.mubr.bf16.gmra.mrb[0].mxu0 %v676
  %v1224 = vpop.f32.mrb[0].mxu0
  %v1225 = vadd.f32 %v773, %v1224
  %v1226 = vpop.f32.mrb[0].mxu0
  %v1227 = vadd.f32 %v777, %v1226
  %v1228 = vpop.f32.mrb[0].mxu0
  %v1229 = vadd.f32 %v773, %v1228
  %v1230 = vpop.f32.mrb[0].mxu0
  %v1231 = vadd.f32 %v777, %v1230
  %1232 = vmatprep.mubr.bf16.mxu0 %v681
  %1233 = vmatmul.mubr.bf16.gmra.mrb[0].mxu0 %v680
  %v1234 = vpop.f32.mrb[0].mxu0
  %v1235 = vadd.f32 %v773, %v1234
  %v1236 = vpop.f32.mrb[0].mxu0
  %v1237 = vadd.f32 %v777, %v1236
  %v1238 = vpop.f32.mrb[0].mxu0
  %v1239 = vadd.f32 %v773, %v1238
  %v1240 = vpop.f32.mrb[0].mxu0
  %v1241 = vadd.f32 %v777, %v1240
  %1242 = vmatprep.mubr.bf16.mxu0 %v685
  %1243 = vmatmul.mubr.bf16.gmra.mrb[0].mxu0 %v684
  %v1244 = vpop.f32.mrb[0].mxu0
  %v1245 = vadd.f32 %v773, %v1244
  %v1246 = vpop.f32.mrb[0].mxu0
  %v1247 = vadd.f32 %v777, %v1246
  %v1248 = vpop.f32.mrb[0].mxu0
  %v1249 = vadd.f32 %v773, %v1248
  %v1250 = vpop.f32.mrb[0].mxu0
  %v1251 = vadd.f32 %v777, %v1250
  %1252 = vmatprep.mubr.bf16.mxu0 %v689
  %1253 = vmatmul.mubr.bf16.gmra.mrb[0].mxu0 %v688
  %v1254 = vpop.f32.mrb[0].mxu0
  %v1255 = vadd.f32 %v773, %v1254
  %v1256 = vpop.f32.mrb[0].mxu0
  %v1257 = vadd.f32 %v777, %v1256
  %v1258 = vpop.f32.mrb[0].mxu0
  %v1259 = vadd.f32 %v773, %v1258
  %v1260 = vpop.f32.mrb[0].mxu0
  %v1261 = vadd.f32 %v777, %v1260
  %1262 = vmatprep.mubr.bf16.mxu0 %v693
  %1263 = vmatmul.mubr.bf16.gmra.mrb[0].mxu0 %v692
  %v1264 = vpop.f32.mrb[0].mxu0
  %v1265 = vadd.f32 %v773, %v1264
  %v1266 = vpop.f32.mrb[0].mxu0
  %v1267 = vadd.f32 %v777, %v1266
  %v1268 = vpop.f32.mrb[0].mxu0
  %v1269 = vadd.f32 %v773, %v1268
  %v1270 = vpop.f32.mrb[0].mxu0
  %v1271 = vadd.f32 %v777, %v1270
  %1272 = vmatprep.mubr.bf16.mxu0 %v697
  %1273 = vmatmul.mubr.bf16.gmra.mrb[0].mxu0 %v696
  %v1274 = vpop.f32.mrb[0].mxu0
  %v1275 = vadd.f32 %v773, %v1274
  %v1276 = vpop.f32.mrb[0].mxu0
  %v1277 = vadd.f32 %v777, %v1276
  %v1278 = vpop.f32.mrb[0].mxu0
  %v1279 = vadd.f32 %v773, %v1278
  %v1280 = vpop.f32.mrb[0].mxu0
  %v1281 = vadd.f32 %v777, %v1280
  %1282 = vmatprep.mubr.bf16.mxu0 %v701
  %1283 = vmatmul.mubr.bf16.gmra.mrb[0].mxu0 %v700
  %v1284 = vpop.f32.mrb[0].mxu0
  %v1285 = vadd.f32 %v773, %v1284
  %v1286 = vpop.f32.mrb[0].mxu0
  %v1287 = vadd.f32 %v777, %v1286
  %v1288 = vpop.f32.mrb[0].mxu0
  %v1289 = vadd.f32 %v773, %v1288
  %v1290 = vpop.f32.mrb[0].mxu0
  %v1291 = vadd.f32 %v777, %v1290
  %1292 = vdwg.mxu0
  %1293 = vmatprep.subr.bf16.mxu0 %v1005
  %1294 = vmatpush1.bf16.msra.mxu0 %v1004
  %1295 = vmatprep.subr.bf16.mxu0 %v1007
  %1296 = vmatpush1.bf16.msra.mxu0 %v1006
  %1297 = vmatprep.subr.bf16.mxu0 %v1009
  %1298 = vmatpush1.bf16.msra.mxu0 %v1008
  %1299 = vmatprep.subr.bf16.mxu0 %v1011
  %1300 = vmatpush1.bf16.msra.mxu0 %v1010
  %1301 = vmatprep.subr.bf16.mxu0 %v1013
  %1302 = vmatpush1.bf16.msra.mxu0 %v1012
  %1303 = vmatprep.subr.bf16.mxu0 %v1015
  %1304 = vmatpush1.bf16.msra.mxu0 %v1014
  %1305 = vmatprep.subr.bf16.mxu0 %v1017
  %1306 = vmatpush1.bf16.msra.mxu0 %v1016
  %1307 = vmatprep.subr.bf16.mxu0 %v1019
  %1308 = vmatpush1.bf16.msra.mxu0 %v1018
  %1309 = vmatprep.subr.bf16.mxu0 %v1021
  %1310 = vmatpush1.bf16.msra.mxu0 %v1020
  %1311 = vmatprep.subr.bf16.mxu0 %v1023
  %1312 = vmatpush1.bf16.msra.mxu0 %v1022
  %1313 = vmatprep.subr.bf16.mxu0 %v1025
  %1314 = vmatpush1.bf16.msra.mxu0 %v1024
  %1315 = vmatprep.subr.bf16.mxu0 %v1027
  %1316 = vmatpush1.bf16.msra.mxu0 %v1026
  %1317 = vmatprep.subr.bf16.mxu0 %v1029
  %1318 = vmatpush1.bf16.msra.mxu0 %v1028
  %1319 = vmatprep.subr.bf16.mxu0 %v1031
  %1320 = vmatpush1.bf16.msra.mxu0 %v1030
  %1321 = vmatprep.subr.bf16.mxu0 %v1033
  %1322 = vmatpush1.bf16.msra.mxu0 %v1032
  %1323 = vmatprep.subr.bf16.mxu0 %v1035
  %1324 = vmatpush1.bf16.msra.mxu0 %v1034
  %1325 = vmatprep.mubr.bf16.mxu0 %v643
  %1326 = vmatmul.mubr.bf16.gmra.mrb[0].mxu0 %v642
  %v1327 = vpop.f32.mrb[0].mxu0
  %v1328 = vadd.f32 %v1135, %v1327
  %v1329 = vpop.f32.mrb[0].mxu0
  %v1330 = vadd.f32 %v1137, %v1329
  %v1331 = vpop.f32.mrb[0].mxu0
  %v1332 = vadd.f32 %v1139, %v1331
  %v1333 = vpop.f32.mrb[0].mxu0
  %v1334 = vadd.f32 %v1141, %v1333
  %1335 = vmatprep.mubr.bf16.mxu0 %v647
  %1336 = vmatmul.mubr.bf16.gmra.mrb[0].mxu0 %v646
  %v1337 = vpop.f32.mrb[0].mxu0
  %v1338 = vadd.f32 %v1145, %v1337
  %v1339 = vpop.f32.mrb[0].mxu0
  %v1340 = vadd.f32 %v1147, %v1339
  %v1341 = vpop.f32.mrb[0].mxu0
  %v1342 = vadd.f32 %v1149, %v1341
  %v1343 = vpop.f32.mrb[0].mxu0
  %v1344 = vadd.f32 %v1151, %v1343
  %1345 = vmatprep.mubr.bf16.mxu0 %v651
  %1346 = vmatmul.mubr.bf16.gmra.mrb[0].mxu0 %v650
  %v1347 = vpop.f32.mrb[0].mxu0
  %v1348 = vadd.f32 %v1155, %v1347
  %v1349 = vpop.f32.mrb[0].mxu0
  %v1350 = vadd.f32 %v1157, %v1349
  %v1351 = vpop.f32.mrb[0].mxu0
  %v1352 = vadd.f32 %v1159, %v1351
  %v1353 = vpop.f32.mrb[0].mxu0
  %v1354 = vadd.f32 %v1161, %v1353
  %1355 = vmatprep.mubr.bf16.mxu0 %v655
  %1356 = vmatmul.mubr.bf16.gmra.mrb[0].mxu0 %v654
  %v1357 = vpop.f32.mrb[0].mxu0
  %v1358 = vadd.f32 %v1165, %v1357
  %v1359 = vpop.f32.mrb[0].mxu0
  %v1360 = vadd.f32 %v1167, %v1359
  %v1361 = vpop.f32.mrb[0].mxu0
  %v1362 = vadd.f32 %v1169, %v1361
  %v1363 = vpop.f32.mrb[0].mxu0
  %v1364 = vadd.f32 %v1171, %v1363
  %1365 = vmatprep.mubr.bf16.mxu0 %v659
  %1366 = vmatmul.mubr.bf16.gmra.mrb[0].mxu0 %v658
  %v1367 = vpop.f32.mrb[0].mxu0
  %v1368 = vadd.f32 %v1175, %v1367
  %v1369 = vpop.f32.mrb[0].mxu0
  %v1370 = vadd.f32 %v1177, %v1369
  %v1371 = vpop.f32.mrb[0].mxu0
  %v1372 = vadd.f32 %v1179, %v1371
  %v1373 = vpop.f32.mrb[0].mxu0
  %v1374 = vadd.f32 %v1181, %v1373
  %1375 = vmatprep.mubr.bf16.mxu0 %v663
  %1376 = vmatmul.mubr.bf16.gmra.mrb[0].mxu0 %v662
  %v1377 = vpop.f32.mrb[0].mxu0
  %v1378 = vadd.f32 %v1185, %v1377
  %v1379 = vpop.f32.mrb[0].mxu0
  %v1380 = vadd.f32 %v1187, %v1379
  %v1381 = vpop.f32.mrb[0].mxu0
  %v1382 = vadd.f32 %v1189, %v1381
  %v1383 = vpop.f32.mrb[0].mxu0
  %v1384 = vadd.f32 %v1191, %v1383
  %1385 = vmatprep.mubr.bf16.mxu0 %v667
  %1386 = vmatmul.mubr.bf16.gmra.mrb[0].mxu0 %v666
  %v1387 = vpop.f32.mrb[0].mxu0
  %v1388 = vadd.f32 %v1195, %v1387
  %v1389 = vpop.f32.mrb[0].mxu0
  %v1390 = vadd.f32 %v1197, %v1389
  %v1391 = vpop.f32.mrb[0].mxu0
  %v1392 = vadd.f32 %v1199, %v1391
  %v1393 = vpop.f32.mrb[0].mxu0
  %v1394 = vadd.f32 %v1201, %v1393
  %1395 = vmatprep.mubr.bf16.mxu0 %v671
  %1396 = vmatmul.mubr.bf16.gmra.mrb[0].mxu0 %v670
  %v1397 = vpop.f32.mrb[0].mxu0
  %v1398 = vadd.f32 %v1205, %v1397
  %v1399 = vpop.f32.mrb[0].mxu0
  %v1400 = vadd.f32 %v1207, %v1399
  %v1401 = vpop.f32.mrb[0].mxu0
  %v1402 = vadd.f32 %v1209, %v1401
  %v1403 = vpop.f32.mrb[0].mxu0
  %v1404 = vadd.f32 %v1211, %v1403
  %1405 = vmatprep.mubr.bf16.mxu0 %v675
  %1406 = vmatmul.mubr.bf16.gmra.mrb[0].mxu0 %v674
  %v1407 = vpop.f32.mrb[0].mxu0
  %v1408 = vadd.f32 %v1215, %v1407
  %v1409 = vpop.f32.mrb[0].mxu0
  %v1410 = vadd.f32 %v1217, %v1409
  %v1411 = vpop.f32.mrb[0].mxu0
  %v1412 = vadd.f32 %v1219, %v1411
  %v1413 = vpop.f32.mrb[0].mxu0
  %v1414 = vadd.f32 %v1221, %v1413
  %1415 = vmatprep.mubr.bf16.mxu0 %v679
  %1416 = vmatmul.mubr.bf16.gmra.mrb[0].mxu0 %v678
  %v1417 = vpop.f32.mrb[0].mxu0
  %v1418 = vadd.f32 %v1225, %v1417
  %v1419 = vpop.f32.mrb[0].mxu0
  %v1420 = vadd.f32 %v1227, %v1419
  %v1421 = vpop.f32.mrb[0].mxu0
  %v1422 = vadd.f32 %v1229, %v1421
  %v1423 = vpop.f32.mrb[0].mxu0
  %v1424 = vadd.f32 %v1231, %v1423
  %1425 = vmatprep.mubr.bf16.mxu0 %v683
  %1426 = vmatmul.mubr.bf16.gmra.mrb[0].mxu0 %v682
  %v1427 = vpop.f32.mrb[0].mxu0
  %v1428 = vadd.f32 %v1235, %v1427
  %v1429 = vpop.f32.mrb[0].mxu0
  %v1430 = vadd.f32 %v1237, %v1429
  %v1431 = vpop.f32.mrb[0].mxu0
  %v1432 = vadd.f32 %v1239, %v1431
  %v1433 = vpop.f32.mrb[0].mxu0
  %v1434 = vadd.f32 %v1241, %v1433
  %1435 = vmatprep.mubr.bf16.mxu0 %v687
  %1436 = vmatmul.mubr.bf16.gmra.mrb[0].mxu0 %v686
  %v1437 = vpop.f32.mrb[0].mxu0
  %v1438 = vadd.f32 %v1245, %v1437
  %v1439 = vpop.f32.mrb[0].mxu0
  %v1440 = vadd.f32 %v1247, %v1439
  %v1441 = vpop.f32.mrb[0].mxu0
  %v1442 = vadd.f32 %v1249, %v1441
  %v1443 = vpop.f32.mrb[0].mxu0
  %v1444 = vadd.f32 %v1251, %v1443
  %1445 = vmatprep.mubr.bf16.mxu0 %v691
  %1446 = vmatmul.mubr.bf16.gmra.mrb[0].mxu0 %v690
  %v1447 = vpop.f32.mrb[0].mxu0
  %v1448 = vadd.f32 %v1255, %v1447
  %v1449 = vpop.f32.mrb[0].mxu0
  %v1450 = vadd.f32 %v1257, %v1449
  %v1451 = vpop.f32.mrb[0].mxu0
  %v1452 = vadd.f32 %v1259, %v1451
  %v1453 = vpop.f32.mrb[0].mxu0
  %v1454 = vadd.f32 %v1261, %v1453
  %1455 = vmatprep.mubr.bf16.mxu0 %v695
  %1456 = vmatmul.mubr.bf16.gmra.mrb[0].mxu0 %v694
  %v1457 = vpop.f32.mrb[0].mxu0
  %v1458 = vadd.f32 %v1265, %v1457
  %v1459 = vpop.f32.mrb[0].mxu0
  %v1460 = vadd.f32 %v1267, %v1459
  %v1461 = vpop.f32.mrb[0].mxu0
  %v1462 = vadd.f32 %v1269, %v1461
  %v1463 = vpop.f32.mrb[0].mxu0
  %v1464 = vadd.f32 %v1271, %v1463
  %1465 = vmatprep.mubr.bf16.mxu0 %v699
  %1466 = vmatmul.mubr.bf16.gmra.mrb[0].mxu0 %v698
  %v1467 = vpop.f32.mrb[0].mxu0
  %v1468 = vadd.f32 %v1275, %v1467
  %v1469 = vpop.f32.mrb[0].mxu0
  %v1470 = vadd.f32 %v1277, %v1469
  %v1471 = vpop.f32.mrb[0].mxu0
  %v1472 = vadd.f32 %v1279, %v1471
  %v1473 = vpop.f32.mrb[0].mxu0
  %v1474 = vadd.f32 %v1281, %v1473
  %1475 = vmatprep.mubr.bf16.mxu0 %v703
  %1476 = vmatmul.mubr.bf16.gmra.mrb[0].mxu0 %v702
  %v1477 = vpop.f32.mrb[0].mxu0
  %v1478 = vadd.f32 %v1285, %v1477
  %v1479 = vpop.f32.mrb[0].mxu0
  %v1480 = vadd.f32 %v1287, %v1479
  %v1481 = vpop.f32.mrb[0].mxu0
  %v1482 = vadd.f32 %v1289, %v1481
  %v1483 = vpop.f32.mrb[0].mxu0
  %v1484 = vadd.f32 %v1291, %v1483
  %1485 = vdwg.mxu0
  %v1486 = vmax.f32 %v1328, %v1332
  %v1487 = vmax.f32 %v1486, %v1338
  %v1488 = vmax.f32 %v1487, %v1342
  %v1489 = vrot.slane %v1488, 4
  %v1490 = vmax.f32 %v1488, %v1489
  %v1491 = vrot.slane %v1490, 2
  %v1492 = vmax.f32 %v1490, %v1491
  %v1493 = vrot.slane %v1492, 1
  %v1494 = vmax.f32 %v1492, %v1493
  %v1495 = vmax.f32 %v1330, %v1334
  %v1496 = vmax.f32 %v1495, %v1340
  %v1497 = vmax.f32 %v1496, %v1344
  %v1498 = vrot.slane %v1497, 4
  %v1499 = vmax.f32 %v1497, %v1498
  %v1500 = vrot.slane %v1499, 2
  %v1501 = vmax.f32 %v1499, %v1500
  %v1502 = vrot.slane %v1501, 1
  %v1503 = vmax.f32 %v1501, %v1502
  %v1504 = vmax.f32 %v1348, %v1352
  %v1505 = vmax.f32 %v1504, %v1358
  %v1506 = vmax.f32 %v1505, %v1362
  %v1507 = vrot.slane %v1506, 4
  %v1508 = vmax.f32 %v1506, %v1507
  %v1509 = vrot.slane %v1508, 2
  %v1510 = vmax.f32 %v1508, %v1509
  %v1511 = vrot.slane %v1510, 1
  %v1512 = vmax.f32 %v1510, %v1511
  %v1513 = vmax.f32 %v1350, %v1354
  %v1514 = vmax.f32 %v1513, %v1360
  %v1515 = vmax.f32 %v1514, %v1364
  %v1516 = vrot.slane %v1515, 4
  %v1517 = vmax.f32 %v1515, %v1516
  %v1518 = vrot.slane %v1517, 2
  %v1519 = vmax.f32 %v1517, %v1518
  %v1520 = vrot.slane %v1519, 1
  %v1521 = vmax.f32 %v1519, %v1520
  %v1522 = vmax.f32 %v1368, %v1372
  %v1523 = vmax.f32 %v1522, %v1378
  %v1524 = vmax.f32 %v1523, %v1382
  %v1525 = vrot.slane %v1524, 4
  %v1526 = vmax.f32 %v1524, %v1525
  %v1527 = vrot.slane %v1526, 2
  %v1528 = vmax.f32 %v1526, %v1527
  %v1529 = vrot.slane %v1528, 1
  %v1530 = vmax.f32 %v1528, %v1529
  %v1531 = vmax.f32 %v1370, %v1374
  %v1532 = vmax.f32 %v1531, %v1380
  %v1533 = vmax.f32 %v1532, %v1384
  %v1534 = vrot.slane %v1533, 4
  %v1535 = vmax.f32 %v1533, %v1534
  %v1536 = vrot.slane %v1535, 2
  %v1537 = vmax.f32 %v1535, %v1536
  %v1538 = vrot.slane %v1537, 1
  %v1539 = vmax.f32 %v1537, %v1538
  %v1540 = vmax.f32 %v1388, %v1392
  %v1541 = vmax.f32 %v1540, %v1398
  %v1542 = vmax.f32 %v1541, %v1402
  %v1543 = vrot.slane %v1542, 4
  %v1544 = vmax.f32 %v1542, %v1543
  %v1545 = vrot.slane %v1544, 2
  %v1546 = vmax.f32 %v1544, %v1545
  %v1547 = vrot.slane %v1546, 1
  %v1548 = vmax.f32 %v1546, %v1547
  %v1549 = vmax.f32 %v1390, %v1394
  %v1550 = vmax.f32 %v1549, %v1400
  %v1551 = vmax.f32 %v1550, %v1404
  %v1552 = vrot.slane %v1551, 4
  %v1553 = vmax.f32 %v1551, %v1552
  %v1554 = vrot.slane %v1553, 2
  %v1555 = vmax.f32 %v1553, %v1554
  %v1556 = vrot.slane %v1555, 1
  %v1557 = vmax.f32 %v1555, %v1556
  %v1558 = vmax.f32 %v1408, %v1412
  %v1559 = vmax.f32 %v1558, %v1418
  %v1560 = vmax.f32 %v1559, %v1422
  %v1561 = vrot.slane %v1560, 4
  %v1562 = vmax.f32 %v1560, %v1561
  %v1563 = vrot.slane %v1562, 2
  %v1564 = vmax.f32 %v1562, %v1563
  %v1565 = vrot.slane %v1564, 1
  %v1566 = vmax.f32 %v1564, %v1565
  %v1567 = vmax.f32 %v1410, %v1414
  %v1568 = vmax.f32 %v1567, %v1420
  %v1569 = vmax.f32 %v1568, %v1424
  %v1570 = vrot.slane %v1569, 4
  %v1571 = vmax.f32 %v1569, %v1570
  %v1572 = vrot.slane %v1571, 2
  %v1573 = vmax.f32 %v1571, %v1572
  %v1574 = vrot.slane %v1573, 1
  %v1575 = vmax.f32 %v1573, %v1574
  %v1576 = vmax.f32 %v1428, %v1432
  %v1577 = vmax.f32 %v1576, %v1438
  %v1578 = vmax.f32 %v1577, %v1442
  %v1579 = vrot.slane %v1578, 4
  %v1580 = vmax.f32 %v1578, %v1579
  %v1581 = vrot.slane %v1580, 2
  %v1582 = vmax.f32 %v1580, %v1581
  %v1583 = vrot.slane %v1582, 1
  %v1584 = vmax.f32 %v1582, %v1583
  %v1585 = vmax.f32 %v1430, %v1434
  %v1586 = vmax.f32 %v1585, %v1440
  %v1587 = vmax.f32 %v1586, %v1444
  %v1588 = vrot.slane %v1587, 4
  %v1589 = vmax.f32 %v1587, %v1588
  %v1590 = vrot.slane %v1589, 2
  %v1591 = vmax.f32 %v1589, %v1590
  %v1592 = vrot.slane %v1591, 1
  %v1593 = vmax.f32 %v1591, %v1592
  %v1594 = vmax.f32 %v1448, %v1452
  %v1595 = vmax.f32 %v1594, %v1458
  %v1596 = vmax.f32 %v1595, %v1462
  %v1597 = vrot.slane %v1596, 4
  %v1598 = vmax.f32 %v1596, %v1597
  %v1599 = vrot.slane %v1598, 2
  %v1600 = vmax.f32 %v1598, %v1599
  %v1601 = vrot.slane %v1600, 1
  %v1602 = vmax.f32 %v1600, %v1601
  %v1603 = vmax.f32 %v1450, %v1454
  %v1604 = vmax.f32 %v1603, %v1460
  %v1605 = vmax.f32 %v1604, %v1464
  %v1606 = vrot.slane %v1605, 4
  %v1607 = vmax.f32 %v1605, %v1606
  %v1608 = vrot.slane %v1607, 2
  %v1609 = vmax.f32 %v1607, %v1608
  %v1610 = vrot.slane %v1609, 1
  %v1611 = vmax.f32 %v1609, %v1610
  %v1612 = vmax.f32 %v1468, %v1472
  %v1613 = vmax.f32 %v1612, %v1478
  %v1614 = vmax.f32 %v1613, %v1482
  %v1615 = vrot.slane %v1614, 4
  %v1616 = vmax.f32 %v1614, %v1615
  %v1617 = vrot.slane %v1616, 2
  %v1618 = vmax.f32 %v1616, %v1617
  %v1619 = vrot.slane %v1618, 1
  %v1620 = vmax.f32 %v1618, %v1619
  %v1621 = vmax.f32 %v1470, %v1474
  %v1622 = vmax.f32 %v1621, %v1480
  %v1623 = vmax.f32 %v1622, %v1484
  %v1624 = vrot.slane %v1623, 4
  %v1625 = vmax.f32 %v1623, %v1624
  %v1626 = vrot.slane %v1625, 2
  %v1627 = vmax.f32 %v1625, %v1626
  %v1628 = vrot.slane %v1627, 1
  %v1629 = vmax.f32 %v1627, %v1628
  %vm1646 = vcmask 1041409
  %v1647 = vsel %vm1646, %v1512, %v1494
  %vm1648 = vcmask 1042434
  %v1649 = vsel %vm1648, %v1530, %v1647
  %vm1650 = vcmask 1043459
  %v1651 = vsel %vm1650, %v1548, %v1649
  %vm1652 = vcmask 1044484
  %v1653 = vsel %vm1652, %v1566, %v1651
  %vm1654 = vcmask 1045509
  %v1655 = vsel %vm1654, %v1584, %v1653
  %vm1656 = vcmask 1046534
  %v1657 = vsel %vm1656, %v1602, %v1655
  %vm1658 = vcmask 1047559
  %v1659 = vsel %vm1658, %v1620, %v1657
  %v1660 = vsel %vm1646, %v1521, %v1503
  %v1661 = vsel %vm1648, %v1539, %v1660
  %v1662 = vsel %vm1650, %v1557, %v1661
  %v1663 = vsel %vm1652, %v1575, %v1662
  %v1664 = vsel %vm1654, %v1593, %v1663
  %v1665 = vsel %vm1656, %v1611, %v1664
  %v1666 = vsel %vm1658, %v1629, %v1665
  %1669 = vst [vmem:[%s5] sm:$0xff] %v1659
  %1670 = vst [vmem:[%s5 + $0x8] sm:$0xff] %v1666
  // Predicated region
  $region22: #{encoder_forward.3} parent=0 // pred_check
    _
  $region23: #{encoder_forward.3} parent=0 // pred_check_branch
    %1672 = sbr.rel (0) target = $region25
  $region24: #{encoder_forward.3} parent=0 // pred_region
    _
  $region25: #{encoder_forward.3} parent=0 // pred_fallthru
    _
  // Predicated region
  $region26: #{encoder_forward.3} parent=0 // pred_check
    _
  $region27: #{encoder_forward.3} parent=0 // pred_check_branch
    %1674 = sbr.rel (0) target = $region29
  $region28: #{encoder_forward.3} parent=0 // pred_region
    _
  $region29: #{encoder_forward.3} parent=0 // pred_fallthru
    _

// kernel: encoder_forward.2
$region0: #{encoder_forward.2}
  #allocation0 [shape = 'u32[]', space=smem, size = 0x4, offset = 0x4, fixed_abs, tag = 'smem constant byte address 0x4 - core index']
  #allocation1 [shape = 'u32[144,128]{1,0:T(1,128)}', space=vmem, size = 0x12000, scoped, tag = 'internal scratch']
  %s0 = inlined_call_operand.vmem [shape: bf16[256,6], index: 0, kind: input, shape index: {}]
  %s1 = inlined_call_operand.vmem [shape: bf16[6,128], index: 1, kind: input, shape index: {}]
  %s2 = inlined_call_operand.vmem [shape: f32[1,128], index: 2, kind: input, shape index: {}]
  %s3 = inlined_call_operand.vmem [shape: bf16[128,256], index: 3, kind: input, shape index: {}]
  %s4 = inlined_call_operand.vmem [shape: f32[1,256], index: 4, kind: input, shape index: {}]
  %s5 = inlined_call_operand.vmem [shape: bf16[256,512], index: 5, kind: input, shape index: {}]
  %s6 = inlined_call_operand.vmem [shape: bf16[256,512], index: 6, kind: input, shape index: {}]
  %s7 = inlined_call_operand.vmem [shape: f32[1,512], index: 7, kind: input, shape index: {}]
  %s8 = inlined_call_operand.vmem [shape: bf16[256,512], index: 8, kind: output, shape index: {0}]
  %s9 = inlined_call_operand.vmem [shape: f32[1,1,512], index: 9, kind: output, shape index: {1}]
  %s10 = inlined_call_operand.vmem [shape: f32[1,1,512], index: 10, kind: output, shape index: {2}]
  %11 = xla_tuple %s8, %s9, %s10
  %s12 = sld [smem:[#allocation0]]
  $region58: #{encoder_forward.2} parent=0
    _
  %s14 = ssub.s32 1, %s12
  %s15 = scalar_select 0, %s14, %s12
  // Predicated region
  $region2: #{encoder_forward.2} parent=0 // pred_check
    _
  $region3: #{encoder_forward.2} parent=0 // pred_check_branch
    %17 = sbr.rel (0) target = $region5
  $region4: #{encoder_forward.2} parent=0 // pred_region
    _
  $region5: #{encoder_forward.2} parent=0 // pred_fallthru
    _
  // Predicated region
  $region6: #{encoder_forward.2} parent=0 // pred_check
    _
  $region7: #{encoder_forward.2} parent=0 // pred_check_branch
    %19 = sbr.rel (0) target = $region9
  $region8: #{encoder_forward.2} parent=0 // pred_region
    _
  $region9: #{encoder_forward.2} parent=0 // pred_fallthru
    _
  // Predicated region
  $region10: #{encoder_forward.2} parent=0 // pred_check
    _
  $region11: #{encoder_forward.2} parent=0 // pred_check_branch
    %21 = sbr.rel (0) target = $region13
  $region12: #{encoder_forward.2} parent=0 // pred_region
    _
  $region13: #{encoder_forward.2} parent=0 // pred_fallthru
    _
  // Predicated region
  $region14: #{encoder_forward.2} parent=0 // pred_check
    _
  $region15: #{encoder_forward.2} parent=0 // pred_check_branch
    %23 = sbr.rel (0) target = $region17
  $region16: #{encoder_forward.2} parent=0 // pred_region
    _
  $region17: #{encoder_forward.2} parent=0 // pred_fallthru
    _
  // Predicated region
  $region18: #{encoder_forward.2} parent=0 // pred_check
    _
  $region19: #{encoder_forward.2} parent=0 // pred_check_branch
    %25 = sbr.rel (0) target = $region21
  $region20: #{encoder_forward.2} parent=0 // pred_region
    _
  $region21: #{encoder_forward.2} parent=0 // pred_fallthru
    _
  // Predicated region
  $region22: #{encoder_forward.2} parent=0 // pred_check
    _
  $region23: #{encoder_forward.2} parent=0 // pred_check_branch
    %27 = sbr.rel (0) target = $region25
  $region24: #{encoder_forward.2} parent=0 // pred_region
    _
  $region25: #{encoder_forward.2} parent=0 // pred_fallthru
    _
  // Predicated region
  $region26: #{encoder_forward.2} parent=0 // pred_check
    _
  $region27: #{encoder_forward.2} parent=0 // pred_check_branch
    %29 = sbr.rel (0) target = $region29
  $region28: #{encoder_forward.2} parent=0 // pred_region
    _
  $region29: #{encoder_forward.2} parent=0 // pred_fallthru
    _
  // Predicated region
  $region30: #{encoder_forward.2} parent=0 // pred_check
    _
  $region31: #{encoder_forward.2} parent=0 // pred_check_branch
    %31 = sbr.rel (0) target = $region33
  $region32: #{encoder_forward.2} parent=0 // pred_region
    _
  $region33: #{encoder_forward.2} parent=0 // pred_fallthru
    _
  %v33 = vld [vmem:[%s0] sm:$0xf]
  %v34 = vld [vmem:[%s0 + $0x4] sm:$0xf]
  %v35 = vld [vmem:[%s0 + $0x8] sm:$0xf]
  %v36 = vld [vmem:[%s0 + $0xc] sm:$0xf]
  %v37 = vld [vmem:[%s0 + $0x10] sm:$0xf]
  %v38 = vld [vmem:[%s0 + $0x14] sm:$0xf]
  %v39 = vld [vmem:[%s0 + $0x18] sm:$0xf]
  %v40 = vld [vmem:[%s0 + $0x1c] sm:$0xf]
  %v41 = vld [vmem:[%s0 + $0x20] sm:$0xf]
  %v42 = vld [vmem:[%s0 + $0x24] sm:$0xf]
  %v43 = vld [vmem:[%s0 + $0x28] sm:$0xf]
  %v44 = vld [vmem:[%s0 + $0x2c] sm:$0xf]
  %v45 = vld [vmem:[%s0 + $0x30] sm:$0xf]
  %v46 = vld [vmem:[%s0 + $0x34] sm:$0xf]
  %v47 = vld [vmem:[%s0 + $0x38] sm:$0xf]
  %v48 = vld [vmem:[%s0 + $0x3c] sm:$0xf]
  %v49 = vld [vmem:[%s0 + $0x40] sm:$0xf]
  %v50 = vld [vmem:[%s0 + $0x44] sm:$0xf]
  %v51 = vld [vmem:[%s0 + $0x48] sm:$0xf]
  %v52 = vld [vmem:[%s0 + $0x4c] sm:$0xf]
  %v53 = vld [vmem:[%s0 + $0x50] sm:$0xf]
  %v54 = vld [vmem:[%s0 + $0x54] sm:$0xf]
  %v55 = vld [vmem:[%s0 + $0x58] sm:$0xf]
  %v56 = vld [vmem:[%s0 + $0x5c] sm:$0xf]
  %v57 = vld [vmem:[%s0 + $0x60] sm:$0xf]
  %v58 = vld [vmem:[%s0 + $0x64] sm:$0xf]
  %v59 = vld [vmem:[%s0 + $0x68] sm:$0xf]
  %v60 = vld [vmem:[%s0 + $0x6c] sm:$0xf]
  %v61 = vld [vmem:[%s0 + $0x70] sm:$0xf]
  %v62 = vld [vmem:[%s0 + $0x74] sm:$0xf]
  %v63 = vld [vmem:[%s0 + $0x78] sm:$0xf]
  %v64 = vld [vmem:[%s0 + $0x7c] sm:$0xf]
  %v65 = vld [vmem:[%s1] sm:$0x7]
  %v66 = vld [vmem:[%s2] sm:$0x1]
  %v68 = vlaneseq
  %v69 = vshrl.u32 %v68, 7
  %v70 = vsub.s32 0, %v69
  %v71 = vrot.slane %v66, %v70
  %v105 = vunpack.c.l.b16 %v33
  %v106 = vunpack.c.l.b16 %v34
  %v107 = vunpack.c.l.b16 %v35
  %v108 = vunpack.c.l.b16 %v36
  %v109 = vunpack.c.l.b16 %v37
  %v110 = vunpack.c.l.b16 %v38
  %v111 = vunpack.c.l.b16 %v39
  %v112 = vunpack.c.l.b16 %v40
  %v113 = vunpack.c.l.b16 %v41
  %v114 = vunpack.c.l.b16 %v42
  %v115 = vunpack.c.l.b16 %v43
  %v116 = vunpack.c.l.b16 %v44
  %v117 = vunpack.c.l.b16 %v45
  %v118 = vunpack.c.l.b16 %v46
  %v119 = vunpack.c.l.b16 %v47
  %v120 = vunpack.c.l.b16 %v48
  %v121 = vunpack.c.l.b16 %v49
  %v122 = vunpack.c.l.b16 %v50
  %v123 = vunpack.c.l.b16 %v51
  %v124 = vunpack.c.l.b16 %v52
  %v125 = vunpack.c.l.b16 %v53
  %v126 = vunpack.c.l.b16 %v54
  %v127 = vunpack.c.l.b16 %v55
  %v128 = vunpack.c.l.b16 %v56
  %v129 = vunpack.c.l.b16 %v57
  %v130 = vunpack.c.l.b16 %v58
  %v131 = vunpack.c.l.b16 %v59
  %v132 = vunpack.c.l.b16 %v60
  %v133 = vunpack.c.l.b16 %v61
  %v134 = vunpack.c.l.b16 %v62
  %v135 = vunpack.c.l.b16 %v63
  %v136 = vunpack.c.l.b16 %v64
  %v137 = vpack.c.b16 %v106, %v105
  %v138 = vpack.c.b16 %v108, %v107
  %v139 = vpack.c.b16 %v110, %v109
  %v140 = vpack.c.b16 %v112, %v111
  %v141 = vpack.c.b16 %v114, %v113
  %v142 = vpack.c.b16 %v116, %v115
  %v143 = vpack.c.b16 %v118, %v117
  %v144 = vpack.c.b16 %v120, %v119
  %v145 = vpack.c.b16 %v122, %v121
  %v146 = vpack.c.b16 %v124, %v123
  %v147 = vpack.c.b16 %v126, %v125
  %v148 = vpack.c.b16 %v128, %v127
  %v149 = vpack.c.b16 %v130, %v129
  %v150 = vpack.c.b16 %v132, %v131
  %v151 = vpack.c.b16 %v134, %v133
  %v152 = vpack.c.b16 %v136, %v135
  %vm153 = vcmask 48128
  %v155 = vsel %vm153, %v137, 0
  %v158 = vsel %vm153, %v138, 0
  %v161 = vsel %vm153, %v139, 0
  %v164 = vsel %vm153, %v140, 0
  %v167 = vsel %vm153, %v141, 0
  %v170 = vsel %vm153, %v142, 0
  %v173 = vsel %vm153, %v143, 0
  %v176 = vsel %vm153, %v144, 0
  %v179 = vsel %vm153, %v145, 0
  %v182 = vsel %vm153, %v146, 0
  %v185 = vsel %vm153, %v147, 0
  %v188 = vsel %vm153, %v148, 0
  %v191 = vsel %vm153, %v149, 0
  %v194 = vsel %vm153, %v150, 0
  %v197 = vsel %vm153, %v151, 0
  %v200 = vsel %vm153, %v152, 0
  %vm202 = vcmask 1042432
  %v204 = vsel %vm202, %v65, 0
  %206 = vmatprep.subr.bf16.mxu0 0
  %207 = vmatpush1.bf16.msra.mxu0 %v204
  %208 = vmatprep.subr.bf16.mxu0 0
  %209 = vmatpush1.bf16.msra.mxu0 0
  %210 = vmatprep.subr.bf16.mxu0 0
  %211 = vmatpush1.bf16.msra.mxu0 0
  %212 = vmatprep.subr.bf16.mxu0 0
  %213 = vmatpush1.bf16.msra.mxu0 0
  %214 = vmatprep.subr.bf16.mxu0 0
  %215 = vmatpush1.bf16.msra.mxu0 0
  %216 = vmatprep.subr.bf16.mxu0 0
  %217 = vmatpush1.bf16.msra.mxu0 0
  %218 = vmatprep.subr.bf16.mxu0 0
  %219 = vmatpush1.bf16.msra.mxu0 0
  %220 = vmatprep.subr.bf16.mxu0 0
  %221 = vmatpush1.bf16.msra.mxu0 0
  %222 = vmatprep.subr.bf16.mxu0 0
  %223 = vmatpush1.bf16.msra.mxu0 0
  %224 = vmatprep.subr.bf16.mxu0 0
  %225 = vmatpush1.bf16.msra.mxu0 0
  %226 = vmatprep.subr.bf16.mxu0 0
  %227 = vmatpush1.bf16.msra.mxu0 0
  %228 = vmatprep.subr.bf16.mxu0 0
  %229 = vmatpush1.bf16.msra.mxu0 0
  %230 = vmatprep.subr.bf16.mxu0 0
  %231 = vmatpush1.bf16.msra.mxu0 0
  %232 = vmatprep.subr.bf16.mxu0 0
  %233 = vmatpush1.bf16.msra.mxu0 0
  %234 = vmatprep.subr.bf16.mxu0 0
  %235 = vmatpush1.bf16.msra.mxu0 0
  %236 = vmatprep.subr.bf16.mxu0 0
  %237 = vmatpush1.bf16.msra.mxu0 0
  %238 = vmatprep.mubr.bf16.mxu0 0
  %239 = vmatmul.mubr.bf16.gmra.mrb[0].mxu0 %v155
  %v240 = vpop.f32.mrb[0].mxu0
  %v241 = vadd.f32 %v71, %v240
  %v242 = vpop.f32.mrb[0].mxu0
  %v243 = vpop.f32.mrb[0].mxu0
  %v244 = vadd.f32 %v71, %v243
  %v245 = vpop.f32.mrb[0].mxu0
  %246 = vmatprep.mubr.bf16.mxu0 0
  %247 = vmatmul.mubr.bf16.gmra.mrb[0].mxu0 %v158
  %v248 = vpop.f32.mrb[0].mxu0
  %v249 = vadd.f32 %v71, %v248
  %v250 = vpop.f32.mrb[0].mxu0
  %v251 = vpop.f32.mrb[0].mxu0
  %v252 = vadd.f32 %v71, %v251
  %v253 = vpop.f32.mrb[0].mxu0
  %254 = vmatprep.mubr.bf16.mxu0 0
  %255 = vmatmul.mubr.bf16.gmra.mrb[0].mxu0 %v161
  %v256 = vpop.f32.mrb[0].mxu0
  %v257 = vadd.f32 %v71, %v256
  %v258 = vpop.f32.mrb[0].mxu0
  %v259 = vpop.f32.mrb[0].mxu0
  %v260 = vadd.f32 %v71, %v259
  %v261 = vpop.f32.mrb[0].mxu0
  %262 = vmatprep.mubr.bf16.mxu0 0
  %263 = vmatmul.mubr.bf16.gmra.mrb[0].mxu0 %v164
  %v264 = vpop.f32.mrb[0].mxu0
  %v265 = vadd.f32 %v71, %v264
  %v266 = vpop.f32.mrb[0].mxu0
  %v267 = vpop.f32.mrb[0].mxu0
  %v268 = vadd.f32 %v71, %v267
  %v269 = vpop.f32.mrb[0].mxu0
  %270 = vmatprep.mubr.bf16.mxu0 0
  %271 = vmatmul.mubr.bf16.gmra.mrb[0].mxu0 %v167
  %v272 = vpop.f32.mrb[0].mxu0
  %v273 = vadd.f32 %v71, %v272
  %v274 = vpop.f32.mrb[0].mxu0
  %v275 = vpop.f32.mrb[0].mxu0
  %v276 = vadd.f32 %v71, %v275
  %v277 = vpop.f32.mrb[0].mxu0
  %278 = vmatprep.mubr.bf16.mxu0 0
  %279 = vmatmul.mubr.bf16.gmra.mrb[0].mxu0 %v170
  %v280 = vpop.f32.mrb[0].mxu0
  %v281 = vadd.f32 %v71, %v280
  %v282 = vpop.f32.mrb[0].mxu0
  %v283 = vpop.f32.mrb[0].mxu0
  %v284 = vadd.f32 %v71, %v283
  %v285 = vpop.f32.mrb[0].mxu0
  %286 = vmatprep.mubr.bf16.mxu0 0
  %287 = vmatmul.mubr.bf16.gmra.mrb[0].mxu0 %v173
  %v288 = vpop.f32.mrb[0].mxu0
  %v289 = vadd.f32 %v71, %v288
  %v290 = vpop.f32.mrb[0].mxu0
  %v291 = vpop.f32.mrb[0].mxu0
  %v292 = vadd.f32 %v71, %v291
  %v293 = vpop.f32.mrb[0].mxu0
  %294 = vmatprep.mubr.bf16.mxu0 0
  %295 = vmatmul.mubr.bf16.gmra.mrb[0].mxu0 %v176
  %v296 = vpop.f32.mrb[0].mxu0
  %v297 = vadd.f32 %v71, %v296
  %v298 = vpop.f32.mrb[0].mxu0
  %v299 = vpop.f32.mrb[0].mxu0
  %v300 = vadd.f32 %v71, %v299
  %v301 = vpop.f32.mrb[0].mxu0
  %302 = vmatprep.mubr.bf16.mxu0 0
  %303 = vmatmul.mubr.bf16.gmra.mrb[0].mxu0 %v179
  %v304 = vpop.f32.mrb[0].mxu0
  %v305 = vadd.f32 %v71, %v304
  %v306 = vpop.f32.mrb[0].mxu0
  %v307 = vpop.f32.mrb[0].mxu0
  %v308 = vadd.f32 %v71, %v307
  %v309 = vpop.f32.mrb[0].mxu0
  %310 = vmatprep.mubr.bf16.mxu0 0
  %311 = vmatmul.mubr.bf16.gmra.mrb[0].mxu0 %v182
  %v312 = vpop.f32.mrb[0].mxu0
  %v313 = vadd.f32 %v71, %v312
  %v314 = vpop.f32.mrb[0].mxu0
  %v315 = vpop.f32.mrb[0].mxu0
  %v316 = vadd.f32 %v71, %v315
  %v317 = vpop.f32.mrb[0].mxu0
  %318 = vmatprep.mubr.bf16.mxu0 0
  %319 = vmatmul.mubr.bf16.gmra.mrb[0].mxu0 %v185
  %v320 = vpop.f32.mrb[0].mxu0
  %v321 = vadd.f32 %v71, %v320
  %v322 = vpop.f32.mrb[0].mxu0
  %v323 = vpop.f32.mrb[0].mxu0
  %v324 = vadd.f32 %v71, %v323
  %v325 = vpop.f32.mrb[0].mxu0
  %326 = vmatprep.mubr.bf16.mxu0 0
  %327 = vmatmul.mubr.bf16.gmra.mrb[0].mxu0 %v188
  %v328 = vpop.f32.mrb[0].mxu0
  %v329 = vadd.f32 %v71, %v328
  %v330 = vpop.f32.mrb[0].mxu0
  %v331 = vpop.f32.mrb[0].mxu0
  %v332 = vadd.f32 %v71, %v331
  %v333 = vpop.f32.mrb[0].mxu0
  %334 = vmatprep.mubr.bf16.mxu0 0
  %335 = vmatmul.mubr.bf16.gmra.mrb[0].mxu0 %v191
  %v336 = vpop.f32.mrb[0].mxu0
  %v337 = vadd.f32 %v71, %v336
  %v338 = vpop.f32.mrb[0].mxu0
  %v339 = vpop.f32.mrb[0].mxu0
  %v340 = vadd.f32 %v71, %v339
  %v341 = vpop.f32.mrb[0].mxu0
  %342 = vmatprep.mubr.bf16.mxu0 0
  %343 = vmatmul.mubr.bf16.gmra.mrb[0].mxu0 %v194
  %v344 = vpop.f32.mrb[0].mxu0
  %v345 = vadd.f32 %v71, %v344
  %v346 = vpop.f32.mrb[0].mxu0
  %v347 = vpop.f32.mrb[0].mxu0
  %v348 = vadd.f32 %v71, %v347
  %v349 = vpop.f32.mrb[0].mxu0
  %350 = vmatprep.mubr.bf16.mxu0 0
  %351 = vmatmul.mubr.bf16.gmra.mrb[0].mxu0 %v197
  %v352 = vpop.f32.mrb[0].mxu0
  %v353 = vadd.f32 %v71, %v352
  %v354 = vpop.f32.mrb[0].mxu0
  %v355 = vpop.f32.mrb[0].mxu0
  %v356 = vadd.f32 %v71, %v355
  %v357 = vpop.f32.mrb[0].mxu0
  %358 = vmatprep.mubr.bf16.mxu0 0
  %359 = vmatmul.mubr.bf16.gmra.mrb[0].mxu0 %v200
  %v360 = vpop.f32.mrb[0].mxu0
  %v361 = vadd.f32 %v71, %v360
  %v362 = vpop.f32.mrb[0].mxu0
  %v363 = vpop.f32.mrb[0].mxu0
  %v364 = vadd.f32 %v71, %v363
  %v365 = vpop.f32.mrb[0].mxu0
  %366 = vdwg.mxu0
  %v367 = vmax.f32 %v241, 0.0
  %v368 = vmax.f32 %v244, 0.0
  %v369 = vmax.f32 %v249, 0.0
  %v370 = vmax.f32 %v252, 0.0
  %v371 = vmax.f32 %v257, 0.0
  %v372 = vmax.f32 %v260, 0.0
  %v373 = vmax.f32 %v265, 0.0
  %v374 = vmax.f32 %v268, 0.0
  %v375 = vmax.f32 %v273, 0.0
  %v376 = vmax.f32 %v276, 0.0
  %v377 = vmax.f32 %v281, 0.0
  %v378 = vmax.f32 %v284, 0.0
  %v379 = vmax.f32 %v289, 0.0
  %v380 = vmax.f32 %v292, 0.0
  %v381 = vmax.f32 %v297, 0.0
  %v382 = vmax.f32 %v300, 0.0
  %v383 = vmax.f32 %v305, 0.0
  %v384 = vmax.f32 %v308, 0.0
  %v385 = vmax.f32 %v313, 0.0
  %v386 = vmax.f32 %v316, 0.0
  %v387 = vmax.f32 %v321, 0.0
  %v388 = vmax.f32 %v324, 0.0
  %v389 = vmax.f32 %v329, 0.0
  %v390 = vmax.f32 %v332, 0.0
  %v391 = vmax.f32 %v337, 0.0
  %v392 = vmax.f32 %v340, 0.0
  %v393 = vmax.f32 %v345, 0.0
  %v394 = vmax.f32 %v348, 0.0
  %v395 = vmax.f32 %v353, 0.0
  %v396 = vmax.f32 %v356, 0.0
  %v397 = vmax.f32 %v361, 0.0
  %v398 = vmax.f32 %v364, 0.0
  %v399 = vpack.c.bf16 %v368, %v367
  %v400 = vpack.c.bf16 %v370, %v369
  %v401 = vpack.c.bf16 %v372, %v371
  %v402 = vpack.c.bf16 %v374, %v373
  %v403 = vpack.c.bf16 %v376, %v375
  %v404 = vpack.c.bf16 %v378, %v377
  %v405 = vpack.c.bf16 %v380, %v379
  %v406 = vpack.c.bf16 %v382, %v381
  %v407 = vpack.c.bf16 %v384, %v383
  %v408 = vpack.c.bf16 %v386, %v385
  %v409 = vpack.c.bf16 %v388, %v387
  %v410 = vpack.c.bf16 %v390, %v389
  %v411 = vpack.c.bf16 %v392, %v391
  %v412 = vpack.c.bf16 %v394, %v393
  %v413 = vpack.c.bf16 %v396, %v395
  %v414 = vpack.c.bf16 %v398, %v397
  %v415 = vld [vmem:[%s3] sm:$0xff]
  %v416 = vld [vmem:[%s3 + $0x8] sm:$0xff]
  %v417 = vld [vmem:[%s3 + $0x10] sm:$0xff]
  %v418 = vld [vmem:[%s3 + $0x18] sm:$0xff]
  %v419 = vld [vmem:[%s3 + $0x20] sm:$0xff]
  %v420 = vld [vmem:[%s3 + $0x28] sm:$0xff]
  %v421 = vld [vmem:[%s3 + $0x30] sm:$0xff]
  %v422 = vld [vmem:[%s3 + $0x38] sm:$0xff]
  %v423 = vld [vmem:[%s3 + $0x40] sm:$0xff]
  %v424 = vld [vmem:[%s3 + $0x48] sm:$0xff]
  %v425 = vld [vmem:[%s3 + $0x50] sm:$0xff]
  %v426 = vld [vmem:[%s3 + $0x58] sm:$0xff]
  %v427 = vld [vmem:[%s3 + $0x60] sm:$0xff]
  %v428 = vld [vmem:[%s3 + $0x68] sm:$0xff]
  %v429 = vld [vmem:[%s3 + $0x70] sm:$0xff]
  %v430 = vld [vmem:[%s3 + $0x78] sm:$0xff]
  %v431 = vld [vmem:[%s4] sm:$0x3]
  %v433 = vlaneseq
  %v434 = vshrl.u32 %v433, 7
  %v435 = vsub.s32 0, %v434
  %v436 = vrot.slane %v431, %v435
  %v437 = vlaneseq
  %v438 = vshrl.u32 %v437, 7
  %v439 = vsub.s32 1, %v438
  %v440 = vrot.slane %v431, %v439
  %v459 = vunpack.c.l.b16 %v415
  %v460 = vunpack.c.h.b16 %v415
  %v461 = vunpack.c.l.b16 %v416
  %v462 = vunpack.c.h.b16 %v416
  %v463 = vunpack.c.l.b16 %v417
  %v464 = vunpack.c.h.b16 %v417
  %v465 = vunpack.c.l.b16 %v418
  %v466 = vunpack.c.h.b16 %v418
  %v467 = vunpack.c.l.b16 %v419
  %v468 = vunpack.c.h.b16 %v419
  %v469 = vunpack.c.l.b16 %v420
  %v470 = vunpack.c.h.b16 %v420
  %v471 = vunpack.c.l.b16 %v421
  %v472 = vunpack.c.h.b16 %v421
  %v473 = vunpack.c.l.b16 %v422
  %v474 = vunpack.c.h.b16 %v422
  %v475 = vunpack.c.l.b16 %v423
  %v476 = vunpack.c.h.b16 %v423
  %v477 = vunpack.c.l.b16 %v424
  %v478 = vunpack.c.h.b16 %v424
  %v479 = vunpack.c.l.b16 %v425
  %v480 = vunpack.c.h.b16 %v425
  %v481 = vunpack.c.l.b16 %v426
  %v482 = vunpack.c.h.b16 %v426
  %v483 = vunpack.c.l.b16 %v427
  %v484 = vunpack.c.h.b16 %v427
  %v485 = vunpack.c.l.b16 %v428
  %v486 = vunpack.c.h.b16 %v428
  %v487 = vunpack.c.l.b16 %v429
  %v488 = vunpack.c.h.b16 %v429
  %v489 = vunpack.c.l.b16 %v430
  %v490 = vunpack.c.h.b16 %v430
  %v491 = vpack.c.b16 %v461, %v459
  %v492 = vpack.c.b16 %v462, %v460
  %v493 = vpack.c.b16 %v465, %v463
  %v494 = vpack.c.b16 %v466, %v464
  %v495 = vpack.c.b16 %v469, %v467
  %v496 = vpack.c.b16 %v470, %v468
  %v497 = vpack.c.b16 %v473, %v471
  %v498 = vpack.c.b16 %v474, %v472
  %v499 = vpack.c.b16 %v477, %v475
  %v500 = vpack.c.b16 %v478, %v476
  %v501 = vpack.c.b16 %v481, %v479
  %v502 = vpack.c.b16 %v482, %v480
  %v503 = vpack.c.b16 %v485, %v483
  %v504 = vpack.c.b16 %v486, %v484
  %v505 = vpack.c.b16 %v489, %v487
  %v506 = vpack.c.b16 %v490, %v488
  %523 = vmatprep.subr.bf16.mxu0 %v492
  %524 = vmatpush1.bf16.msra.mxu0 %v491
  %525 = vmatprep.subr.bf16.mxu0 %v494
  %526 = vmatpush1.bf16.msra.mxu0 %v493
  %527 = vmatprep.subr.bf16.mxu0 %v496
  %528 = vmatpush1.bf16.msra.mxu0 %v495
  %529 = vmatprep.subr.bf16.mxu0 %v498
  %530 = vmatpush1.bf16.msra.mxu0 %v497
  %531 = vmatprep.subr.bf16.mxu0 %v500
  %532 = vmatpush1.bf16.msra.mxu0 %v499
  %533 = vmatprep.subr.bf16.mxu0 %v502
  %534 = vmatpush1.bf16.msra.mxu0 %v501
  %535 = vmatprep.subr.bf16.mxu0 %v504
  %536 = vmatpush1.bf16.msra.mxu0 %v503
  %537 = vmatprep.subr.bf16.mxu0 %v506
  %538 = vmatpush1.bf16.msra.mxu0 %v505
  %539 = vmatprep.subr.bf16.mxu0 0
  %540 = vmatpush1.bf16.msra.mxu0 0
  %541 = vmatprep.subr.bf16.mxu0 0
  %542 = vmatpush1.bf16.msra.mxu0 0
  %543 = vmatprep.subr.bf16.mxu0 0
  %544 = vmatpush1.bf16.msra.mxu0 0
  %545 = vmatprep.subr.bf16.mxu0 0
  %546 = vmatpush1.bf16.msra.mxu0 0
  %547 = vmatprep.subr.bf16.mxu0 0
  %548 = vmatpush1.bf16.msra.mxu0 0
  %549 = vmatprep.subr.bf16.mxu0 0
  %550 = vmatpush1.bf16.msra.mxu0 0
  %551 = vmatprep.subr.bf16.mxu0 0
  %552 = vmatpush1.bf16.msra.mxu0 0
  %553 = vmatprep.subr.bf16.mxu0 0
  %554 = vmatpush1.bf16.msra.mxu0 0
  %555 = vmatprep.mubr.bf16.mxu0 0
  %556 = vmatmul.mubr.bf16.gmra.mrb[0].mxu0 %v399
  %v557 = vpop.f32.mrb[0].mxu0
  %v558 = vadd.f32 %v436, %v557
  %v559 = vpop.f32.mrb[0].mxu0
  %v560 = vadd.f32 %v440, %v559
  %v561 = vpop.f32.mrb[0].mxu0
  %v562 = vadd.f32 %v436, %v561
  %v563 = vpop.f32.mrb[0].mxu0
  %v564 = vadd.f32 %v440, %v563
  %565 = vmatprep.mubr.bf16.mxu0 0
  %566 = vmatmul.mubr.bf16.gmra.mrb[0].mxu0 %v400
  %v567 = vpop.f32.mrb[0].mxu0
  %v568 = vadd.f32 %v436, %v567
  %v569 = vpop.f32.mrb[0].mxu0
  %v570 = vadd.f32 %v440, %v569
  %v571 = vpop.f32.mrb[0].mxu0
  %v572 = vadd.f32 %v436, %v571
  %v573 = vpop.f32.mrb[0].mxu0
  %v574 = vadd.f32 %v440, %v573
  %575 = vmatprep.mubr.bf16.mxu0 0
  %576 = vmatmul.mubr.bf16.gmra.mrb[0].mxu0 %v401
  %v577 = vpop.f32.mrb[0].mxu0
  %v578 = vadd.f32 %v436, %v577
  %v579 = vpop.f32.mrb[0].mxu0
  %v580 = vadd.f32 %v440, %v579
  %v581 = vpop.f32.mrb[0].mxu0
  %v582 = vadd.f32 %v436, %v581
  %v583 = vpop.f32.mrb[0].mxu0
  %v584 = vadd.f32 %v440, %v583
  %585 = vmatprep.mubr.bf16.mxu0 0
  %586 = vmatmul.mubr.bf16.gmra.mrb[0].mxu0 %v402
  %v587 = vpop.f32.mrb[0].mxu0
  %v588 = vadd.f32 %v436, %v587
  %v589 = vpop.f32.mrb[0].mxu0
  %v590 = vadd.f32 %v440, %v589
  %v591 = vpop.f32.mrb[0].mxu0
  %v592 = vadd.f32 %v436, %v591
  %v593 = vpop.f32.mrb[0].mxu0
  %v594 = vadd.f32 %v440, %v593
  %595 = vmatprep.mubr.bf16.mxu0 0
  %596 = vmatmul.mubr.bf16.gmra.mrb[0].mxu0 %v403
  %v597 = vpop.f32.mrb[0].mxu0
  %v598 = vadd.f32 %v436, %v597
  %v599 = vpop.f32.mrb[0].mxu0
  %v600 = vadd.f32 %v440, %v599
  %v601 = vpop.f32.mrb[0].mxu0
  %v602 = vadd.f32 %v436, %v601
  %v603 = vpop.f32.mrb[0].mxu0
  %v604 = vadd.f32 %v440, %v603
  %605 = vmatprep.mubr.bf16.mxu0 0
  %606 = vmatmul.mubr.bf16.gmra.mrb[0].mxu0 %v404
  %v607 = vpop.f32.mrb[0].mxu0
  %v608 = vadd.f32 %v436, %v607
  %v609 = vpop.f32.mrb[0].mxu0
  %v610 = vadd.f32 %v440, %v609
  %v611 = vpop.f32.mrb[0].mxu0
  %v612 = vadd.f32 %v436, %v611
  %v613 = vpop.f32.mrb[0].mxu0
  %v614 = vadd.f32 %v440, %v613
  %615 = vmatprep.mubr.bf16.mxu0 0
  %616 = vmatmul.mubr.bf16.gmra.mrb[0].mxu0 %v405
  %v617 = vpop.f32.mrb[0].mxu0
  %v618 = vadd.f32 %v436, %v617
  %v619 = vpop.f32.mrb[0].mxu0
  %v620 = vadd.f32 %v440, %v619
  %v621 = vpop.f32.mrb[0].mxu0
  %v622 = vadd.f32 %v436, %v621
  %v623 = vpop.f32.mrb[0].mxu0
  %v624 = vadd.f32 %v440, %v623
  %625 = vmatprep.mubr.bf16.mxu0 0
  %626 = vmatmul.mubr.bf16.gmra.mrb[0].mxu0 %v406
  %v627 = vpop.f32.mrb[0].mxu0
  %v628 = vadd.f32 %v436, %v627
  %v629 = vpop.f32.mrb[0].mxu0
  %v630 = vadd.f32 %v440, %v629
  %v631 = vpop.f32.mrb[0].mxu0
  %v632 = vadd.f32 %v436, %v631
  %v633 = vpop.f32.mrb[0].mxu0
  %v634 = vadd.f32 %v440, %v633
  %635 = vmatprep.mubr.bf16.mxu0 0
  %636 = vmatmul.mubr.bf16.gmra.mrb[0].mxu0 %v407
  %v637 = vpop.f32.mrb[0].mxu0
  %v638 = vadd.f32 %v436, %v637
  %v639 = vpop.f32.mrb[0].mxu0
  %v640 = vadd.f32 %v440, %v639
  %v641 = vpop.f32.mrb[0].mxu0
  %v642 = vadd.f32 %v436, %v641
  %v643 = vpop.f32.mrb[0].mxu0
  %v644 = vadd.f32 %v440, %v643
  %645 = vmatprep.mubr.bf16.mxu0 0
  %646 = vmatmul.mubr.bf16.gmra.mrb[0].mxu0 %v408
  %v647 = vpop.f32.mrb[0].mxu0
  %v648 = vadd.f32 %v436, %v647
  %v649 = vpop.f32.mrb[0].mxu0
  %v650 = vadd.f32 %v440, %v649
  %v651 = vpop.f32.mrb[0].mxu0
  %v652 = vadd.f32 %v436, %v651
  %v653 = vpop.f32.mrb[0].mxu0
  %v654 = vadd.f32 %v440, %v653
  %655 = vmatprep.mubr.bf16.mxu0 0
  %656 = vmatmul.mubr.bf16.gmra.mrb[0].mxu0 %v409
  %v657 = vpop.f32.mrb[0].mxu0
  %v658 = vadd.f32 %v436, %v657
  %v659 = vpop.f32.mrb[0].mxu0
  %v660 = vadd.f32 %v440, %v659
  %v661 = vpop.f32.mrb[0].mxu0
  %v662 = vadd.f32 %v436, %v661
  %v663 = vpop.f32.mrb[0].mxu0
  %v664 = vadd.f32 %v440, %v663
  %665 = vmatprep.mubr.bf16.mxu0 0
  %666 = vmatmul.mubr.bf16.gmra.mrb[0].mxu0 %v410
  %v667 = vpop.f32.mrb[0].mxu0
  %v668 = vadd.f32 %v436, %v667
  %v669 = vpop.f32.mrb[0].mxu0
  %v670 = vadd.f32 %v440, %v669
  %v671 = vpop.f32.mrb[0].mxu0
  %v672 = vadd.f32 %v436, %v671
  %v673 = vpop.f32.mrb[0].mxu0
  %v674 = vadd.f32 %v440, %v673
  %675 = vmatprep.mubr.bf16.mxu0 0
  %676 = vmatmul.mubr.bf16.gmra.mrb[0].mxu0 %v411
  %v677 = vpop.f32.mrb[0].mxu0
  %v678 = vadd.f32 %v436, %v677
  %v679 = vpop.f32.mrb[0].mxu0
  %v680 = vadd.f32 %v440, %v679
  %v681 = vpop.f32.mrb[0].mxu0
  %v682 = vadd.f32 %v436, %v681
  %v683 = vpop.f32.mrb[0].mxu0
  %v684 = vadd.f32 %v440, %v683
  %685 = vmatprep.mubr.bf16.mxu0 0
  %686 = vmatmul.mubr.bf16.gmra.mrb[0].mxu0 %v412
  %v687 = vpop.f32.mrb[0].mxu0
  %v688 = vadd.f32 %v436, %v687
  %v689 = vpop.f32.mrb[0].mxu0
  %v690 = vadd.f32 %v440, %v689
  %v691 = vpop.f32.mrb[0].mxu0
  %v692 = vadd.f32 %v436, %v691
  %v693 = vpop.f32.mrb[0].mxu0
  %v694 = vadd.f32 %v440, %v693
  %695 = vmatprep.mubr.bf16.mxu0 0
  %696 = vmatmul.mubr.bf16.gmra.mrb[0].mxu0 %v413
  %v697 = vpop.f32.mrb[0].mxu0
  %v698 = vadd.f32 %v436, %v697
  %v699 = vpop.f32.mrb[0].mxu0
  %v700 = vadd.f32 %v440, %v699
  %v701 = vpop.f32.mrb[0].mxu0
  %v702 = vadd.f32 %v436, %v701
  %v703 = vpop.f32.mrb[0].mxu0
  %v704 = vadd.f32 %v440, %v703
  %705 = vmatprep.mubr.bf16.mxu0 0
  %706 = vmatmul.mubr.bf16.gmra.mrb[0].mxu0 %v414
  %v707 = vpop.f32.mrb[0].mxu0
  %v708 = vadd.f32 %v436, %v707
  %v709 = vpop.f32.mrb[0].mxu0
  %v710 = vadd.f32 %v440, %v709
  %v711 = vpop.f32.mrb[0].mxu0
  %v712 = vadd.f32 %v436, %v711
  %v713 = vpop.f32.mrb[0].mxu0
  %v714 = vadd.f32 %v440, %v713
  %715 = vdwg.mxu0
  %v716 = vmax.f32 %v558, %v562
  %v717 = vmax.f32 %v716, %v568
  %v718 = vmax.f32 %v717, %v572
  %v719 = vrot.slane %v718, 4
  %v720 = vmax.f32 %v718, %v719
  %v721 = vrot.slane %v720, 2
  %v722 = vmax.f32 %v720, %v721
  %v723 = vrot.slane %v722, 1
  %v724 = vmax.f32 %v722, %v723
  %v725 = vmax.f32 %v560, %v564
  %v726 = vmax.f32 %v725, %v570
  %v727 = vmax.f32 %v726, %v574
  %v728 = vrot.slane %v727, 4
  %v729 = vmax.f32 %v727, %v728
  %v730 = vrot.slane %v729, 2
  %v731 = vmax.f32 %v729, %v730
  %v732 = vrot.slane %v731, 1
  %v733 = vmax.f32 %v731, %v732
  %v734 = vmax.f32 %v578, %v582
  %v735 = vmax.f32 %v734, %v588
  %v736 = vmax.f32 %v735, %v592
  %v737 = vrot.slane %v736, 4
  %v738 = vmax.f32 %v736, %v737
  %v739 = vrot.slane %v738, 2
  %v740 = vmax.f32 %v738, %v739
  %v741 = vrot.slane %v740, 1
  %v742 = vmax.f32 %v740, %v741
  %v743 = vmax.f32 %v580, %v584
  %v744 = vmax.f32 %v743, %v590
  %v745 = vmax.f32 %v744, %v594
  %v746 = vrot.slane %v745, 4
  %v747 = vmax.f32 %v745, %v746
  %v748 = vrot.slane %v747, 2
  %v749 = vmax.f32 %v747, %v748
  %v750 = vrot.slane %v749, 1
  %v751 = vmax.f32 %v749, %v750
  %v752 = vmax.f32 %v598, %v602
  %v753 = vmax.f32 %v752, %v608
  %v754 = vmax.f32 %v753, %v612
  %v755 = vrot.slane %v754, 4
  %v756 = vmax.f32 %v754, %v755
  %v757 = vrot.slane %v756, 2
  %v758 = vmax.f32 %v756, %v757
  %v759 = vrot.slane %v758, 1
  %v760 = vmax.f32 %v758, %v759
  %v761 = vmax.f32 %v600, %v604
  %v762 = vmax.f32 %v761, %v610
  %v763 = vmax.f32 %v762, %v614
  %v764 = vrot.slane %v763, 4
  %v765 = vmax.f32 %v763, %v764
  %v766 = vrot.slane %v765, 2
  %v767 = vmax.f32 %v765, %v766
  %v768 = vrot.slane %v767, 1
  %v769 = vmax.f32 %v767, %v768
  %v770 = vmax.f32 %v618, %v622
  %v771 = vmax.f32 %v770, %v628
  %v772 = vmax.f32 %v771, %v632
  %v773 = vrot.slane %v772, 4
  %v774 = vmax.f32 %v772, %v773
  %v775 = vrot.slane %v774, 2
  %v776 = vmax.f32 %v774, %v775
  %v777 = vrot.slane %v776, 1
  %v778 = vmax.f32 %v776, %v777
  %v779 = vmax.f32 %v620, %v624
  %v780 = vmax.f32 %v779, %v630
  %v781 = vmax.f32 %v780, %v634
  %v782 = vrot.slane %v781, 4
  %v783 = vmax.f32 %v781, %v782
  %v784 = vrot.slane %v783, 2
  %v785 = vmax.f32 %v783, %v784
  %v786 = vrot.slane %v785, 1
  %v787 = vmax.f32 %v785, %v786
  %v788 = vmax.f32 %v638, %v642
  %v789 = vmax.f32 %v788, %v648
  %v790 = vmax.f32 %v789, %v652
  %v791 = vrot.slane %v790, 4
  %v792 = vmax.f32 %v790, %v791
  %v793 = vrot.slane %v792, 2
  %v794 = vmax.f32 %v792, %v793
  %v795 = vrot.slane %v794, 1
  %v796 = vmax.f32 %v794, %v795
  %v797 = vmax.f32 %v640, %v644
  %v798 = vmax.f32 %v797, %v650
  %v799 = vmax.f32 %v798, %v654
  %v800 = vrot.slane %v799, 4
  %v801 = vmax.f32 %v799, %v800
  %v802 = vrot.slane %v801, 2
  %v803 = vmax.f32 %v801, %v802
  %v804 = vrot.slane %v803, 1
  %v805 = vmax.f32 %v803, %v804
  %v806 = vmax.f32 %v658, %v662
  %v807 = vmax.f32 %v806, %v668
  %v808 = vmax.f32 %v807, %v672
  %v809 = vrot.slane %v808, 4
  %v810 = vmax.f32 %v808, %v809
  %v811 = vrot.slane %v810, 2
  %v812 = vmax.f32 %v810, %v811
  %v813 = vrot.slane %v812, 1
  %v814 = vmax.f32 %v812, %v813
  %v815 = vmax.f32 %v660, %v664
  %v816 = vmax.f32 %v815, %v670
  %v817 = vmax.f32 %v816, %v674
  %v818 = vrot.slane %v817, 4
  %v819 = vmax.f32 %v817, %v818
  %v820 = vrot.slane %v819, 2
  %v821 = vmax.f32 %v819, %v820
  %v822 = vrot.slane %v821, 1
  %v823 = vmax.f32 %v821, %v822
  %v824 = vmax.f32 %v678, %v682
  %v825 = vmax.f32 %v824, %v688
  %v826 = vmax.f32 %v825, %v692
  %v827 = vrot.slane %v826, 4
  %v828 = vmax.f32 %v826, %v827
  %v829 = vrot.slane %v828, 2
  %v830 = vmax.f32 %v828, %v829
  %v831 = vrot.slane %v830, 1
  %v832 = vmax.f32 %v830, %v831
  %v833 = vmax.f32 %v680, %v684
  %v834 = vmax.f32 %v833, %v690
  %v835 = vmax.f32 %v834, %v694
  %v836 = vrot.slane %v835, 4
  %v837 = vmax.f32 %v835, %v836
  %v838 = vrot.slane %v837, 2
  %v839 = vmax.f32 %v837, %v838
  %v840 = vrot.slane %v839, 1
  %v841 = vmax.f32 %v839, %v840
  %v842 = vmax.f32 %v698, %v702
  %v843 = vmax.f32 %v842, %v708
  %v844 = vmax.f32 %v843, %v712
  %v845 = vrot.slane %v844, 4
  %v846 = vmax.f32 %v844, %v845
  %v847 = vrot.slane %v846, 2
  %v848 = vmax.f32 %v846, %v847
  %v849 = vrot.slane %v848, 1
  %v850 = vmax.f32 %v848, %v849
  %v851 = vmax.f32 %v700, %v704
  %v852 = vmax.f32 %v851, %v710
  %v853 = vmax.f32 %v852, %v714
  %v854 = vrot.slane %v853, 4
  %v855 = vmax.f32 %v853, %v854
  %v856 = vrot.slane %v855, 2
  %v857 = vmax.f32 %v855, %v856
  %v858 = vrot.slane %v857, 1
  %v859 = vmax.f32 %v857, %v858
  %v860 = vpack.c.bf16 %v562, %v558
  %v861 = vpack.c.bf16 %v564, %v560
  %v862 = vpack.c.bf16 %v572, %v568
  %v863 = vpack.c.bf16 %v574, %v570
  %v864 = vpack.c.bf16 %v582, %v578
  %v865 = vpack.c.bf16 %v584, %v580
  %v866 = vpack.c.bf16 %v592, %v588
  %v867 = vpack.c.bf16 %v594, %v590
  %v868 = vpack.c.bf16 %v602, %v598
  %v869 = vpack.c.bf16 %v604, %v600
  %v870 = vpack.c.bf16 %v612, %v608
  %v871 = vpack.c.bf16 %v614, %v610
  %v872 = vpack.c.bf16 %v622, %v618
  %v873 = vpack.c.bf16 %v624, %v620
  %v874 = vpack.c.bf16 %v632, %v628
  %v875 = vpack.c.bf16 %v634, %v630
  %v876 = vpack.c.bf16 %v642, %v638
  %v877 = vpack.c.bf16 %v644, %v640
  %v878 = vpack.c.bf16 %v652, %v648
  %v879 = vpack.c.bf16 %v654, %v650
  %v880 = vpack.c.bf16 %v662, %v658
  %v881 = vpack.c.bf16 %v664, %v660
  %v882 = vpack.c.bf16 %v672, %v668
  %v883 = vpack.c.bf16 %v674, %v670
  %v884 = vpack.c.bf16 %v682, %v678
  %v885 = vpack.c.bf16 %v684, %v680
  %v886 = vpack.c.bf16 %v692, %v688
  %v887 = vpack.c.bf16 %v694, %v690
  %v888 = vpack.c.bf16 %v702, %v698
  %v889 = vpack.c.bf16 %v704, %v700
  %v890 = vpack.c.bf16 %v712, %v708
  %v891 = vpack.c.bf16 %v714, %v710
  %v892 = vld [vmem:[%s5] sm:$0xff]
  %v893 = vld [vmem:[%s5 + $0x8] sm:$0xff]
  %v894 = vld [vmem:[%s5 + $0x10] sm:$0xff]
  %v895 = vld [vmem:[%s5 + $0x18] sm:$0xff]
  %v896 = vld [vmem:[%s5 + $0x20] sm:$0xff]
  %v897 = vld [vmem:[%s5 + $0x28] sm:$0xff]
  %v898 = vld [vmem:[%s5 + $0x30] sm:$0xff]
  %v899 = vld [vmem:[%s5 + $0x38] sm:$0xff]
  %v900 = vld [vmem:[%s5 + $0x40] sm:$0xff]
  %v901 = vld [vmem:[%s5 + $0x48] sm:$0xff]
  %v902 = vld [vmem:[%s5 + $0x50] sm:$0xff]
  %v903 = vld [vmem:[%s5 + $0x58] sm:$0xff]
  %v904 = vld [vmem:[%s5 + $0x60] sm:$0xff]
  %v905 = vld [vmem:[%s5 + $0x68] sm:$0xff]
  %v906 = vld [vmem:[%s5 + $0x70] sm:$0xff]
  %v907 = vld [vmem:[%s5 + $0x78] sm:$0xff]
  %v908 = vld [vmem:[%s5 + $0x80] sm:$0xff]
  %v909 = vld [vmem:[%s5 + $0x88] sm:$0xff]
  %v910 = vld [vmem:[%s5 + $0x90] sm:$0xff]
  %v911 = vld [vmem:[%s5 + $0x98] sm:$0xff]
  %v912 = vld [vmem:[%s5 + $0xa0] sm:$0xff]
  %v913 = vld [vmem:[%s5 + $0xa8] sm:$0xff]
  %v914 = vld [vmem:[%s5 + $0xb0] sm:$0xff]
  %v915 = vld [vmem:[%s5 + $0xb8] sm:$0xff]
  %v916 = vld [vmem:[%s5 + $0xc0] sm:$0xff]
  %v917 = vld [vmem:[%s5 + $0xc8] sm:$0xff]
  %v918 = vld [vmem:[%s5 + $0xd0] sm:$0xff]
  %v919 = vld [vmem:[%s5 + $0xd8] sm:$0xff]
  %v920 = vld [vmem:[%s5 + $0xe0] sm:$0xff]
  %v921 = vld [vmem:[%s5 + $0xe8] sm:$0xff]
  %v922 = vld [vmem:[%s5 + $0xf0] sm:$0xff]
  %v923 = vld [vmem:[%s5 + $0xf8] sm:$0xff]
  %v924 = vld [vmem:[%s5 + $0x100] sm:$0xff]
  %v925 = vld [vmem:[%s5 + $0x108] sm:$0xff]
  %v926 = vld [vmem:[%s5 + $0x110] sm:$0xff]
  %v927 = vld [vmem:[%s5 + $0x118] sm:$0xff]
  %v928 = vld [vmem:[%s5 + $0x120] sm:$0xff]
  %v929 = vld [vmem:[%s5 + $0x128] sm:$0xff]
  %v930 = vld [vmem:[%s5 + $0x130] sm:$0xff]
  %v931 = vld [vmem:[%s5 + $0x138] sm:$0xff]
  %v932 = vld [vmem:[%s5 + $0x140] sm:$0xff]
  %v933 = vld [vmem:[%s5 + $0x148] sm:$0xff]
  %v934 = vld [vmem:[%s5 + $0x150] sm:$0xff]
  %v935 = vld [vmem:[%s5 + $0x158] sm:$0xff]
  %v936 = vld [vmem:[%s5 + $0x160] sm:$0xff]
  %v937 = vld [vmem:[%s5 + $0x168] sm:$0xff]
  %v938 = vld [vmem:[%s5 + $0x170] sm:$0xff]
  %v939 = vld [vmem:[%s5 + $0x178] sm:$0xff]
  %v940 = vld [vmem:[%s5 + $0x180] sm:$0xff]
  %v941 = vld [vmem:[%s5 + $0x188] sm:$0xff]
  %v942 = vld [vmem:[%s5 + $0x190] sm:$0xff]
  %v943 = vld [vmem:[%s5 + $0x198] sm:$0xff]
  %v944 = vld [vmem:[%s5 + $0x1a0] sm:$0xff]
  %v945 = vld [vmem:[%s5 + $0x1a8] sm:$0xff]
  %v946 = vld [vmem:[%s5 + $0x1b0] sm:$0xff]
  %v947 = vld [vmem:[%s5 + $0x1b8] sm:$0xff]
  %v948 = vld [vmem:[%s5 + $0x1c0] sm:$0xff]
  %v949 = vld [vmem:[%s5 + $0x1c8] sm:$0xff]
  %v950 = vld [vmem:[%s5 + $0x1d0] sm:$0xff]
  %v951 = vld [vmem:[%s5 + $0x1d8] sm:$0xff]
  %v952 = vld [vmem:[%s5 + $0x1e0] sm:$0xff]
  %v953 = vld [vmem:[%s5 + $0x1e8] sm:$0xff]
  %v954 = vld [vmem:[%s5 + $0x1f0] sm:$0xff]
  %v955 = vld [vmem:[%s5 + $0x1f8] sm:$0xff]
  %v1020 = vunpack.c.l.b16 %v892
  %v1021 = vunpack.c.h.b16 %v892
  %v1022 = vunpack.c.l.b16 %v893
  %v1023 = vunpack.c.h.b16 %v893
  %v1024 = vunpack.c.l.b16 %v894
  %v1025 = vunpack.c.h.b16 %v894
  %v1026 = vunpack.c.l.b16 %v895
  %v1027 = vunpack.c.h.b16 %v895
  %v1028 = vunpack.c.l.b16 %v896
  %v1029 = vunpack.c.h.b16 %v896
  %v1030 = vunpack.c.l.b16 %v897
  %v1031 = vunpack.c.h.b16 %v897
  %v1032 = vunpack.c.l.b16 %v898
  %v1033 = vunpack.c.h.b16 %v898
  %v1034 = vunpack.c.l.b16 %v899
  %v1035 = vunpack.c.h.b16 %v899
  %v1036 = vunpack.c.l.b16 %v900
  %v1037 = vunpack.c.h.b16 %v900
  %v1038 = vunpack.c.l.b16 %v901
  %v1039 = vunpack.c.h.b16 %v901
  %v1040 = vunpack.c.l.b16 %v902
  %v1041 = vunpack.c.h.b16 %v902
  %v1042 = vunpack.c.l.b16 %v903
  %v1043 = vunpack.c.h.b16 %v903
  %v1044 = vunpack.c.l.b16 %v904
  %v1045 = vunpack.c.h.b16 %v904
  %v1046 = vunpack.c.l.b16 %v905
  %v1047 = vunpack.c.h.b16 %v905
  %v1048 = vunpack.c.l.b16 %v906
  %v1049 = vunpack.c.h.b16 %v906
  %v1050 = vunpack.c.l.b16 %v907
  %v1051 = vunpack.c.h.b16 %v907
  %v1052 = vunpack.c.l.b16 %v908
  %v1053 = vunpack.c.h.b16 %v908
  %v1054 = vunpack.c.l.b16 %v909
  %v1055 = vunpack.c.h.b16 %v909
  %v1056 = vunpack.c.l.b16 %v910
  %v1057 = vunpack.c.h.b16 %v910
  %v1058 = vunpack.c.l.b16 %v911
  %v1059 = vunpack.c.h.b16 %v911
  %v1060 = vunpack.c.l.b16 %v912
  %v1061 = vunpack.c.h.b16 %v912
  %v1062 = vunpack.c.l.b16 %v913
  %v1063 = vunpack.c.h.b16 %v913
  %v1064 = vunpack.c.l.b16 %v914
  %v1065 = vunpack.c.h.b16 %v914
  %v1066 = vunpack.c.l.b16 %v915
  %v1067 = vunpack.c.h.b16 %v915
  %v1068 = vunpack.c.l.b16 %v916
  %v1069 = vunpack.c.h.b16 %v916
  %v1070 = vunpack.c.l.b16 %v917
  %v1071 = vunpack.c.h.b16 %v917
  %v1072 = vunpack.c.l.b16 %v918
  %v1073 = vunpack.c.h.b16 %v918
  %v1074 = vunpack.c.l.b16 %v919
  %v1075 = vunpack.c.h.b16 %v919
  %v1076 = vunpack.c.l.b16 %v920
  %v1077 = vunpack.c.h.b16 %v920
  %v1078 = vunpack.c.l.b16 %v921
  %v1079 = vunpack.c.h.b16 %v921
  %v1080 = vunpack.c.l.b16 %v922
  %v1081 = vunpack.c.h.b16 %v922
  %v1082 = vunpack.c.l.b16 %v923
  %v1083 = vunpack.c.h.b16 %v923
  %v1084 = vunpack.c.l.b16 %v924
  %v1085 = vunpack.c.h.b16 %v924
  %v1086 = vunpack.c.l.b16 %v925
  %v1087 = vunpack.c.h.b16 %v925
  %v1088 = vunpack.c.l.b16 %v926
  %v1089 = vunpack.c.h.b16 %v926
  %v1090 = vunpack.c.l.b16 %v927
  %v1091 = vunpack.c.h.b16 %v927
  %v1092 = vunpack.c.l.b16 %v928
  %v1093 = vunpack.c.h.b16 %v928
  %v1094 = vunpack.c.l.b16 %v929
  %v1095 = vunpack.c.h.b16 %v929
  %v1096 = vunpack.c.l.b16 %v930
  %v1097 = vunpack.c.h.b16 %v930
  %v1098 = vunpack.c.l.b16 %v931
  %v1099 = vunpack.c.h.b16 %v931
  %v1100 = vunpack.c.l.b16 %v932
  %v1101 = vunpack.c.h.b16 %v932
  %v1102 = vunpack.c.l.b16 %v933
  %v1103 = vunpack.c.h.b16 %v933
  %v1104 = vunpack.c.l.b16 %v934
  %v1105 = vunpack.c.h.b16 %v934
  %v1106 = vunpack.c.l.b16 %v935
  %v1107 = vunpack.c.h.b16 %v935
  %v1108 = vunpack.c.l.b16 %v936
  %v1109 = vunpack.c.h.b16 %v936
  %v1110 = vunpack.c.l.b16 %v937
  %v1111 = vunpack.c.h.b16 %v937
  %v1112 = vunpack.c.l.b16 %v938
  %v1113 = vunpack.c.h.b16 %v938
  %v1114 = vunpack.c.l.b16 %v939
  %v1115 = vunpack.c.h.b16 %v939
  %v1116 = vunpack.c.l.b16 %v940
  %v1117 = vunpack.c.h.b16 %v940
  %v1118 = vunpack.c.l.b16 %v941
  %v1119 = vunpack.c.h.b16 %v941
  %v1120 = vunpack.c.l.b16 %v942
  %v1121 = vunpack.c.h.b16 %v942
  %v1122 = vunpack.c.l.b16 %v943
  %v1123 = vunpack.c.h.b16 %v943
  %v1124 = vunpack.c.l.b16 %v944
  %v1125 = vunpack.c.h.b16 %v944
  %v1126 = vunpack.c.l.b16 %v945
  %v1127 = vunpack.c.h.b16 %v945
  %v1128 = vunpack.c.l.b16 %v946
  %v1129 = vunpack.c.h.b16 %v946
  %v1130 = vunpack.c.l.b16 %v947
  %v1131 = vunpack.c.h.b16 %v947
  %v1132 = vunpack.c.l.b16 %v948
  %v1133 = vunpack.c.h.b16 %v948
  %v1134 = vunpack.c.l.b16 %v949
  %v1135 = vunpack.c.h.b16 %v949
  %v1136 = vunpack.c.l.b16 %v950
  %v1137 = vunpack.c.h.b16 %v950
  %v1138 = vunpack.c.l.b16 %v951
  %v1139 = vunpack.c.h.b16 %v951
  %v1140 = vunpack.c.l.b16 %v952
  %v1141 = vunpack.c.h.b16 %v952
  %v1142 = vunpack.c.l.b16 %v953
  %v1143 = vunpack.c.h.b16 %v953
  %v1144 = vunpack.c.l.b16 %v954
  %v1145 = vunpack.c.h.b16 %v954
  %v1146 = vunpack.c.l.b16 %v955
  %v1147 = vunpack.c.h.b16 %v955
  %v1148 = vpack.c.b16 %v1024, %v1020
  %v1149 = vpack.c.b16 %v1025, %v1021
  %v1150 = vpack.c.b16 %v1026, %v1022
  %v1151 = vpack.c.b16 %v1027, %v1023
  %v1152 = vpack.c.b16 %v1032, %v1028
  %v1153 = vpack.c.b16 %v1033, %v1029
  %v1154 = vpack.c.b16 %v1034, %v1030
  %v1155 = vpack.c.b16 %v1035, %v1031
  %v1156 = vpack.c.b16 %v1040, %v1036
  %v1157 = vpack.c.b16 %v1041, %v1037
  %v1158 = vpack.c.b16 %v1042, %v1038
  %v1159 = vpack.c.b16 %v1043, %v1039
  %v1160 = vpack.c.b16 %v1048, %v1044
  %v1161 = vpack.c.b16 %v1049, %v1045
  %v1162 = vpack.c.b16 %v1050, %v1046
  %v1163 = vpack.c.b16 %v1051, %v1047
  %v1164 = vpack.c.b16 %v1056, %v1052
  %v1165 = vpack.c.b16 %v1057, %v1053
  %v1166 = vpack.c.b16 %v1058, %v1054
  %v1167 = vpack.c.b16 %v1059, %v1055
  %v1168 = vpack.c.b16 %v1064, %v1060
  %v1169 = vpack.c.b16 %v1065, %v1061
  %v1170 = vpack.c.b16 %v1066, %v1062
  %v1171 = vpack.c.b16 %v1067, %v1063
  %v1172 = vpack.c.b16 %v1072, %v1068
  %v1173 = vpack.c.b16 %v1073, %v1069
  %v1174 = vpack.c.b16 %v1074, %v1070
  %v1175 = vpack.c.b16 %v1075, %v1071
  %v1176 = vpack.c.b16 %v1080, %v1076
  %v1177 = vpack.c.b16 %v1081, %v1077
  %v1178 = vpack.c.b16 %v1082, %v1078
  %v1179 = vpack.c.b16 %v1083, %v1079
  %v1180 = vpack.c.b16 %v1088, %v1084
  %v1181 = vpack.c.b16 %v1089, %v1085
  %v1182 = vpack.c.b16 %v1090, %v1086
  %v1183 = vpack.c.b16 %v1091, %v1087
  %v1184 = vpack.c.b16 %v1096, %v1092
  %v1185 = vpack.c.b16 %v1097, %v1093
  %v1186 = vpack.c.b16 %v1098, %v1094
  %v1187 = vpack.c.b16 %v1099, %v1095
  %v1188 = vpack.c.b16 %v1104, %v1100
  %v1189 = vpack.c.b16 %v1105, %v1101
  %v1190 = vpack.c.b16 %v1106, %v1102
  %v1191 = vpack.c.b16 %v1107, %v1103
  %v1192 = vpack.c.b16 %v1112, %v1108
  %v1193 = vpack.c.b16 %v1113, %v1109
  %v1194 = vpack.c.b16 %v1114, %v1110
  %v1195 = vpack.c.b16 %v1115, %v1111
  %v1196 = vpack.c.b16 %v1120, %v1116
  %v1197 = vpack.c.b16 %v1121, %v1117
  %v1198 = vpack.c.b16 %v1122, %v1118
  %v1199 = vpack.c.b16 %v1123, %v1119
  %v1200 = vpack.c.b16 %v1128, %v1124
  %v1201 = vpack.c.b16 %v1129, %v1125
  %v1202 = vpack.c.b16 %v1130, %v1126
  %v1203 = vpack.c.b16 %v1131, %v1127
  %v1204 = vpack.c.b16 %v1136, %v1132
  %v1205 = vpack.c.b16 %v1137, %v1133
  %v1206 = vpack.c.b16 %v1138, %v1134
  %v1207 = vpack.c.b16 %v1139, %v1135
  %v1208 = vpack.c.b16 %v1144, %v1140
  %v1209 = vpack.c.b16 %v1145, %v1141
  %v1210 = vpack.c.b16 %v1146, %v1142
  %v1211 = vpack.c.b16 %v1147, %v1143
  %1276 = vmatprep.subr.bf16.mxu0 %v1149
  %1277 = vmatpush1.bf16.msra.mxu0 %v1148
  %1278 = vmatprep.subr.bf16.mxu0 %v1153
  %1279 = vmatpush1.bf16.msra.mxu0 %v1152
  %1280 = vmatprep.subr.bf16.mxu0 %v1157
  %1281 = vmatpush1.bf16.msra.mxu0 %v1156
  %1282 = vmatprep.subr.bf16.mxu0 %v1161
  %1283 = vmatpush1.bf16.msra.mxu0 %v1160
  %1284 = vmatprep.subr.bf16.mxu0 %v1165
  %1285 = vmatpush1.bf16.msra.mxu0 %v1164
  %1286 = vmatprep.subr.bf16.mxu0 %v1169
  %1287 = vmatpush1.bf16.msra.mxu0 %v1168
  %1288 = vmatprep.subr.bf16.mxu0 %v1173
  %1289 = vmatpush1.bf16.msra.mxu0 %v1172
  %1290 = vmatprep.subr.bf16.mxu0 %v1177
  %1291 = vmatpush1.bf16.msra.mxu0 %v1176
  %1292 = vmatprep.subr.bf16.mxu0 %v1181
  %1293 = vmatpush1.bf16.msra.mxu0 %v1180
  %1294 = vmatprep.subr.bf16.mxu0 %v1185
  %1295 = vmatpush1.bf16.msra.mxu0 %v1184
  %1296 = vmatprep.subr.bf16.mxu0 %v1189
  %1297 = vmatpush1.bf16.msra.mxu0 %v1188
  %1298 = vmatprep.subr.bf16.mxu0 %v1193
  %1299 = vmatpush1.bf16.msra.mxu0 %v1192
  %1300 = vmatprep.subr.bf16.mxu0 %v1197
  %1301 = vmatpush1.bf16.msra.mxu0 %v1196
  %1302 = vmatprep.subr.bf16.mxu0 %v1201
  %1303 = vmatpush1.bf16.msra.mxu0 %v1200
  %1304 = vmatprep.subr.bf16.mxu0 %v1205
  %1305 = vmatpush1.bf16.msra.mxu0 %v1204
  %1306 = vmatprep.subr.bf16.mxu0 %v1209
  %1307 = vmatpush1.bf16.msra.mxu0 %v1208
  %1308 = vmatprep.mubr.bf16.mxu0 %v861
  %1309 = vmatmul.mubr.bf16.gmra.mrb[0].mxu0 %v860
  %v1310 = vpop.f32.mrb[0].mxu0
  %v1311 = vadd.f32 0.0, %v1310
  %v1312 = vpop.f32.mrb[0].mxu0
  %v1313 = vadd.f32 0.0, %v1312
  %v1314 = vpop.f32.mrb[0].mxu0
  %v1315 = vadd.f32 0.0, %v1314
  %v1316 = vpop.f32.mrb[0].mxu0
  %v1317 = vadd.f32 0.0, %v1316
  %1318 = vmatprep.mubr.bf16.mxu0 %v863
  %1319 = vmatmul.mubr.bf16.gmra.mrb[0].mxu0 %v862
  %v1320 = vpop.f32.mrb[0].mxu0
  %v1321 = vadd.f32 0.0, %v1320
  %v1322 = vpop.f32.mrb[0].mxu0
  %v1323 = vadd.f32 0.0, %v1322
  %v1324 = vpop.f32.mrb[0].mxu0
  %v1325 = vadd.f32 0.0, %v1324
  %v1326 = vpop.f32.mrb[0].mxu0
  %v1327 = vadd.f32 0.0, %v1326
  %1328 = vmatprep.mubr.bf16.mxu0 %v865
  %1329 = vmatmul.mubr.bf16.gmra.mrb[0].mxu0 %v864
  %v1330 = vpop.f32.mrb[0].mxu0
  %v1331 = vadd.f32 0.0, %v1330
  %v1332 = vpop.f32.mrb[0].mxu0
  %v1333 = vadd.f32 0.0, %v1332
  %v1334 = vpop.f32.mrb[0].mxu0
  %v1335 = vadd.f32 0.0, %v1334
  %v1336 = vpop.f32.mrb[0].mxu0
  %v1337 = vadd.f32 0.0, %v1336
  %1338 = vmatprep.mubr.bf16.mxu0 %v867
  %1339 = vmatmul.mubr.bf16.gmra.mrb[0].mxu0 %v866
  %v1340 = vpop.f32.mrb[0].mxu0
  %v1341 = vadd.f32 0.0, %v1340
  %v1342 = vpop.f32.mrb[0].mxu0
  %v1343 = vadd.f32 0.0, %v1342
  %v1344 = vpop.f32.mrb[0].mxu0
  %v1345 = vadd.f32 0.0, %v1344
  %v1346 = vpop.f32.mrb[0].mxu0
  %v1347 = vadd.f32 0.0, %v1346
  %1348 = vmatprep.mubr.bf16.mxu0 %v869
  %1349 = vmatmul.mubr.bf16.gmra.mrb[0].mxu0 %v868
  %v1350 = vpop.f32.mrb[0].mxu0
  %v1351 = vadd.f32 0.0, %v1350
  %v1352 = vpop.f32.mrb[0].mxu0
  %v1353 = vadd.f32 0.0, %v1352
  %v1354 = vpop.f32.mrb[0].mxu0
  %v1355 = vadd.f32 0.0, %v1354
  %v1356 = vpop.f32.mrb[0].mxu0
  %v1357 = vadd.f32 0.0, %v1356
  %1358 = vmatprep.mubr.bf16.mxu0 %v871
  %1359 = vmatmul.mubr.bf16.gmra.mrb[0].mxu0 %v870
  %v1360 = vpop.f32.mrb[0].mxu0
  %v1361 = vadd.f32 0.0, %v1360
  %v1362 = vpop.f32.mrb[0].mxu0
  %v1363 = vadd.f32 0.0, %v1362
  %v1364 = vpop.f32.mrb[0].mxu0
  %v1365 = vadd.f32 0.0, %v1364
  %v1366 = vpop.f32.mrb[0].mxu0
  %v1367 = vadd.f32 0.0, %v1366
  %1368 = vmatprep.mubr.bf16.mxu0 %v873
  %1369 = vmatmul.mubr.bf16.gmra.mrb[0].mxu0 %v872
  %v1370 = vpop.f32.mrb[0].mxu0
  %v1371 = vadd.f32 0.0, %v1370
  %v1372 = vpop.f32.mrb[0].mxu0
  %v1373 = vadd.f32 0.0, %v1372
  %v1374 = vpop.f32.mrb[0].mxu0
  %v1375 = vadd.f32 0.0, %v1374
  %v1376 = vpop.f32.mrb[0].mxu0
  %v1377 = vadd.f32 0.0, %v1376
  %1378 = vmatprep.mubr.bf16.mxu0 %v875
  %1379 = vmatmul.mubr.bf16.gmra.mrb[0].mxu0 %v874
  %v1380 = vpop.f32.mrb[0].mxu0
  %v1381 = vadd.f32 0.0, %v1380
  %v1382 = vpop.f32.mrb[0].mxu0
  %v1383 = vadd.f32 0.0, %v1382
  %v1384 = vpop.f32.mrb[0].mxu0
  %v1385 = vadd.f32 0.0, %v1384
  %v1386 = vpop.f32.mrb[0].mxu0
  %v1387 = vadd.f32 0.0, %v1386
  %1388 = vmatprep.mubr.bf16.mxu0 %v877
  %1389 = vmatmul.mubr.bf16.gmra.mrb[0].mxu0 %v876
  %v1390 = vpop.f32.mrb[0].mxu0
  %v1391 = vadd.f32 0.0, %v1390
  %v1392 = vpop.f32.mrb[0].mxu0
  %v1393 = vadd.f32 0.0, %v1392
  %v1394 = vpop.f32.mrb[0].mxu0
  %v1395 = vadd.f32 0.0, %v1394
  %v1396 = vpop.f32.mrb[0].mxu0
  %v1397 = vadd.f32 0.0, %v1396
  %1398 = vmatprep.mubr.bf16.mxu0 %v879
  %1399 = vmatmul.mubr.bf16.gmra.mrb[0].mxu0 %v878
  %v1400 = vpop.f32.mrb[0].mxu0
  %v1401 = vadd.f32 0.0, %v1400
  %v1402 = vpop.f32.mrb[0].mxu0
  %v1403 = vadd.f32 0.0, %v1402
  %v1404 = vpop.f32.mrb[0].mxu0
  %v1405 = vadd.f32 0.0, %v1404
  %v1406 = vpop.f32.mrb[0].mxu0
  %v1407 = vadd.f32 0.0, %v1406
  %1408 = vmatprep.mubr.bf16.mxu0 %v881
  %1409 = vmatmul.mubr.bf16.gmra.mrb[0].mxu0 %v880
  %v1410 = vpop.f32.mrb[0].mxu0
  %v1411 = vadd.f32 0.0, %v1410
  %v1412 = vpop.f32.mrb[0].mxu0
  %v1413 = vadd.f32 0.0, %v1412
  %v1414 = vpop.f32.mrb[0].mxu0
  %v1415 = vadd.f32 0.0, %v1414
  %v1416 = vpop.f32.mrb[0].mxu0
  %v1417 = vadd.f32 0.0, %v1416
  %1418 = vmatprep.mubr.bf16.mxu0 %v883
  %1419 = vmatmul.mubr.bf16.gmra.mrb[0].mxu0 %v882
  %v1420 = vpop.f32.mrb[0].mxu0
  %v1421 = vadd.f32 0.0, %v1420
  %v1422 = vpop.f32.mrb[0].mxu0
  %v1423 = vadd.f32 0.0, %v1422
  %v1424 = vpop.f32.mrb[0].mxu0
  %v1425 = vadd.f32 0.0, %v1424
  %v1426 = vpop.f32.mrb[0].mxu0
  %v1427 = vadd.f32 0.0, %v1426
  %1428 = vmatprep.mubr.bf16.mxu0 %v885
  %1429 = vmatmul.mubr.bf16.gmra.mrb[0].mxu0 %v884
  %v1430 = vpop.f32.mrb[0].mxu0
  %v1431 = vadd.f32 0.0, %v1430
  %v1432 = vpop.f32.mrb[0].mxu0
  %v1433 = vadd.f32 0.0, %v1432
  %v1434 = vpop.f32.mrb[0].mxu0
  %v1435 = vadd.f32 0.0, %v1434
  %v1436 = vpop.f32.mrb[0].mxu0
  %v1437 = vadd.f32 0.0, %v1436
  %1438 = vmatprep.mubr.bf16.mxu0 %v887
  %1439 = vmatmul.mubr.bf16.gmra.mrb[0].mxu0 %v886
  %v1440 = vpop.f32.mrb[0].mxu0
  %v1441 = vadd.f32 0.0, %v1440
  %v1442 = vpop.f32.mrb[0].mxu0
  %v1443 = vadd.f32 0.0, %v1442
  %v1444 = vpop.f32.mrb[0].mxu0
  %v1445 = vadd.f32 0.0, %v1444
  %v1446 = vpop.f32.mrb[0].mxu0
  %v1447 = vadd.f32 0.0, %v1446
  %1448 = vmatprep.mubr.bf16.mxu0 %v889
  %1449 = vmatmul.mubr.bf16.gmra.mrb[0].mxu0 %v888
  %v1450 = vpop.f32.mrb[0].mxu0
  %v1451 = vadd.f32 0.0, %v1450
  %v1452 = vpop.f32.mrb[0].mxu0
  %v1453 = vadd.f32 0.0, %v1452
  %v1454 = vpop.f32.mrb[0].mxu0
  %v1455 = vadd.f32 0.0, %v1454
  %v1456 = vpop.f32.mrb[0].mxu0
  %v1457 = vadd.f32 0.0, %v1456
  %1458 = vmatprep.mubr.bf16.mxu0 %v891
  %1459 = vmatmul.mubr.bf16.gmra.mrb[0].mxu0 %v890
  %v1460 = vpop.f32.mrb[0].mxu0
  %v1461 = vadd.f32 0.0, %v1460
  %v1462 = vpop.f32.mrb[0].mxu0
  %v1463 = vadd.f32 0.0, %v1462
  %v1464 = vpop.f32.mrb[0].mxu0
  %v1465 = vadd.f32 0.0, %v1464
  %v1466 = vpop.f32.mrb[0].mxu0
  %v1467 = vadd.f32 0.0, %v1466
  %1468 = vdwg.mxu0
  %1469 = vmatprep.subr.bf16.mxu0 %v1151
  %1470 = vmatpush1.bf16.msra.mxu0 %v1150
  %1471 = vmatprep.subr.bf16.mxu0 %v1155
  %1472 = vmatpush1.bf16.msra.mxu0 %v1154
  %1473 = vmatprep.subr.bf16.mxu0 %v1159
  %1474 = vmatpush1.bf16.msra.mxu0 %v1158
  %1475 = vmatprep.subr.bf16.mxu0 %v1163
  %1476 = vmatpush1.bf16.msra.mxu0 %v1162
  %1477 = vmatprep.subr.bf16.mxu0 %v1167
  %1478 = vmatpush1.bf16.msra.mxu0 %v1166
  %1479 = vmatprep.subr.bf16.mxu0 %v1171
  %1480 = vmatpush1.bf16.msra.mxu0 %v1170
  %1481 = vmatprep.subr.bf16.mxu0 %v1175
  %1482 = vmatpush1.bf16.msra.mxu0 %v1174
  %1483 = vmatprep.subr.bf16.mxu0 %v1179
  %1484 = vmatpush1.bf16.msra.mxu0 %v1178
  %1485 = vmatprep.subr.bf16.mxu0 %v1183
  %1486 = vmatpush1.bf16.msra.mxu0 %v1182
  %1487 = vmatprep.subr.bf16.mxu0 %v1187
  %1488 = vmatpush1.bf16.msra.mxu0 %v1186
  %1489 = vmatprep.subr.bf16.mxu0 %v1191
  %1490 = vmatpush1.bf16.msra.mxu0 %v1190
  %1491 = vmatprep.subr.bf16.mxu0 %v1195
  %1492 = vmatpush1.bf16.msra.mxu0 %v1194
  %1493 = vmatprep.subr.bf16.mxu0 %v1199
  %1494 = vmatpush1.bf16.msra.mxu0 %v1198
  %1495 = vmatprep.subr.bf16.mxu0 %v1203
  %1496 = vmatpush1.bf16.msra.mxu0 %v1202
  %1497 = vmatprep.subr.bf16.mxu0 %v1207
  %1498 = vmatpush1.bf16.msra.mxu0 %v1206
  %1499 = vmatprep.subr.bf16.mxu0 %v1211
  %1500 = vmatpush1.bf16.msra.mxu0 %v1210
  %1501 = vmatprep.mubr.bf16.mxu0 %v861
  %1502 = vmatmul.mubr.bf16.gmra.mrb[0].mxu0 %v860
  %v1503 = vpop.f32.mrb[0].mxu0
  %v1504 = vadd.f32 0.0, %v1503
  %v1505 = vpop.f32.mrb[0].mxu0
  %v1506 = vadd.f32 0.0, %v1505
  %v1507 = vpop.f32.mrb[0].mxu0
  %v1508 = vadd.f32 0.0, %v1507
  %v1509 = vpop.f32.mrb[0].mxu0
  %v1510 = vadd.f32 0.0, %v1509
  %1511 = vmatprep.mubr.bf16.mxu0 %v863
  %1512 = vmatmul.mubr.bf16.gmra.mrb[0].mxu0 %v862
  %v1513 = vpop.f32.mrb[0].mxu0
  %v1514 = vadd.f32 0.0, %v1513
  %v1515 = vpop.f32.mrb[0].mxu0
  %v1516 = vadd.f32 0.0, %v1515
  %v1517 = vpop.f32.mrb[0].mxu0
  %v1518 = vadd.f32 0.0, %v1517
  %v1519 = vpop.f32.mrb[0].mxu0
  %v1520 = vadd.f32 0.0, %v1519
  %1521 = vmatprep.mubr.bf16.mxu0 %v865
  %1522 = vmatmul.mubr.bf16.gmra.mrb[0].mxu0 %v864
  %v1523 = vpop.f32.mrb[0].mxu0
  %v1524 = vadd.f32 0.0, %v1523
  %v1525 = vpop.f32.mrb[0].mxu0
  %v1526 = vadd.f32 0.0, %v1525
  %v1527 = vpop.f32.mrb[0].mxu0
  %v1528 = vadd.f32 0.0, %v1527
  %v1529 = vpop.f32.mrb[0].mxu0
  %v1530 = vadd.f32 0.0, %v1529
  %1531 = vmatprep.mubr.bf16.mxu0 %v867
  %1532 = vmatmul.mubr.bf16.gmra.mrb[0].mxu0 %v866
  %v1533 = vpop.f32.mrb[0].mxu0
  %v1534 = vadd.f32 0.0, %v1533
  %v1535 = vpop.f32.mrb[0].mxu0
  %v1536 = vadd.f32 0.0, %v1535
  %v1537 = vpop.f32.mrb[0].mxu0
  %v1538 = vadd.f32 0.0, %v1537
  %v1539 = vpop.f32.mrb[0].mxu0
  %v1540 = vadd.f32 0.0, %v1539
  %1541 = vmatprep.mubr.bf16.mxu0 %v869
  %1542 = vmatmul.mubr.bf16.gmra.mrb[0].mxu0 %v868
  %v1543 = vpop.f32.mrb[0].mxu0
  %v1544 = vadd.f32 0.0, %v1543
  %v1545 = vpop.f32.mrb[0].mxu0
  %v1546 = vadd.f32 0.0, %v1545
  %v1547 = vpop.f32.mrb[0].mxu0
  %v1548 = vadd.f32 0.0, %v1547
  %v1549 = vpop.f32.mrb[0].mxu0
  %v1550 = vadd.f32 0.0, %v1549
  %1551 = vmatprep.mubr.bf16.mxu0 %v871
  %1552 = vmatmul.mubr.bf16.gmra.mrb[0].mxu0 %v870
  %v1553 = vpop.f32.mrb[0].mxu0
  %v1554 = vadd.f32 0.0, %v1553
  %v1555 = vpop.f32.mrb[0].mxu0
  %v1556 = vadd.f32 0.0, %v1555
  %v1557 = vpop.f32.mrb[0].mxu0
  %v1558 = vadd.f32 0.0, %v1557
  %v1559 = vpop.f32.mrb[0].mxu0
  %v1560 = vadd.f32 0.0, %v1559
  %1561 = vmatprep.mubr.bf16.mxu0 %v873
  %1562 = vmatmul.mubr.bf16.gmra.mrb[0].mxu0 %v872
  %v1563 = vpop.f32.mrb[0].mxu0
  %v1564 = vadd.f32 0.0, %v1563
  %v1565 = vpop.f32.mrb[0].mxu0
  %v1566 = vadd.f32 0.0, %v1565
  %v1567 = vpop.f32.mrb[0].mxu0
  %v1568 = vadd.f32 0.0, %v1567
  %v1569 = vpop.f32.mrb[0].mxu0
  %v1570 = vadd.f32 0.0, %v1569
  %1571 = vmatprep.mubr.bf16.mxu0 %v875
  %1572 = vmatmul.mubr.bf16.gmra.mrb[0].mxu0 %v874
  %v1573 = vpop.f32.mrb[0].mxu0
  %v1574 = vadd.f32 0.0, %v1573
  %v1575 = vpop.f32.mrb[0].mxu0
  %v1576 = vadd.f32 0.0, %v1575
  %v1577 = vpop.f32.mrb[0].mxu0
  %v1578 = vadd.f32 0.0, %v1577
  %v1579 = vpop.f32.mrb[0].mxu0
  %v1580 = vadd.f32 0.0, %v1579
  %1581 = vmatprep.mubr.bf16.mxu0 %v877
  %1582 = vmatmul.mubr.bf16.gmra.mrb[0].mxu0 %v876
  %v1583 = vpop.f32.mrb[0].mxu0
  %v1584 = vadd.f32 0.0, %v1583
  %v1585 = vpop.f32.mrb[0].mxu0
  %v1586 = vadd.f32 0.0, %v1585
  %v1587 = vpop.f32.mrb[0].mxu0
  %v1588 = vadd.f32 0.0, %v1587
  %v1589 = vpop.f32.mrb[0].mxu0
  %v1590 = vadd.f32 0.0, %v1589
  %1591 = vmatprep.mubr.bf16.mxu0 %v879
  %1592 = vmatmul.mubr.bf16.gmra.mrb[0].mxu0 %v878
  %v1593 = vpop.f32.mrb[0].mxu0
  %v1594 = vadd.f32 0.0, %v1593
  %v1595 = vpop.f32.mrb[0].mxu0
  %v1596 = vadd.f32 0.0, %v1595
  %v1597 = vpop.f32.mrb[0].mxu0
  %v1598 = vadd.f32 0.0, %v1597
  %v1599 = vpop.f32.mrb[0].mxu0
  %v1600 = vadd.f32 0.0, %v1599
  %1601 = vmatprep.mubr.bf16.mxu0 %v881
  %1602 = vmatmul.mubr.bf16.gmra.mrb[0].mxu0 %v880
  %v1603 = vpop.f32.mrb[0].mxu0
  %v1604 = vadd.f32 0.0, %v1603
  %v1605 = vpop.f32.mrb[0].mxu0
  %v1606 = vadd.f32 0.0, %v1605
  %v1607 = vpop.f32.mrb[0].mxu0
  %v1608 = vadd.f32 0.0, %v1607
  %v1609 = vpop.f32.mrb[0].mxu0
  %v1610 = vadd.f32 0.0, %v1609
  %1611 = vmatprep.mubr.bf16.mxu0 %v883
  %1612 = vmatmul.mubr.bf16.gmra.mrb[0].mxu0 %v882
  %v1613 = vpop.f32.mrb[0].mxu0
  %v1614 = vadd.f32 0.0, %v1613
  %v1615 = vpop.f32.mrb[0].mxu0
  %v1616 = vadd.f32 0.0, %v1615
  %v1617 = vpop.f32.mrb[0].mxu0
  %v1618 = vadd.f32 0.0, %v1617
  %v1619 = vpop.f32.mrb[0].mxu0
  %v1620 = vadd.f32 0.0, %v1619
  %1621 = vmatprep.mubr.bf16.mxu0 %v885
  %1622 = vmatmul.mubr.bf16.gmra.mrb[0].mxu0 %v884
  %v1623 = vpop.f32.mrb[0].mxu0
  %v1624 = vadd.f32 0.0, %v1623
  %v1625 = vpop.f32.mrb[0].mxu0
  %v1626 = vadd.f32 0.0, %v1625
  %v1627 = vpop.f32.mrb[0].mxu0
  %v1628 = vadd.f32 0.0, %v1627
  %v1629 = vpop.f32.mrb[0].mxu0
  %v1630 = vadd.f32 0.0, %v1629
  %1631 = vmatprep.mubr.bf16.mxu0 %v887
  %1632 = vmatmul.mubr.bf16.gmra.mrb[0].mxu0 %v886
  %v1633 = vpop.f32.mrb[0].mxu0
  %v1634 = vadd.f32 0.0, %v1633
  %v1635 = vpop.f32.mrb[0].mxu0
  %v1636 = vadd.f32 0.0, %v1635
  %v1637 = vpop.f32.mrb[0].mxu0
  %v1638 = vadd.f32 0.0, %v1637
  %v1639 = vpop.f32.mrb[0].mxu0
  %v1640 = vadd.f32 0.0, %v1639
  %1641 = vmatprep.mubr.bf16.mxu0 %v889
  %1642 = vmatmul.mubr.bf16.gmra.mrb[0].mxu0 %v888
  %v1643 = vpop.f32.mrb[0].mxu0
  %v1644 = vadd.f32 0.0, %v1643
  %v1645 = vpop.f32.mrb[0].mxu0
  %v1646 = vadd.f32 0.0, %v1645
  %v1647 = vpop.f32.mrb[0].mxu0
  %v1648 = vadd.f32 0.0, %v1647
  %v1649 = vpop.f32.mrb[0].mxu0
  %v1650 = vadd.f32 0.0, %v1649
  %1651 = vmatprep.mubr.bf16.mxu0 %v891
  %1652 = vmatmul.mubr.bf16.gmra.mrb[0].mxu0 %v890
  %v1653 = vpop.f32.mrb[0].mxu0
  %v1654 = vadd.f32 0.0, %v1653
  %v1655 = vpop.f32.mrb[0].mxu0
  %v1656 = vadd.f32 0.0, %v1655
  %v1657 = vpop.f32.mrb[0].mxu0
  %v1658 = vadd.f32 0.0, %v1657
  %v1659 = vpop.f32.mrb[0].mxu0
  %v1660 = vadd.f32 0.0, %v1659
  %1661 = vdwg.mxu0
  %v1662 = vpack.c.bf16 %v724, %v724
  %v1663 = vpack.c.bf16 %v733, %v733
  %v1664 = vpack.c.bf16 %v742, %v742
  %v1665 = vpack.c.bf16 %v751, %v751
  %v1666 = vpack.c.bf16 %v760, %v760
  %v1667 = vpack.c.bf16 %v769, %v769
  %v1668 = vpack.c.bf16 %v778, %v778
  %v1669 = vpack.c.bf16 %v787, %v787
  %v1670 = vpack.c.bf16 %v796, %v796
  %v1671 = vpack.c.bf16 %v805, %v805
  %v1672 = vpack.c.bf16 %v814, %v814
  %v1673 = vpack.c.bf16 %v823, %v823
  %v1674 = vpack.c.bf16 %v832, %v832
  %v1675 = vpack.c.bf16 %v841, %v841
  %v1676 = vpack.c.bf16 %v850, %v850
  %v1677 = vpack.c.bf16 %v859, %v859
  %v1678 = vld [vmem:[%s6] sm:$0xff]
  %v1679 = vld [vmem:[%s6 + $0x8] sm:$0xff]
  %v1680 = vld [vmem:[%s6 + $0x10] sm:$0xff]
  %v1681 = vld [vmem:[%s6 + $0x18] sm:$0xff]
  %v1682 = vld [vmem:[%s6 + $0x20] sm:$0xff]
  %v1683 = vld [vmem:[%s6 + $0x28] sm:$0xff]
  %v1684 = vld [vmem:[%s6 + $0x30] sm:$0xff]
  %v1685 = vld [vmem:[%s6 + $0x38] sm:$0xff]
  %v1686 = vld [vmem:[%s6 + $0x40] sm:$0xff]
  %v1687 = vld [vmem:[%s6 + $0x48] sm:$0xff]
  %v1688 = vld [vmem:[%s6 + $0x50] sm:$0xff]
  %v1689 = vld [vmem:[%s6 + $0x58] sm:$0xff]
  %v1690 = vld [vmem:[%s6 + $0x60] sm:$0xff]
  %v1691 = vld [vmem:[%s6 + $0x68] sm:$0xff]
  %v1692 = vld [vmem:[%s6 + $0x70] sm:$0xff]
  %v1693 = vld [vmem:[%s6 + $0x78] sm:$0xff]
  %v1694 = vld [vmem:[%s6 + $0x80] sm:$0xff]
  %v1695 = vld [vmem:[%s6 + $0x88] sm:$0xff]
  %v1696 = vld [vmem:[%s6 + $0x90] sm:$0xff]
  %v1697 = vld [vmem:[%s6 + $0x98] sm:$0xff]
  %v1698 = vld [vmem:[%s6 + $0xa0] sm:$0xff]
  %v1699 = vld [vmem:[%s6 + $0xa8] sm:$0xff]
  %v1700 = vld [vmem:[%s6 + $0xb0] sm:$0xff]
  %v1701 = vld [vmem:[%s6 + $0xb8] sm:$0xff]
  %v1702 = vld [vmem:[%s6 + $0xc0] sm:$0xff]
  %v1703 = vld [vmem:[%s6 + $0xc8] sm:$0xff]
  %v1704 = vld [vmem:[%s6 + $0xd0] sm:$0xff]
  %v1705 = vld [vmem:[%s6 + $0xd8] sm:$0xff]
  %v1706 = vld [vmem:[%s6 + $0xe0] sm:$0xff]
  %v1707 = vld [vmem:[%s6 + $0xe8] sm:$0xff]
  %v1708 = vld [vmem:[%s6 + $0xf0] sm:$0xff]
  %v1709 = vld [vmem:[%s6 + $0xf8] sm:$0xff]
  %v1710 = vld [vmem:[%s6 + $0x100] sm:$0xff]
  %v1711 = vld [vmem:[%s6 + $0x108] sm:$0xff]
  %v1712 = vld [vmem:[%s6 + $0x110] sm:$0xff]
  %v1713 = vld [vmem:[%s6 + $0x118] sm:$0xff]
  %v1714 = vld [vmem:[%s6 + $0x120] sm:$0xff]
  %v1715 = vld [vmem:[%s6 + $0x128] sm:$0xff]
  %v1716 = vld [vmem:[%s6 + $0x130] sm:$0xff]
  %v1717 = vld [vmem:[%s6 + $0x138] sm:$0xff]
  %v1718 = vld [vmem:[%s6 + $0x140] sm:$0xff]
  %v1719 = vld [vmem:[%s6 + $0x148] sm:$0xff]
  %v1720 = vld [vmem:[%s6 + $0x150] sm:$0xff]
  %v1721 = vld [vmem:[%s6 + $0x158] sm:$0xff]
  %v1722 = vld [vmem:[%s6 + $0x160] sm:$0xff]
  %v1723 = vld [vmem:[%s6 + $0x168] sm:$0xff]
  %v1724 = vld [vmem:[%s6 + $0x170] sm:$0xff]
  %v1725 = vld [vmem:[%s6 + $0x178] sm:$0xff]
  %v1726 = vld [vmem:[%s6 + $0x180] sm:$0xff]
  %v1727 = vld [vmem:[%s6 + $0x188] sm:$0xff]
  %v1728 = vld [vmem:[%s6 + $0x190] sm:$0xff]
  %v1729 = vld [vmem:[%s6 + $0x198] sm:$0xff]
  %v1730 = vld [vmem:[%s6 + $0x1a0] sm:$0xff]
  %v1731 = vld [vmem:[%s6 + $0x1a8] sm:$0xff]
  %v1732 = vld [vmem:[%s6 + $0x1b0] sm:$0xff]
  %v1733 = vld [vmem:[%s6 + $0x1b8] sm:$0xff]
  %v1734 = vld [vmem:[%s6 + $0x1c0] sm:$0xff]
  %v1735 = vld [vmem:[%s6 + $0x1c8] sm:$0xff]
  %v1736 = vld [vmem:[%s6 + $0x1d0] sm:$0xff]
  %v1737 = vld [vmem:[%s6 + $0x1d8] sm:$0xff]
  %v1738 = vld [vmem:[%s6 + $0x1e0] sm:$0xff]
  %v1739 = vld [vmem:[%s6 + $0x1e8] sm:$0xff]
  %v1740 = vld [vmem:[%s6 + $0x1f0] sm:$0xff]
  %v1741 = vld [vmem:[%s6 + $0x1f8] sm:$0xff]
  %v1758 = vunpack.c.l.b16 %v1662
  %v1759 = vunpack.c.l.b16 %v1663
  %v1760 = vunpack.c.l.b16 %v1664
  %v1761 = vunpack.c.l.b16 %v1665
  %v1762 = vunpack.c.l.b16 %v1666
  %v1763 = vunpack.c.l.b16 %v1667
  %v1764 = vunpack.c.l.b16 %v1668
  %v1765 = vunpack.c.l.b16 %v1669
  %v1766 = vunpack.c.l.b16 %v1670
  %v1767 = vunpack.c.l.b16 %v1671
  %v1768 = vunpack.c.l.b16 %v1672
  %v1769 = vunpack.c.l.b16 %v1673
  %v1770 = vunpack.c.l.b16 %v1674
  %v1771 = vunpack.c.l.b16 %v1675
  %v1772 = vunpack.c.l.b16 %v1676
  %v1773 = vunpack.c.l.b16 %v1677
  %vm1774 = vcmask 1041409
  %v1775 = vsel %vm1774, %v1760, %v1758
  %vm1776 = vcmask 1042434
  %v1777 = vsel %vm1776, %v1762, %v1775
  %vm1778 = vcmask 1043459
  %v1779 = vsel %vm1778, %v1764, %v1777
  %vm1780 = vcmask 1044484
  %v1781 = vsel %vm1780, %v1766, %v1779
  %vm1782 = vcmask 1045509
  %v1783 = vsel %vm1782, %v1768, %v1781
  %vm1784 = vcmask 1046534
  %v1785 = vsel %vm1784, %v1770, %v1783
  %vm1786 = vcmask 1047559
  %v1787 = vsel %vm1786, %v1772, %v1785
  %v1788 = vsel %vm1774, %v1761, %v1759
  %v1789 = vsel %vm1776, %v1763, %v1788
  %v1790 = vsel %vm1778, %v1765, %v1789
  %v1791 = vsel %vm1780, %v1767, %v1790
  %v1792 = vsel %vm1782, %v1769, %v1791
  %v1793 = vsel %vm1784, %v1771, %v1792
  %v1794 = vsel %vm1786, %v1773, %v1793
  %v1795 = vpack.c.b16 %v1787, %v1787
  %v1796 = vpack.c.b16 %v1794, %v1794
  %v1863 = vunpack.c.l.b16 %v1678
  %v1864 = vunpack.c.h.b16 %v1678
  %v1865 = vunpack.c.l.b16 %v1679
  %v1866 = vunpack.c.h.b16 %v1679
  %v1867 = vunpack.c.l.b16 %v1680
  %v1868 = vunpack.c.h.b16 %v1680
  %v1869 = vunpack.c.l.b16 %v1681
  %v1870 = vunpack.c.h.b16 %v1681
  %v1871 = vunpack.c.l.b16 %v1682
  %v1872 = vunpack.c.h.b16 %v1682
  %v1873 = vunpack.c.l.b16 %v1683
  %v1874 = vunpack.c.h.b16 %v1683
  %v1875 = vunpack.c.l.b16 %v1684
  %v1876 = vunpack.c.h.b16 %v1684
  %v1877 = vunpack.c.l.b16 %v1685
  %v1878 = vunpack.c.h.b16 %v1685
  %v1879 = vunpack.c.l.b16 %v1686
  %v1880 = vunpack.c.h.b16 %v1686
  %v1881 = vunpack.c.l.b16 %v1687
  %v1882 = vunpack.c.h.b16 %v1687
  %v1883 = vunpack.c.l.b16 %v1688
  %v1884 = vunpack.c.h.b16 %v1688
  %v1885 = vunpack.c.l.b16 %v1689
  %v1886 = vunpack.c.h.b16 %v1689
  %v1887 = vunpack.c.l.b16 %v1690
  %v1888 = vunpack.c.h.b16 %v1690
  %v1889 = vunpack.c.l.b16 %v1691
  %v1890 = vunpack.c.h.b16 %v1691
  %v1891 = vunpack.c.l.b16 %v1692
  %v1892 = vunpack.c.h.b16 %v1692
  %v1893 = vunpack.c.l.b16 %v1693
  %v1894 = vunpack.c.h.b16 %v1693
  %v1895 = vunpack.c.l.b16 %v1694
  %v1896 = vunpack.c.h.b16 %v1694
  %v1897 = vunpack.c.l.b16 %v1695
  %v1898 = vunpack.c.h.b16 %v1695
  %v1899 = vunpack.c.l.b16 %v1696
  %v1900 = vunpack.c.h.b16 %v1696
  %v1901 = vunpack.c.l.b16 %v1697
  %v1902 = vunpack.c.h.b16 %v1697
  %v1903 = vunpack.c.l.b16 %v1698
  %v1904 = vunpack.c.h.b16 %v1698
  %v1905 = vunpack.c.l.b16 %v1699
  %v1906 = vunpack.c.h.b16 %v1699
  %v1907 = vunpack.c.l.b16 %v1700
  %v1908 = vunpack.c.h.b16 %v1700
  %v1909 = vunpack.c.l.b16 %v1701
  %v1910 = vunpack.c.h.b16 %v1701
  %v1911 = vunpack.c.l.b16 %v1702
  %v1912 = vunpack.c.h.b16 %v1702
  %v1913 = vunpack.c.l.b16 %v1703
  %v1914 = vunpack.c.h.b16 %v1703
  %v1915 = vunpack.c.l.b16 %v1704
  %v1916 = vunpack.c.h.b16 %v1704
  %v1917 = vunpack.c.l.b16 %v1705
  %v1918 = vunpack.c.h.b16 %v1705
  %v1919 = vunpack.c.l.b16 %v1706
  %v1920 = vunpack.c.h.b16 %v1706
  %v1921 = vunpack.c.l.b16 %v1707
  %v1922 = vunpack.c.h.b16 %v1707
  %v1923 = vunpack.c.l.b16 %v1708
  %v1924 = vunpack.c.h.b16 %v1708
  %v1925 = vunpack.c.l.b16 %v1709
  %v1926 = vunpack.c.h.b16 %v1709
  %v1927 = vunpack.c.l.b16 %v1710
  %v1928 = vunpack.c.h.b16 %v1710
  %v1929 = vunpack.c.l.b16 %v1711
  %v1930 = vunpack.c.h.b16 %v1711
  %v1931 = vunpack.c.l.b16 %v1712
  %v1932 = vunpack.c.h.b16 %v1712
  %v1933 = vunpack.c.l.b16 %v1713
  %v1934 = vunpack.c.h.b16 %v1713
  %v1935 = vunpack.c.l.b16 %v1714
  %v1936 = vunpack.c.h.b16 %v1714
  %v1937 = vunpack.c.l.b16 %v1715
  %v1938 = vunpack.c.h.b16 %v1715
  %v1939 = vunpack.c.l.b16 %v1716
  %v1940 = vunpack.c.h.b16 %v1716
  %v1941 = vunpack.c.l.b16 %v1717
  %v1942 = vunpack.c.h.b16 %v1717
  %v1943 = vunpack.c.l.b16 %v1718
  %v1944 = vunpack.c.h.b16 %v1718
  %v1945 = vunpack.c.l.b16 %v1719
  %v1946 = vunpack.c.h.b16 %v1719
  %v1947 = vunpack.c.l.b16 %v1720
  %v1948 = vunpack.c.h.b16 %v1720
  %v1949 = vunpack.c.l.b16 %v1721
  %v1950 = vunpack.c.h.b16 %v1721
  %v1951 = vunpack.c.l.b16 %v1722
  %v1952 = vunpack.c.h.b16 %v1722
  %v1953 = vunpack.c.l.b16 %v1723
  %v1954 = vunpack.c.h.b16 %v1723
  %v1955 = vunpack.c.l.b16 %v1724
  %v1956 = vunpack.c.h.b16 %v1724
  %v1957 = vunpack.c.l.b16 %v1725
  %v1958 = vunpack.c.h.b16 %v1725
  %v1959 = vunpack.c.l.b16 %v1726
  %v1960 = vunpack.c.h.b16 %v1726
  %v1961 = vunpack.c.l.b16 %v1727
  %v1962 = vunpack.c.h.b16 %v1727
  %v1963 = vunpack.c.l.b16 %v1728
  %v1964 = vunpack.c.h.b16 %v1728
  %v1965 = vunpack.c.l.b16 %v1729
  %v1966 = vunpack.c.h.b16 %v1729
  %v1967 = vunpack.c.l.b16 %v1730
  %v1968 = vunpack.c.h.b16 %v1730
  %v1969 = vunpack.c.l.b16 %v1731
  %v1970 = vunpack.c.h.b16 %v1731
  %v1971 = vunpack.c.l.b16 %v1732
  %v1972 = vunpack.c.h.b16 %v1732
  %v1973 = vunpack.c.l.b16 %v1733
  %v1974 = vunpack.c.h.b16 %v1733
  %v1975 = vunpack.c.l.b16 %v1734
  %v1976 = vunpack.c.h.b16 %v1734
  %v1977 = vunpack.c.l.b16 %v1735
  %v1978 = vunpack.c.h.b16 %v1735
  %v1979 = vunpack.c.l.b16 %v1736
  %v1980 = vunpack.c.h.b16 %v1736
  %v1981 = vunpack.c.l.b16 %v1737
  %v1982 = vunpack.c.h.b16 %v1737
  %v1983 = vunpack.c.l.b16 %v1738
  %v1984 = vunpack.c.h.b16 %v1738
  %v1985 = vunpack.c.l.b16 %v1739
  %v1986 = vunpack.c.h.b16 %v1739
  %v1987 = vunpack.c.l.b16 %v1740
  %v1988 = vunpack.c.h.b16 %v1740
  %v1989 = vunpack.c.l.b16 %v1741
  %v1990 = vunpack.c.h.b16 %v1741
  %v1991 = vpack.c.b16 %v1867, %v1863
  %v1992 = vpack.c.b16 %v1868, %v1864
  %v1993 = vpack.c.b16 %v1869, %v1865
  %v1994 = vpack.c.b16 %v1870, %v1866
  %v1995 = vpack.c.b16 %v1875, %v1871
  %v1996 = vpack.c.b16 %v1876, %v1872
  %v1997 = vpack.c.b16 %v1877, %v1873
  %v1998 = vpack.c.b16 %v1878, %v1874
  %v1999 = vpack.c.b16 %v1883, %v1879
  %v2000 = vpack.c.b16 %v1884, %v1880
  %v2001 = vpack.c.b16 %v1885, %v1881
  %v2002 = vpack.c.b16 %v1886, %v1882
  %v2003 = vpack.c.b16 %v1891, %v1887
  %v2004 = vpack.c.b16 %v1892, %v1888
  %v2005 = vpack.c.b16 %v1893, %v1889
  %v2006 = vpack.c.b16 %v1894, %v1890
  %v2007 = vpack.c.b16 %v1899, %v1895
  %v2008 = vpack.c.b16 %v1900, %v1896
  %v2009 = vpack.c.b16 %v1901, %v1897
  %v2010 = vpack.c.b16 %v1902, %v1898
  %v2011 = vpack.c.b16 %v1907, %v1903
  %v2012 = vpack.c.b16 %v1908, %v1904
  %v2013 = vpack.c.b16 %v1909, %v1905
  %v2014 = vpack.c.b16 %v1910, %v1906
  %v2015 = vpack.c.b16 %v1915, %v1911
  %v2016 = vpack.c.b16 %v1916, %v1912
  %v2017 = vpack.c.b16 %v1917, %v1913
  %v2018 = vpack.c.b16 %v1918, %v1914
  %v2019 = vpack.c.b16 %v1923, %v1919
  %v2020 = vpack.c.b16 %v1924, %v1920
  %v2021 = vpack.c.b16 %v1925, %v1921
  %v2022 = vpack.c.b16 %v1926, %v1922
  %v2023 = vpack.c.b16 %v1931, %v1927
  %v2024 = vpack.c.b16 %v1932, %v1928
  %v2025 = vpack.c.b16 %v1933, %v1929
  %v2026 = vpack.c.b16 %v1934, %v1930
  %v2027 = vpack.c.b16 %v1939, %v1935
  %v2028 = vpack.c.b16 %v1940, %v1936
  %v2029 = vpack.c.b16 %v1941, %v1937
  %v2030 = vpack.c.b16 %v1942, %v1938
  %v2031 = vpack.c.b16 %v1947, %v1943
  %v2032 = vpack.c.b16 %v1948, %v1944
  %v2033 = vpack.c.b16 %v1949, %v1945
  %v2034 = vpack.c.b16 %v1950, %v1946
  %v2035 = vpack.c.b16 %v1955, %v1951
  %v2036 = vpack.c.b16 %v1956, %v1952
  %v2037 = vpack.c.b16 %v1957, %v1953
  %v2038 = vpack.c.b16 %v1958, %v1954
  %v2039 = vpack.c.b16 %v1963, %v1959
  %v2040 = vpack.c.b16 %v1964, %v1960
  %v2041 = vpack.c.b16 %v1965, %v1961
  %v2042 = vpack.c.b16 %v1966, %v1962
  %v2043 = vpack.c.b16 %v1971, %v1967
  %v2044 = vpack.c.b16 %v1972, %v1968
  %v2045 = vpack.c.b16 %v1973, %v1969
  %v2046 = vpack.c.b16 %v1974, %v1970
  %v2047 = vpack.c.b16 %v1979, %v1975
  %v2048 = vpack.c.b16 %v1980, %v1976
  %v2049 = vpack.c.b16 %v1981, %v1977
  %v2050 = vpack.c.b16 %v1982, %v1978
  %v2051 = vpack.c.b16 %v1987, %v1983
  %v2052 = vpack.c.b16 %v1988, %v1984
  %v2053 = vpack.c.b16 %v1989, %v1985
  %v2054 = vpack.c.b16 %v1990, %v1986
  %2119 = vmatprep.subr.bf16.mxu0 %v1992
  %2120 = vmatpush1.bf16.msra.mxu0 %v1991
  %2121 = vmatprep.subr.bf16.mxu0 %v1996
  %2122 = vmatpush1.bf16.msra.mxu0 %v1995
  %2123 = vmatprep.subr.bf16.mxu0 %v2000
  %2124 = vmatpush1.bf16.msra.mxu0 %v1999
  %2125 = vmatprep.subr.bf16.mxu0 %v2004
  %2126 = vmatpush1.bf16.msra.mxu0 %v2003
  %2127 = vmatprep.subr.bf16.mxu0 %v2008
  %2128 = vmatpush1.bf16.msra.mxu0 %v2007
  %2129 = vmatprep.subr.bf16.mxu0 %v2012
  %2130 = vmatpush1.bf16.msra.mxu0 %v2011
  %2131 = vmatprep.subr.bf16.mxu0 %v2016
  %2132 = vmatpush1.bf16.msra.mxu0 %v2015
  %2133 = vmatprep.subr.bf16.mxu0 %v2020
  %2134 = vmatpush1.bf16.msra.mxu0 %v2019
  %2135 = vmatprep.subr.bf16.mxu0 %v2024
  %2136 = vmatpush1.bf16.msra.mxu0 %v2023
  %2137 = vmatprep.subr.bf16.mxu0 %v2028
  %2138 = vmatpush1.bf16.msra.mxu0 %v2027
  %2139 = vmatprep.subr.bf16.mxu0 %v2032
  %2140 = vmatpush1.bf16.msra.mxu0 %v2031
  %2141 = vmatprep.subr.bf16.mxu0 %v2036
  %2142 = vmatpush1.bf16.msra.mxu0 %v2035
  %2143 = vmatprep.subr.bf16.mxu0 %v2040
  %2144 = vmatpush1.bf16.msra.mxu0 %v2039
  %2145 = vmatprep.subr.bf16.mxu0 %v2044
  %2146 = vmatpush1.bf16.msra.mxu0 %v2043
  %2147 = vmatprep.subr.bf16.mxu0 %v2048
  %2148 = vmatpush1.bf16.msra.mxu0 %v2047
  %2149 = vmatprep.subr.bf16.mxu0 %v2052
  %2150 = vmatpush1.bf16.msra.mxu0 %v2051
  %2151 = vmatprep.mubr.bf16.mxu0 %v1796
  %2152 = vmatmul.mubr.bf16.gmra.mrb[0].mxu0 %v1795
  %v2153 = vpop.f32.mrb[0].mxu0
  %v2154 = vadd.f32 0.0, %v2153
  %v2155 = vpop.f32.mrb[0].mxu0
  %v2156 = vadd.f32 0.0, %v2155
  %v2157 = vpop.f32.mrb[0].mxu0
  %v2158 = vpop.f32.mrb[0].mxu0
  %2159 = vdwg.mxu0
  %2160 = vmatprep.subr.bf16.mxu0 %v1994
  %2161 = vmatpush1.bf16.msra.mxu0 %v1993
  %2162 = vmatprep.subr.bf16.mxu0 %v1998
  %2163 = vmatpush1.bf16.msra.mxu0 %v1997
  %2164 = vmatprep.subr.bf16.mxu0 %v2002
  %2165 = vmatpush1.bf16.msra.mxu0 %v2001
  %2166 = vmatprep.subr.bf16.mxu0 %v2006
  %2167 = vmatpush1.bf16.msra.mxu0 %v2005
  %2168 = vmatprep.subr.bf16.mxu0 %v2010
  %2169 = vmatpush1.bf16.msra.mxu0 %v2009
  %2170 = vmatprep.subr.bf16.mxu0 %v2014
  %2171 = vmatpush1.bf16.msra.mxu0 %v2013
  %2172 = vmatprep.subr.bf16.mxu0 %v2018
  %2173 = vmatpush1.bf16.msra.mxu0 %v2017
  %2174 = vmatprep.subr.bf16.mxu0 %v2022
  %2175 = vmatpush1.bf16.msra.mxu0 %v2021
  %2176 = vmatprep.subr.bf16.mxu0 %v2026
  %2177 = vmatpush1.bf16.msra.mxu0 %v2025
  %2178 = vmatprep.subr.bf16.mxu0 %v2030
  %2179 = vmatpush1.bf16.msra.mxu0 %v2029
  %2180 = vmatprep.subr.bf16.mxu0 %v2034
  %2181 = vmatpush1.bf16.msra.mxu0 %v2033
  %2182 = vmatprep.subr.bf16.mxu0 %v2038
  %2183 = vmatpush1.bf16.msra.mxu0 %v2037
  %2184 = vmatprep.subr.bf16.mxu0 %v2042
  %2185 = vmatpush1.bf16.msra.mxu0 %v2041
  %2186 = vmatprep.subr.bf16.mxu0 %v2046
  %2187 = vmatpush1.bf16.msra.mxu0 %v2045
  %2188 = vmatprep.subr.bf16.mxu0 %v2050
  %2189 = vmatpush1.bf16.msra.mxu0 %v2049
  %2190 = vmatprep.subr.bf16.mxu0 %v2054
  %2191 = vmatpush1.bf16.msra.mxu0 %v2053
  %2192 = vmatprep.mubr.bf16.mxu0 %v1796
  %2193 = vmatmul.mubr.bf16.gmra.mrb[0].mxu0 %v1795
  %v2194 = vpop.f32.mrb[0].mxu0
  %v2195 = vadd.f32 0.0, %v2194
  %v2196 = vpop.f32.mrb[0].mxu0
  %v2197 = vadd.f32 0.0, %v2196
  %v2198 = vpop.f32.mrb[0].mxu0
  %v2199 = vpop.f32.mrb[0].mxu0
  %2200 = vdwg.mxu0
  %v2205 = vcombine.low %v2154, %v2156
  %v2206 = vcombine.high %v2154, %v2156
  %v2207 = vcombine.low %v2195, %v2197
  %v2208 = vcombine.high %v2195, %v2197
  %v2210 = vunpack.c.l.s4 1966171168
  %v2211 = vunpack.c.0.s8 %v2210
  %v2212 = vlaneseq
  %v2213 = vshrl.u32 %v2212, 7
  %v2214 = vsub.s32 %v2211, %v2213
  %v2215 = vrot.slane %v2205, %v2214
  %v2217 = vunpack.c.l.s4 1966171168
  %v2218 = vunpack.c.0.s8 %v2217
  %v2219 = vlaneseq
  %v2220 = vshrl.u32 %v2219, 7
  %v2221 = vsub.s32 %v2218, %v2220
  %v2222 = vrot.slane %v2206, %v2221
  %v2224 = vunpack.c.l.s4 1966171168
  %v2225 = vunpack.c.0.s8 %v2224
  %v2226 = vlaneseq
  %v2227 = vshrl.u32 %v2226, 7
  %v2228 = vsub.s32 %v2225, %v2227
  %v2229 = vrot.slane %v2207, %v2228
  %v2231 = vunpack.c.l.s4 1966171168
  %v2232 = vunpack.c.0.s8 %v2231
  %v2233 = vlaneseq
  %v2234 = vshrl.u32 %v2233, 7
  %v2235 = vsub.s32 %v2232, %v2234
  %v2236 = vrot.slane %v2208, %v2235
  %v2237 = vcombine.low %v2215, %v2229
  %v2238 = vcombine.high %v2215, %v2229
  %v2239 = vcombine.low %v2222, %v2236
  %v2240 = vcombine.high %v2222, %v2236
  %v2242 = vunpack.c.l.s4 1966171168
  %v2243 = vunpack.c.0.s8 %v2242
  %v2244 = vlaneseq
  %v2245 = vshrl.u32 %v2244, 7
  %v2246 = vsub.s32 %v2243, %v2245
  %v2247 = vrot.slane %v2237, %v2246
  %v2249 = vunpack.c.l.s4 1966171168
  %v2250 = vunpack.c.0.s8 %v2249
  %v2251 = vlaneseq
  %v2252 = vshrl.u32 %v2251, 7
  %v2253 = vsub.s32 %v2250, %v2252
  %v2254 = vrot.slane %v2239, %v2253
  %v2256 = vunpack.c.l.s4 1966171168
  %v2257 = vunpack.c.0.s8 %v2256
  %v2258 = vlaneseq
  %v2259 = vshrl.u32 %v2258, 7
  %v2260 = vsub.s32 %v2257, %v2259
  %v2261 = vrot.slane %v2238, %v2260
  %v2263 = vunpack.c.l.s4 1966171168
  %v2264 = vunpack.c.0.s8 %v2263
  %v2265 = vlaneseq
  %v2266 = vshrl.u32 %v2265, 7
  %v2267 = vsub.s32 %v2264, %v2266
  %v2268 = vrot.slane %v2240, %v2267
  %v2269 = vcombine.high %v2247, %v2247
  %v2270 = vcombine.high %v2254, %v2254
  %v2271 = vcombine.high %v2261, %v2261
  %v2272 = vcombine.high %v2268, %v2268
  %v2273 = vlaneseq
  %v2274 = vshrl.u32 %v2273, 7
  %v2275 = vsub.s32 0, %v2274
  %v2276 = vrot.slane %v2247, %v2275
  %v2277 = vlaneseq
  %v2278 = vshrl.u32 %v2277, 7
  %v2279 = vsub.s32 1, %v2278
  %v2280 = vrot.slane %v2247, %v2279
  %v2281 = vlaneseq
  %v2282 = vshrl.u32 %v2281, 7
  %v2283 = vsub.s32 2, %v2282
  %v2284 = vrot.slane %v2247, %v2283
  %v2285 = vlaneseq
  %v2286 = vshrl.u32 %v2285, 7
  %v2287 = vsub.s32 3, %v2286
  %v2288 = vrot.slane %v2247, %v2287
  %v2289 = vlaneseq
  %v2290 = vshrl.u32 %v2289, 7
  %v2291 = vsub.s32 0, %v2290
  %v2292 = vrot.slane %v2261, %v2291
  %v2293 = vlaneseq
  %v2294 = vshrl.u32 %v2293, 7
  %v2295 = vsub.s32 1, %v2294
  %v2296 = vrot.slane %v2261, %v2295
  %v2297 = vlaneseq
  %v2298 = vshrl.u32 %v2297, 7
  %v2299 = vsub.s32 2, %v2298
  %v2300 = vrot.slane %v2261, %v2299
  %v2301 = vlaneseq
  %v2302 = vshrl.u32 %v2301, 7
  %v2303 = vsub.s32 3, %v2302
  %v2304 = vrot.slane %v2261, %v2303
  %v2305 = vlaneseq
  %v2306 = vshrl.u32 %v2305, 7
  %v2307 = vsub.s32 0, %v2306
  %v2308 = vrot.slane %v2269, %v2307
  %v2309 = vlaneseq
  %v2310 = vshrl.u32 %v2309, 7
  %v2311 = vsub.s32 1, %v2310
  %v2312 = vrot.slane %v2269, %v2311
  %v2313 = vlaneseq
  %v2314 = vshrl.u32 %v2313, 7
  %v2315 = vsub.s32 2, %v2314
  %v2316 = vrot.slane %v2269, %v2315
  %v2317 = vlaneseq
  %v2318 = vshrl.u32 %v2317, 7
  %v2319 = vsub.s32 3, %v2318
  %v2320 = vrot.slane %v2269, %v2319
  %v2321 = vlaneseq
  %v2322 = vshrl.u32 %v2321, 7
  %v2323 = vsub.s32 0, %v2322
  %v2324 = vrot.slane %v2271, %v2323
  %v2325 = vlaneseq
  %v2326 = vshrl.u32 %v2325, 7
  %v2327 = vsub.s32 1, %v2326
  %v2328 = vrot.slane %v2271, %v2327
  %v2329 = vlaneseq
  %v2330 = vshrl.u32 %v2329, 7
  %v2331 = vsub.s32 2, %v2330
  %v2332 = vrot.slane %v2271, %v2331
  %v2333 = vlaneseq
  %v2334 = vshrl.u32 %v2333, 7
  %v2335 = vsub.s32 3, %v2334
  %v2336 = vrot.slane %v2271, %v2335
  %v2337 = vlaneseq
  %v2338 = vshrl.u32 %v2337, 7
  %v2339 = vsub.s32 0, %v2338
  %v2340 = vrot.slane %v2254, %v2339
  %v2341 = vlaneseq
  %v2342 = vshrl.u32 %v2341, 7
  %v2343 = vsub.s32 1, %v2342
  %v2344 = vrot.slane %v2254, %v2343
  %v2345 = vlaneseq
  %v2346 = vshrl.u32 %v2345, 7
  %v2347 = vsub.s32 2, %v2346
  %v2348 = vrot.slane %v2254, %v2347
  %v2349 = vlaneseq
  %v2350 = vshrl.u32 %v2349, 7
  %v2351 = vsub.s32 3, %v2350
  %v2352 = vrot.slane %v2254, %v2351
  %v2353 = vlaneseq
  %v2354 = vshrl.u32 %v2353, 7
  %v2355 = vsub.s32 0, %v2354
  %v2356 = vrot.slane %v2268, %v2355
  %v2357 = vlaneseq
  %v2358 = vshrl.u32 %v2357, 7
  %v2359 = vsub.s32 1, %v2358
  %v2360 = vrot.slane %v2268, %v2359
  %v2361 = vlaneseq
  %v2362 = vshrl.u32 %v2361, 7
  %v2363 = vsub.s32 2, %v2362
  %v2364 = vrot.slane %v2268, %v2363
  %v2365 = vlaneseq
  %v2366 = vshrl.u32 %v2365, 7
  %v2367 = vsub.s32 3, %v2366
  %v2368 = vrot.slane %v2268, %v2367
  %v2369 = vlaneseq
  %v2370 = vshrl.u32 %v2369, 7
  %v2371 = vsub.s32 0, %v2370
  %v2372 = vrot.slane %v2270, %v2371
  %v2373 = vlaneseq
  %v2374 = vshrl.u32 %v2373, 7
  %v2375 = vsub.s32 1, %v2374
  %v2376 = vrot.slane %v2270, %v2375
  %v2377 = vlaneseq
  %v2378 = vshrl.u32 %v2377, 7
  %v2379 = vsub.s32 2, %v2378
  %v2380 = vrot.slane %v2270, %v2379
  %v2381 = vlaneseq
  %v2382 = vshrl.u32 %v2381, 7
  %v2383 = vsub.s32 3, %v2382
  %v2384 = vrot.slane %v2270, %v2383
  %v2385 = vlaneseq
  %v2386 = vshrl.u32 %v2385, 7
  %v2387 = vsub.s32 0, %v2386
  %v2388 = vrot.slane %v2272, %v2387
  %v2389 = vlaneseq
  %v2390 = vshrl.u32 %v2389, 7
  %v2391 = vsub.s32 1, %v2390
  %v2392 = vrot.slane %v2272, %v2391
  %v2393 = vlaneseq
  %v2394 = vshrl.u32 %v2393, 7
  %v2395 = vsub.s32 2, %v2394
  %v2396 = vrot.slane %v2272, %v2395
  %v2397 = vlaneseq
  %v2398 = vshrl.u32 %v2397, 7
  %v2399 = vsub.s32 3, %v2398
  %v2400 = vrot.slane %v2272, %v2399
  %v2433 = vadd.f32 %v1311, %v2276
  %v2434 = vadd.f32 %v1313, %v2280
  %v2435 = vadd.f32 %v1504, %v2284
  %v2436 = vadd.f32 %v1506, %v2288
  %v2437 = vadd.f32 %v1315, %v2276
  %v2438 = vadd.f32 %v1317, %v2280
  %v2439 = vadd.f32 %v1508, %v2284
  %v2440 = vadd.f32 %v1510, %v2288
  %v2441 = vadd.f32 %v1321, %v2276
  %v2442 = vadd.f32 %v1323, %v2280
  %v2443 = vadd.f32 %v1514, %v2284
  %v2444 = vadd.f32 %v1516, %v2288
  %v2445 = vadd.f32 %v1325, %v2276
  %v2446 = vadd.f32 %v1327, %v2280
  %v2447 = vadd.f32 %v1518, %v2284
  %v2448 = vadd.f32 %v1520, %v2288
  %v2449 = vadd.f32 %v1331, %v2292
  %v2450 = vadd.f32 %v1333, %v2296
  %v2451 = vadd.f32 %v1524, %v2300
  %v2452 = vadd.f32 %v1526, %v2304
  %v2453 = vadd.f32 %v1335, %v2292
  %v2454 = vadd.f32 %v1337, %v2296
  %v2455 = vadd.f32 %v1528, %v2300
  %v2456 = vadd.f32 %v1530, %v2304
  %v2457 = vadd.f32 %v1341, %v2292
  %v2458 = vadd.f32 %v1343, %v2296
  %v2459 = vadd.f32 %v1534, %v2300
  %v2460 = vadd.f32 %v1536, %v2304
  %v2461 = vadd.f32 %v1345, %v2292
  %v2462 = vadd.f32 %v1347, %v2296
  %v2463 = vadd.f32 %v1538, %v2300
  %v2464 = vadd.f32 %v1540, %v2304
  %v2465 = vadd.f32 %v1351, %v2308
  %v2466 = vadd.f32 %v1353, %v2312
  %v2467 = vadd.f32 %v1544, %v2316
  %v2468 = vadd.f32 %v1546, %v2320
  %v2469 = vadd.f32 %v1355, %v2308
  %v2470 = vadd.f32 %v1357, %v2312
  %v2471 = vadd.f32 %v1548, %v2316
  %v2472 = vadd.f32 %v1550, %v2320
  %v2473 = vadd.f32 %v1361, %v2308
  %v2474 = vadd.f32 %v1363, %v2312
  %v2475 = vadd.f32 %v1554, %v2316
  %v2476 = vadd.f32 %v1556, %v2320
  %v2477 = vadd.f32 %v1365, %v2308
  %v2478 = vadd.f32 %v1367, %v2312
  %v2479 = vadd.f32 %v1558, %v2316
  %v2480 = vadd.f32 %v1560, %v2320
  %v2481 = vadd.f32 %v1371, %v2324
  %v2482 = vadd.f32 %v1373, %v2328
  %v2483 = vadd.f32 %v1564, %v2332
  %v2484 = vadd.f32 %v1566, %v2336
  %v2485 = vadd.f32 %v1375, %v2324
  %v2486 = vadd.f32 %v1377, %v2328
  %v2487 = vadd.f32 %v1568, %v2332
  %v2488 = vadd.f32 %v1570, %v2336
  %v2489 = vadd.f32 %v1381, %v2324
  %v2490 = vadd.f32 %v1383, %v2328
  %v2491 = vadd.f32 %v1574, %v2332
  %v2492 = vadd.f32 %v1576, %v2336
  %v2493 = vadd.f32 %v1385, %v2324
  %v2494 = vadd.f32 %v1387, %v2328
  %v2495 = vadd.f32 %v1578, %v2332
  %v2496 = vadd.f32 %v1580, %v2336
  %v2497 = vadd.f32 %v1391, %v2340
  %v2498 = vadd.f32 %v1393, %v2344
  %v2499 = vadd.f32 %v1584, %v2348
  %v2500 = vadd.f32 %v1586, %v2352
  %v2501 = vadd.f32 %v1395, %v2340
  %v2502 = vadd.f32 %v1397, %v2344
  %v2503 = vadd.f32 %v1588, %v2348
  %v2504 = vadd.f32 %v1590, %v2352
  %v2505 = vadd.f32 %v1401, %v2340
  %v2506 = vadd.f32 %v1403, %v2344
  %v2507 = vadd.f32 %v1594, %v2348
  %v2508 = vadd.f32 %v1596, %v2352
  %v2509 = vadd.f32 %v1405, %v2340
  %v2510 = vadd.f32 %v1407, %v2344
  %v2511 = vadd.f32 %v1598, %v2348
  %v2512 = vadd.f32 %v1600, %v2352
  %v2513 = vadd.f32 %v1411, %v2356
  %v2514 = vadd.f32 %v1413, %v2360
  %v2515 = vadd.f32 %v1604, %v2364
  %v2516 = vadd.f32 %v1606, %v2368
  %v2517 = vadd.f32 %v1415, %v2356
  %v2518 = vadd.f32 %v1417, %v2360
  %v2519 = vadd.f32 %v1608, %v2364
  %v2520 = vadd.f32 %v1610, %v2368
  %v2521 = vadd.f32 %v1421, %v2356
  %v2522 = vadd.f32 %v1423, %v2360
  %v2523 = vadd.f32 %v1614, %v2364
  %v2524 = vadd.f32 %v1616, %v2368
  %v2525 = vadd.f32 %v1425, %v2356
  %v2526 = vadd.f32 %v1427, %v2360
  %v2527 = vadd.f32 %v1618, %v2364
  %v2528 = vadd.f32 %v1620, %v2368
  %v2529 = vadd.f32 %v1431, %v2372
  %v2530 = vadd.f32 %v1433, %v2376
  %v2531 = vadd.f32 %v1624, %v2380
  %v2532 = vadd.f32 %v1626, %v2384
  %v2533 = vadd.f32 %v1435, %v2372
  %v2534 = vadd.f32 %v1437, %v2376
  %v2535 = vadd.f32 %v1628, %v2380
  %v2536 = vadd.f32 %v1630, %v2384
  %v2537 = vadd.f32 %v1441, %v2372
  %v2538 = vadd.f32 %v1443, %v2376
  %v2539 = vadd.f32 %v1634, %v2380
  %v2540 = vadd.f32 %v1636, %v2384
  %v2541 = vadd.f32 %v1445, %v2372
  %v2542 = vadd.f32 %v1447, %v2376
  %v2543 = vadd.f32 %v1638, %v2380
  %v2544 = vadd.f32 %v1640, %v2384
  %v2545 = vadd.f32 %v1451, %v2388
  %v2546 = vadd.f32 %v1453, %v2392
  %v2547 = vadd.f32 %v1644, %v2396
  %v2548 = vadd.f32 %v1646, %v2400
  %v2549 = vadd.f32 %v1455, %v2388
  %v2550 = vadd.f32 %v1457, %v2392
  %v2551 = vadd.f32 %v1648, %v2396
  %v2552 = vadd.f32 %v1650, %v2400
  %v2553 = vadd.f32 %v1461, %v2388
  %v2554 = vadd.f32 %v1463, %v2392
  %v2555 = vadd.f32 %v1654, %v2396
  %v2556 = vadd.f32 %v1656, %v2400
  %v2557 = vadd.f32 %v1465, %v2388
  %v2558 = vadd.f32 %v1467, %v2392
  %v2559 = vadd.f32 %v1658, %v2396
  %v2560 = vadd.f32 %v1660, %v2400
  %v2561 = vld [vmem:[%s7] sm:$0xf]
  %v2563 = vlaneseq
  %v2564 = vshrl.u32 %v2563, 7
  %v2565 = vsub.s32 0, %v2564
  %v2566 = vrot.slane %v2561, %v2565
  %v2567 = vlaneseq
  %v2568 = vshrl.u32 %v2567, 7
  %v2569 = vsub.s32 1, %v2568
  %v2570 = vrot.slane %v2561, %v2569
  %v2571 = vlaneseq
  %v2572 = vshrl.u32 %v2571, 7
  %v2573 = vsub.s32 2, %v2572
  %v2574 = vrot.slane %v2561, %v2573
  %v2575 = vlaneseq
  %v2576 = vshrl.u32 %v2575, 7
  %v2577 = vsub.s32 3, %v2576
  %v2578 = vrot.slane %v2561, %v2577
  %v2583 = vadd.f32 %v2433, %v2566
  %v2584 = vadd.f32 %v2434, %v2570
  %v2585 = vadd.f32 %v2435, %v2574
  %v2586 = vadd.f32 %v2436, %v2578
  %v2587 = vadd.f32 %v2437, %v2566
  %v2588 = vadd.f32 %v2438, %v2570
  %v2589 = vadd.f32 %v2439, %v2574
  %v2590 = vadd.f32 %v2440, %v2578
  %v2591 = vadd.f32 %v2441, %v2566
  %v2592 = vadd.f32 %v2442, %v2570
  %v2593 = vadd.f32 %v2443, %v2574
  %v2594 = vadd.f32 %v2444, %v2578
  %v2595 = vadd.f32 %v2445, %v2566
  %v2596 = vadd.f32 %v2446, %v2570
  %v2597 = vadd.f32 %v2447, %v2574
  %v2598 = vadd.f32 %v2448, %v2578
  %v2599 = vadd.f32 %v2449, %v2566
  %v2600 = vadd.f32 %v2450, %v2570
  %v2601 = vadd.f32 %v2451, %v2574
  %v2602 = vadd.f32 %v2452, %v2578
  %v2603 = vadd.f32 %v2453, %v2566
  %v2604 = vadd.f32 %v2454, %v2570
  %v2605 = vadd.f32 %v2455, %v2574
  %v2606 = vadd.f32 %v2456, %v2578
  %v2607 = vadd.f32 %v2457, %v2566
  %v2608 = vadd.f32 %v2458, %v2570
  %v2609 = vadd.f32 %v2459, %v2574
  %v2610 = vadd.f32 %v2460, %v2578
  %v2611 = vadd.f32 %v2461, %v2566
  %v2612 = vadd.f32 %v2462, %v2570
  %v2613 = vadd.f32 %v2463, %v2574
  %v2614 = vadd.f32 %v2464, %v2578
  %v2615 = vadd.f32 %v2465, %v2566
  %v2616 = vadd.f32 %v2466, %v2570
  %v2617 = vadd.f32 %v2467, %v2574
  %v2618 = vadd.f32 %v2468, %v2578
  %v2619 = vadd.f32 %v2469, %v2566
  %v2620 = vadd.f32 %v2470, %v2570
  %v2621 = vadd.f32 %v2471, %v2574
  %v2622 = vadd.f32 %v2472, %v2578
  %v2623 = vadd.f32 %v2473, %v2566
  %v2624 = vadd.f32 %v2474, %v2570
  %v2625 = vadd.f32 %v2475, %v2574
  %v2626 = vadd.f32 %v2476, %v2578
  %v2627 = vadd.f32 %v2477, %v2566
  %v2628 = vadd.f32 %v2478, %v2570
  %v2629 = vadd.f32 %v2479, %v2574
  %v2630 = vadd.f32 %v2480, %v2578
  %v2631 = vadd.f32 %v2481, %v2566
  %v2632 = vadd.f32 %v2482, %v2570
  %v2633 = vadd.f32 %v2483, %v2574
  %v2634 = vadd.f32 %v2484, %v2578
  %v2635 = vadd.f32 %v2485, %v2566
  %v2636 = vadd.f32 %v2486, %v2570
  %v2637 = vadd.f32 %v2487, %v2574
  %v2638 = vadd.f32 %v2488, %v2578
  %v2639 = vadd.f32 %v2489, %v2566
  %v2640 = vadd.f32 %v2490, %v2570
  %v2641 = vadd.f32 %v2491, %v2574
  %v2642 = vadd.f32 %v2492, %v2578
  %v2643 = vadd.f32 %v2493, %v2566
  %v2644 = vadd.f32 %v2494, %v2570
  %v2645 = vadd.f32 %v2495, %v2574
  %v2646 = vadd.f32 %v2496, %v2578
  %v2647 = vadd.f32 %v2497, %v2566
  %v2648 = vadd.f32 %v2498, %v2570
  %v2649 = vadd.f32 %v2499, %v2574
  %v2650 = vadd.f32 %v2500, %v2578
  %v2651 = vadd.f32 %v2501, %v2566
  %v2652 = vadd.f32 %v2502, %v2570
  %v2653 = vadd.f32 %v2503, %v2574
  %v2654 = vadd.f32 %v2504, %v2578
  %v2655 = vadd.f32 %v2505, %v2566
  %v2656 = vadd.f32 %v2506, %v2570
  %v2657 = vadd.f32 %v2507, %v2574
  %v2658 = vadd.f32 %v2508, %v2578
  %v2659 = vadd.f32 %v2509, %v2566
  %v2660 = vadd.f32 %v2510, %v2570
  %v2661 = vadd.f32 %v2511, %v2574
  %v2662 = vadd.f32 %v2512, %v2578
  %v2663 = vadd.f32 %v2513, %v2566
  %v2664 = vadd.f32 %v2514, %v2570
  %v2665 = vadd.f32 %v2515, %v2574
  %v2666 = vadd.f32 %v2516, %v2578
  %v2667 = vadd.f32 %v2517, %v2566
  %v2668 = vadd.f32 %v2518, %v2570
  %v2669 = vadd.f32 %v2519, %v2574
  %v2670 = vadd.f32 %v2520, %v2578
  %v2671 = vadd.f32 %v2521, %v2566
  %v2672 = vadd.f32 %v2522, %v2570
  %v2673 = vadd.f32 %v2523, %v2574
  %v2674 = vadd.f32 %v2524, %v2578
  %v2675 = vadd.f32 %v2525, %v2566
  %v2676 = vadd.f32 %v2526, %v2570
  %v2677 = vadd.f32 %v2527, %v2574
  %v2678 = vadd.f32 %v2528, %v2578
  %v2679 = vadd.f32 %v2529, %v2566
  %v2680 = vadd.f32 %v2530, %v2570
  %v2681 = vadd.f32 %v2531, %v2574
  %v2682 = vadd.f32 %v2532, %v2578
  %v2683 = vadd.f32 %v2533, %v2566
  %v2684 = vadd.f32 %v2534, %v2570
  %v2685 = vadd.f32 %v2535, %v2574
  %v2686 = vadd.f32 %v2536, %v2578
  %v2687 = vadd.f32 %v2537, %v2566
  %v2688 = vadd.f32 %v2538, %v2570
  %v2689 = vadd.f32 %v2539, %v2574
  %v2690 = vadd.f32 %v2540, %v2578
  %v2691 = vadd.f32 %v2541, %v2566
  %v2692 = vadd.f32 %v2542, %v2570
  %v2693 = vadd.f32 %v2543, %v2574
  %v2694 = vadd.f32 %v2544, %v2578
  %v2695 = vadd.f32 %v2545, %v2566
  %v2696 = vadd.f32 %v2546, %v2570
  %v2697 = vadd.f32 %v2547, %v2574
  %v2698 = vadd.f32 %v2548, %v2578
  %v2699 = vadd.f32 %v2549, %v2566
  %v2700 = vadd.f32 %v2550, %v2570
  %v2701 = vadd.f32 %v2551, %v2574
  %v2702 = vadd.f32 %v2552, %v2578
  %v2703 = vadd.f32 %v2553, %v2566
  %v2704 = vadd.f32 %v2554, %v2570
  %v2705 = vadd.f32 %v2555, %v2574
  %v2706 = vadd.f32 %v2556, %v2578
  %v2707 = vadd.f32 %v2557, %v2566
  %v2708 = vadd.f32 %v2558, %v2570
  %v2709 = vadd.f32 %v2559, %v2574
  %v2710 = vadd.f32 %v2560, %v2578
  %v2711 = vpack.c.bf16 %v2587, %v2583
  %v2712 = vpack.c.bf16 %v2588, %v2584
  %v2713 = vpack.c.bf16 %v2589, %v2585
  %v2714 = vpack.c.bf16 %v2590, %v2586
  %v2715 = vpack.c.bf16 %v2595, %v2591
  %v2716 = vpack.c.bf16 %v2596, %v2592
  %v2717 = vpack.c.bf16 %v2597, %v2593
  %v2718 = vpack.c.bf16 %v2598, %v2594
  %v2719 = vpack.c.bf16 %v2603, %v2599
  %v2720 = vpack.c.bf16 %v2604, %v2600
  %v2721 = vpack.c.bf16 %v2605, %v2601
  %v2722 = vpack.c.bf16 %v2606, %v2602
  %v2723 = vpack.c.bf16 %v2611, %v2607
  %v2724 = vpack.c.bf16 %v2612, %v2608
  %v2725 = vpack.c.bf16 %v2613, %v2609
  %v2726 = vpack.c.bf16 %v2614, %v2610
  %v2727 = vpack.c.bf16 %v2619, %v2615
  %v2728 = vpack.c.bf16 %v2620, %v2616
  %v2729 = vpack.c.bf16 %v2621, %v2617
  %v2730 = vpack.c.bf16 %v2622, %v2618
  %v2731 = vpack.c.bf16 %v2627, %v2623
  %v2732 = vpack.c.bf16 %v2628, %v2624
  %v2733 = vpack.c.bf16 %v2629, %v2625
  %v2734 = vpack.c.bf16 %v2630, %v2626
  %v2735 = vpack.c.bf16 %v2635, %v2631
  %v2736 = vpack.c.bf16 %v2636, %v2632
  %v2737 = vpack.c.bf16 %v2637, %v2633
  %v2738 = vpack.c.bf16 %v2638, %v2634
  %v2739 = vpack.c.bf16 %v2643, %v2639
  %v2740 = vpack.c.bf16 %v2644, %v2640
  %v2741 = vpack.c.bf16 %v2645, %v2641
  %v2742 = vpack.c.bf16 %v2646, %v2642
  %v2743 = vpack.c.bf16 %v2651, %v2647
  %v2744 = vpack.c.bf16 %v2652, %v2648
  %v2745 = vpack.c.bf16 %v2653, %v2649
  %v2746 = vpack.c.bf16 %v2654, %v2650
  %v2747 = vpack.c.bf16 %v2659, %v2655
  %v2748 = vpack.c.bf16 %v2660, %v2656
  %v2749 = vpack.c.bf16 %v2661, %v2657
  %v2750 = vpack.c.bf16 %v2662, %v2658
  %v2751 = vpack.c.bf16 %v2667, %v2663
  %v2752 = vpack.c.bf16 %v2668, %v2664
  %v2753 = vpack.c.bf16 %v2669, %v2665
  %v2754 = vpack.c.bf16 %v2670, %v2666
  %v2755 = vpack.c.bf16 %v2675, %v2671
  %v2756 = vpack.c.bf16 %v2676, %v2672
  %v2757 = vpack.c.bf16 %v2677, %v2673
  %v2758 = vpack.c.bf16 %v2678, %v2674
  %v2759 = vpack.c.bf16 %v2683, %v2679
  %v2760 = vpack.c.bf16 %v2684, %v2680
  %v2761 = vpack.c.bf16 %v2685, %v2681
  %v2762 = vpack.c.bf16 %v2686, %v2682
  %v2763 = vpack.c.bf16 %v2691, %v2687
  %v2764 = vpack.c.bf16 %v2692, %v2688
  %v2765 = vpack.c.bf16 %v2693, %v2689
  %v2766 = vpack.c.bf16 %v2694, %v2690
  %v2767 = vpack.c.bf16 %v2699, %v2695
  %v2768 = vpack.c.bf16 %v2700, %v2696
  %v2769 = vpack.c.bf16 %v2701, %v2697
  %v2770 = vpack.c.bf16 %v2702, %v2698
  %v2771 = vpack.c.bf16 %v2707, %v2703
  %v2772 = vpack.c.bf16 %v2708, %v2704
  %v2773 = vpack.c.bf16 %v2709, %v2705
  %v2774 = vpack.c.bf16 %v2710, %v2706
  %v2839 = vunpack.c.l.b16 %v2711
  %v2840 = vunpack.c.l.b16 %v2712
  %v2841 = vunpack.c.l.b16 %v2713
  %v2842 = vunpack.c.l.b16 %v2714
  %v2843 = vunpack.c.h.b16 %v2711
  %v2844 = vunpack.c.h.b16 %v2712
  %v2845 = vunpack.c.h.b16 %v2713
  %v2846 = vunpack.c.h.b16 %v2714
  %v2847 = vunpack.c.l.b16 %v2715
  %v2848 = vunpack.c.l.b16 %v2716
  %v2849 = vunpack.c.l.b16 %v2717
  %v2850 = vunpack.c.l.b16 %v2718
  %v2851 = vunpack.c.h.b16 %v2715
  %v2852 = vunpack.c.h.b16 %v2716
  %v2853 = vunpack.c.h.b16 %v2717
  %v2854 = vunpack.c.h.b16 %v2718
  %v2855 = vunpack.c.l.b16 %v2719
  %v2856 = vunpack.c.l.b16 %v2720
  %v2857 = vunpack.c.l.b16 %v2721
  %v2858 = vunpack.c.l.b16 %v2722
  %v2859 = vunpack.c.h.b16 %v2719
  %v2860 = vunpack.c.h.b16 %v2720
  %v2861 = vunpack.c.h.b16 %v2721
  %v2862 = vunpack.c.h.b16 %v2722
  %v2863 = vunpack.c.l.b16 %v2723
  %v2864 = vunpack.c.l.b16 %v2724
  %v2865 = vunpack.c.l.b16 %v2725
  %v2866 = vunpack.c.l.b16 %v2726
  %v2867 = vunpack.c.h.b16 %v2723
  %v2868 = vunpack.c.h.b16 %v2724
  %v2869 = vunpack.c.h.b16 %v2725
  %v2870 = vunpack.c.h.b16 %v2726
  %v2871 = vunpack.c.l.b16 %v2727
  %v2872 = vunpack.c.l.b16 %v2728
  %v2873 = vunpack.c.l.b16 %v2729
  %v2874 = vunpack.c.l.b16 %v2730
  %v2875 = vunpack.c.h.b16 %v2727
  %v2876 = vunpack.c.h.b16 %v2728
  %v2877 = vunpack.c.h.b16 %v2729
  %v2878 = vunpack.c.h.b16 %v2730
  %v2879 = vunpack.c.l.b16 %v2731
  %v2880 = vunpack.c.l.b16 %v2732
  %v2881 = vunpack.c.l.b16 %v2733
  %v2882 = vunpack.c.l.b16 %v2734
  %v2883 = vunpack.c.h.b16 %v2731
  %v2884 = vunpack.c.h.b16 %v2732
  %v2885 = vunpack.c.h.b16 %v2733
  %v2886 = vunpack.c.h.b16 %v2734
  %v2887 = vunpack.c.l.b16 %v2735
  %v2888 = vunpack.c.l.b16 %v2736
  %v2889 = vunpack.c.l.b16 %v2737
  %v2890 = vunpack.c.l.b16 %v2738
  %v2891 = vunpack.c.h.b16 %v2735
  %v2892 = vunpack.c.h.b16 %v2736
  %v2893 = vunpack.c.h.b16 %v2737
  %v2894 = vunpack.c.h.b16 %v2738
  %v2895 = vunpack.c.l.b16 %v2739
  %v2896 = vunpack.c.l.b16 %v2740
  %v2897 = vunpack.c.l.b16 %v2741
  %v2898 = vunpack.c.l.b16 %v2742
  %v2899 = vunpack.c.h.b16 %v2739
  %v2900 = vunpack.c.h.b16 %v2740
  %v2901 = vunpack.c.h.b16 %v2741
  %v2902 = vunpack.c.h.b16 %v2742
  %v2903 = vunpack.c.l.b16 %v2743
  %v2904 = vunpack.c.l.b16 %v2744
  %v2905 = vunpack.c.l.b16 %v2745
  %v2906 = vunpack.c.l.b16 %v2746
  %v2907 = vunpack.c.h.b16 %v2743
  %v2908 = vunpack.c.h.b16 %v2744
  %v2909 = vunpack.c.h.b16 %v2745
  %v2910 = vunpack.c.h.b16 %v2746
  %v2911 = vunpack.c.l.b16 %v2747
  %v2912 = vunpack.c.l.b16 %v2748
  %v2913 = vunpack.c.l.b16 %v2749
  %v2914 = vunpack.c.l.b16 %v2750
  %v2915 = vunpack.c.h.b16 %v2747
  %v2916 = vunpack.c.h.b16 %v2748
  %v2917 = vunpack.c.h.b16 %v2749
  %v2918 = vunpack.c.h.b16 %v2750
  %v2919 = vunpack.c.l.b16 %v2751
  %v2920 = vunpack.c.l.b16 %v2752
  %v2921 = vunpack.c.l.b16 %v2753
  %v2922 = vunpack.c.l.b16 %v2754
  %v2923 = vunpack.c.h.b16 %v2751
  %v2924 = vunpack.c.h.b16 %v2752
  %v2925 = vunpack.c.h.b16 %v2753
  %v2926 = vunpack.c.h.b16 %v2754
  %v2927 = vunpack.c.l.b16 %v2755
  %v2928 = vunpack.c.l.b16 %v2756
  %v2929 = vunpack.c.l.b16 %v2757
  %v2930 = vunpack.c.l.b16 %v2758
  %v2931 = vunpack.c.h.b16 %v2755
  %v2932 = vunpack.c.h.b16 %v2756
  %v2933 = vunpack.c.h.b16 %v2757
  %v2934 = vunpack.c.h.b16 %v2758
  %v2935 = vunpack.c.l.b16 %v2759
  %v2936 = vunpack.c.l.b16 %v2760
  %v2937 = vunpack.c.l.b16 %v2761
  %v2938 = vunpack.c.l.b16 %v2762
  %v2939 = vunpack.c.h.b16 %v2759
  %v2940 = vunpack.c.h.b16 %v2760
  %v2941 = vunpack.c.h.b16 %v2761
  %v2942 = vunpack.c.h.b16 %v2762
  %v2943 = vunpack.c.l.b16 %v2763
  %v2944 = vunpack.c.l.b16 %v2764
  %v2945 = vunpack.c.l.b16 %v2765
  %v2946 = vunpack.c.l.b16 %v2766
  %v2947 = vunpack.c.h.b16 %v2763
  %v2948 = vunpack.c.h.b16 %v2764
  %v2949 = vunpack.c.h.b16 %v2765
  %v2950 = vunpack.c.h.b16 %v2766
  %v2951 = vunpack.c.l.b16 %v2767
  %v2952 = vunpack.c.l.b16 %v2768
  %v2953 = vunpack.c.l.b16 %v2769
  %v2954 = vunpack.c.l.b16 %v2770
  %v2955 = vunpack.c.h.b16 %v2767
  %v2956 = vunpack.c.h.b16 %v2768
  %v2957 = vunpack.c.h.b16 %v2769
  %v2958 = vunpack.c.h.b16 %v2770
  %v2959 = vunpack.c.l.b16 %v2771
  %v2960 = vunpack.c.l.b16 %v2772
  %v2961 = vunpack.c.l.b16 %v2773
  %v2962 = vunpack.c.l.b16 %v2774
  %v2963 = vunpack.c.h.b16 %v2771
  %v2964 = vunpack.c.h.b16 %v2772
  %v2965 = vunpack.c.h.b16 %v2773
  %v2966 = vunpack.c.h.b16 %v2774
  %v2967 = vpack.c.b16 %v2840, %v2839
  %v2968 = vpack.c.b16 %v2842, %v2841
  %v2969 = vpack.c.b16 %v2844, %v2843
  %v2970 = vpack.c.b16 %v2846, %v2845
  %v2971 = vpack.c.b16 %v2848, %v2847
  %v2972 = vpack.c.b16 %v2850, %v2849
  %v2973 = vpack.c.b16 %v2852, %v2851
  %v2974 = vpack.c.b16 %v2854, %v2853
  %v2975 = vpack.c.b16 %v2856, %v2855
  %v2976 = vpack.c.b16 %v2858, %v2857
  %v2977 = vpack.c.b16 %v2860, %v2859
  %v2978 = vpack.c.b16 %v2862, %v2861
  %v2979 = vpack.c.b16 %v2864, %v2863
  %v2980 = vpack.c.b16 %v2866, %v2865
  %v2981 = vpack.c.b16 %v2868, %v2867
  %v2982 = vpack.c.b16 %v2870, %v2869
  %v2983 = vpack.c.b16 %v2872, %v2871
  %v2984 = vpack.c.b16 %v2874, %v2873
  %v2985 = vpack.c.b16 %v2876, %v2875
  %v2986 = vpack.c.b16 %v2878, %v2877
  %v2987 = vpack.c.b16 %v2880, %v2879
  %v2988 = vpack.c.b16 %v2882, %v2881
  %v2989 = vpack.c.b16 %v2884, %v2883
  %v2990 = vpack.c.b16 %v2886, %v2885
  %v2991 = vpack.c.b16 %v2888, %v2887
  %v2992 = vpack.c.b16 %v2890, %v2889
  %v2993 = vpack.c.b16 %v2892, %v2891
  %v2994 = vpack.c.b16 %v2894, %v2893
  %v2995 = vpack.c.b16 %v2896, %v2895
  %v2996 = vpack.c.b16 %v2898, %v2897
  %v2997 = vpack.c.b16 %v2900, %v2899
  %v2998 = vpack.c.b16 %v2902, %v2901
  %v2999 = vpack.c.b16 %v2904, %v2903
  %v3000 = vpack.c.b16 %v2906, %v2905
  %v3001 = vpack.c.b16 %v2908, %v2907
  %v3002 = vpack.c.b16 %v2910, %v2909
  %v3003 = vpack.c.b16 %v2912, %v2911
  %v3004 = vpack.c.b16 %v2914, %v2913
  %v3005 = vpack.c.b16 %v2916, %v2915
  %v3006 = vpack.c.b16 %v2918, %v2917
  %v3007 = vpack.c.b16 %v2920, %v2919
  %v3008 = vpack.c.b16 %v2922, %v2921
  %v3009 = vpack.c.b16 %v2924, %v2923
  %v3010 = vpack.c.b16 %v2926, %v2925
  %v3011 = vpack.c.b16 %v2928, %v2927
  %v3012 = vpack.c.b16 %v2930, %v2929
  %v3013 = vpack.c.b16 %v2932, %v2931
  %v3014 = vpack.c.b16 %v2934, %v2933
  %v3015 = vpack.c.b16 %v2936, %v2935
  %v3016 = vpack.c.b16 %v2938, %v2937
  %v3017 = vpack.c.b16 %v2940, %v2939
  %v3018 = vpack.c.b16 %v2942, %v2941
  %v3019 = vpack.c.b16 %v2944, %v2943
  %v3020 = vpack.c.b16 %v2946, %v2945
  %v3021 = vpack.c.b16 %v2948, %v2947
  %v3022 = vpack.c.b16 %v2950, %v2949
  %v3023 = vpack.c.b16 %v2952, %v2951
  %v3024 = vpack.c.b16 %v2954, %v2953
  %v3025 = vpack.c.b16 %v2956, %v2955
  %v3026 = vpack.c.b16 %v2958, %v2957
  %v3027 = vpack.c.b16 %v2960, %v2959
  %v3028 = vpack.c.b16 %v2962, %v2961
  %v3029 = vpack.c.b16 %v2964, %v2963
  %v3030 = vpack.c.b16 %v2966, %v2965
  %3095 = vst [vmem:[%s8] sm:$0xff] %v2967
  %3096 = vst [vmem:[%s8 + $0x8] sm:$0xff] %v2968
  %3097 = vst [vmem:[%s8 + $0x10] sm:$0xff] %v2969
  %3098 = vst [vmem:[%s8 + $0x18] sm:$0xff] %v2970
  %3099 = vst [vmem:[%s8 + $0x20] sm:$0xff] %v2971
  %3100 = vst [vmem:[%s8 + $0x28] sm:$0xff] %v2972
  %3101 = vst [vmem:[%s8 + $0x30] sm:$0xff] %v2973
  %3102 = vst [vmem:[%s8 + $0x38] sm:$0xff] %v2974
  %3103 = vst [vmem:[%s8 + $0x40] sm:$0xff] %v2975
  %3104 = vst [vmem:[%s8 + $0x48] sm:$0xff] %v2976
  %3105 = vst [vmem:[%s8 + $0x50] sm:$0xff] %v2977
  %3106 = vst [vmem:[%s8 + $0x58] sm:$0xff] %v2978
  %3107 = vst [vmem:[%s8 + $0x60] sm:$0xff] %v2979
  %3108 = vst [vmem:[%s8 + $0x68] sm:$0xff] %v2980
  %3109 = vst [vmem:[%s8 + $0x70] sm:$0xff] %v2981
  %3110 = vst [vmem:[%s8 + $0x78] sm:$0xff] %v2982
  %3111 = vst [vmem:[%s8 + $0x80] sm:$0xff] %v2983
  %3112 = vst [vmem:[%s8 + $0x88] sm:$0xff] %v2984
  %3113 = vst [vmem:[%s8 + $0x90] sm:$0xff] %v2985
  %3114 = vst [vmem:[%s8 + $0x98] sm:$0xff] %v2986
  %3115 = vst [vmem:[%s8 + $0xa0] sm:$0xff] %v2987
  %3116 = vst [vmem:[%s8 + $0xa8] sm:$0xff] %v2988
  %3117 = vst [vmem:[%s8 + $0xb0] sm:$0xff] %v2989
  %3118 = vst [vmem:[%s8 + $0xb8] sm:$0xff] %v2990
  %3119 = vst [vmem:[%s8 + $0xc0] sm:$0xff] %v2991
  %3120 = vst [vmem:[%s8 + $0xc8] sm:$0xff] %v2992
  %3121 = vst [vmem:[%s8 + $0xd0] sm:$0xff] %v2993
  %3122 = vst [vmem:[%s8 + $0xd8] sm:$0xff] %v2994
  %3123 = vst [vmem:[%s8 + $0xe0] sm:$0xff] %v2995
  %3124 = vst [vmem:[%s8 + $0xe8] sm:$0xff] %v2996
  %3125 = vst [vmem:[%s8 + $0xf0] sm:$0xff] %v2997
  %3126 = vst [vmem:[%s8 + $0xf8] sm:$0xff] %v2998
  %3127 = vst [vmem:[%s8 + $0x100] sm:$0xff] %v2999
  %3128 = vst [vmem:[%s8 + $0x108] sm:$0xff] %v3000
  %3129 = vst [vmem:[%s8 + $0x110] sm:$0xff] %v3001
  %3130 = vst [vmem:[%s8 + $0x118] sm:$0xff] %v3002
  %3131 = vst [vmem:[%s8 + $0x120] sm:$0xff] %v3003
  %3132 = vst [vmem:[%s8 + $0x128] sm:$0xff] %v3004
  %3133 = vst [vmem:[%s8 + $0x130] sm:$0xff] %v3005
  %3134 = vst [vmem:[%s8 + $0x138] sm:$0xff] %v3006
  %3135 = vst [vmem:[%s8 + $0x140] sm:$0xff] %v3007
  %3136 = vst [vmem:[%s8 + $0x148] sm:$0xff] %v3008
  %3137 = vst [vmem:[%s8 + $0x150] sm:$0xff] %v3009
  %3138 = vst [vmem:[%s8 + $0x158] sm:$0xff] %v3010
  %3139 = vst [vmem:[%s8 + $0x160] sm:$0xff] %v3011
  %3140 = vst [vmem:[%s8 + $0x168] sm:$0xff] %v3012
  %3141 = vst [vmem:[%s8 + $0x170] sm:$0xff] %v3013
  %3142 = vst [vmem:[%s8 + $0x178] sm:$0xff] %v3014
  %3143 = vst [vmem:[%s8 + $0x180] sm:$0xff] %v3015
  %3144 = vst [vmem:[%s8 + $0x188] sm:$0xff] %v3016
  %3145 = vst [vmem:[%s8 + $0x190] sm:$0xff] %v3017
  %3146 = vst [vmem:[%s8 + $0x198] sm:$0xff] %v3018
  %3147 = vst [vmem:[%s8 + $0x1a0] sm:$0xff] %v3019
  %3148 = vst [vmem:[%s8 + $0x1a8] sm:$0xff] %v3020
  %3149 = vst [vmem:[%s8 + $0x1b0] sm:$0xff] %v3021
  %3150 = vst [vmem:[%s8 + $0x1b8] sm:$0xff] %v3022
  %3151 = vst [vmem:[%s8 + $0x1c0] sm:$0xff] %v3023
  %3152 = vst [vmem:[%s8 + $0x1c8] sm:$0xff] %v3024
  %3153 = vst [vmem:[%s8 + $0x1d0] sm:$0xff] %v3025
  %3154 = vst [vmem:[%s8 + $0x1d8] sm:$0xff] %v3026
  %3155 = vst [vmem:[%s8 + $0x1e0] sm:$0xff] %v3027
  %3156 = vst [vmem:[%s8 + $0x1e8] sm:$0xff] %v3028
  %3157 = vst [vmem:[%s8 + $0x1f0] sm:$0xff] %v3029
  %3158 = vst [vmem:[%s8 + $0x1f8] sm:$0xff] %v3030
  %v3159 = vadd.f32 %v2583, %v2587
  %v3160 = vadd.f32 %v3159, %v2591
  %v3161 = vadd.f32 %v3160, %v2595
  %v3162 = vadd.f32 %v3161, %v2599
  %v3163 = vadd.f32 %v3162, %v2603
  %v3164 = vadd.f32 %v3163, %v2607
  %v3165 = vadd.f32 %v3164, %v2611
  %v3166 = vadd.f32 %v3165, %v2615
  %v3167 = vadd.f32 %v3166, %v2619
  %v3168 = vadd.f32 %v3167, %v2623
  %v3169 = vadd.f32 %v3168, %v2627
  %v3170 = vadd.f32 %v3169, %v2631
  %v3171 = vadd.f32 %v3170, %v2635
  %v3172 = vadd.f32 %v3171, %v2639
  %v3173 = vadd.f32 %v3172, %v2643
  %v3174 = vadd.f32 %v3173, %v2647
  %v3175 = vadd.f32 %v3174, %v2651
  %v3176 = vadd.f32 %v3175, %v2655
  %v3177 = vadd.f32 %v3176, %v2659
  %v3178 = vadd.f32 %v3177, %v2663
  %v3179 = vadd.f32 %v3178, %v2667
  %v3180 = vadd.f32 %v3179, %v2671
  %v3181 = vadd.f32 %v3180, %v2675
  %v3182 = vadd.f32 %v3181, %v2679
  %v3183 = vadd.f32 %v3182, %v2683
  %v3184 = vadd.f32 %v3183, %v2687
  %v3185 = vadd.f32 %v3184, %v2691
  %v3186 = vadd.f32 %v3185, %v2695
  %v3187 = vadd.f32 %v3186, %v2699
  %v3188 = vadd.f32 %v3187, %v2703
  %v3189 = vadd.f32 %v3188, %v2707
  %v3190 = vrot.slane %v3189, 4
  %v3191 = vadd.f32 %v3189, %v3190
  %v3192 = vrot.slane %v3191, 2
  %v3193 = vadd.f32 %v3191, %v3192
  %v3194 = vrot.slane %v3193, 1
  %v3195 = vadd.f32 %v3193, %v3194
  %v3196 = vadd.f32 %v2584, %v2588
  %v3197 = vadd.f32 %v3196, %v2592
  %v3198 = vadd.f32 %v3197, %v2596
  %v3199 = vadd.f32 %v3198, %v2600
  %v3200 = vadd.f32 %v3199, %v2604
  %v3201 = vadd.f32 %v3200, %v2608
  %v3202 = vadd.f32 %v3201, %v2612
  %v3203 = vadd.f32 %v3202, %v2616
  %v3204 = vadd.f32 %v3203, %v2620
  %v3205 = vadd.f32 %v3204, %v2624
  %v3206 = vadd.f32 %v3205, %v2628
  %v3207 = vadd.f32 %v3206, %v2632
  %v3208 = vadd.f32 %v3207, %v2636
  %v3209 = vadd.f32 %v3208, %v2640
  %v3210 = vadd.f32 %v3209, %v2644
  %v3211 = vadd.f32 %v3210, %v2648
  %v3212 = vadd.f32 %v3211, %v2652
  %v3213 = vadd.f32 %v3212, %v2656
  %v3214 = vadd.f32 %v3213, %v2660
  %v3215 = vadd.f32 %v3214, %v2664
  %v3216 = vadd.f32 %v3215, %v2668
  %v3217 = vadd.f32 %v3216, %v2672
  %v3218 = vadd.f32 %v3217, %v2676
  %v3219 = vadd.f32 %v3218, %v2680
  %v3220 = vadd.f32 %v3219, %v2684
  %v3221 = vadd.f32 %v3220, %v2688
  %v3222 = vadd.f32 %v3221, %v2692
  %v3223 = vadd.f32 %v3222, %v2696
  %v3224 = vadd.f32 %v3223, %v2700
  %v3225 = vadd.f32 %v3224, %v2704
  %v3226 = vadd.f32 %v3225, %v2708
  %v3227 = vrot.slane %v3226, 4
  %v3228 = vadd.f32 %v3226, %v3227
  %v3229 = vrot.slane %v3228, 2
  %v3230 = vadd.f32 %v3228, %v3229
  %v3231 = vrot.slane %v3230, 1
  %v3232 = vadd.f32 %v3230, %v3231
  %v3233 = vadd.f32 %v2585, %v2589
  %v3234 = vadd.f32 %v3233, %v2593
  %v3235 = vadd.f32 %v3234, %v2597
  %v3236 = vadd.f32 %v3235, %v2601
  %v3237 = vadd.f32 %v3236, %v2605
  %v3238 = vadd.f32 %v3237, %v2609
  %v3239 = vadd.f32 %v3238, %v2613
  %v3240 = vadd.f32 %v3239, %v2617
  %v3241 = vadd.f32 %v3240, %v2621
  %v3242 = vadd.f32 %v3241, %v2625
  %v3243 = vadd.f32 %v3242, %v2629
  %v3244 = vadd.f32 %v3243, %v2633
  %v3245 = vadd.f32 %v3244, %v2637
  %v3246 = vadd.f32 %v3245, %v2641
  %v3247 = vadd.f32 %v3246, %v2645
  %v3248 = vadd.f32 %v3247, %v2649
  %v3249 = vadd.f32 %v3248, %v2653
  %v3250 = vadd.f32 %v3249, %v2657
  %v3251 = vadd.f32 %v3250, %v2661
  %v3252 = vadd.f32 %v3251, %v2665
  %v3253 = vadd.f32 %v3252, %v2669
  %v3254 = vadd.f32 %v3253, %v2673
  %v3255 = vadd.f32 %v3254, %v2677
  %v3256 = vadd.f32 %v3255, %v2681
  %v3257 = vadd.f32 %v3256, %v2685
  %v3258 = vadd.f32 %v3257, %v2689
  %v3259 = vadd.f32 %v3258, %v2693
  %v3260 = vadd.f32 %v3259, %v2697
  %v3261 = vadd.f32 %v3260, %v2701
  %v3262 = vadd.f32 %v3261, %v2705
  %v3263 = vadd.f32 %v3262, %v2709
  %v3264 = vrot.slane %v3263, 4
  %v3265 = vadd.f32 %v3263, %v3264
  %v3266 = vrot.slane %v3265, 2
  %v3267 = vadd.f32 %v3265, %v3266
  %v3268 = vrot.slane %v3267, 1
  %v3269 = vadd.f32 %v3267, %v3268
  %v3270 = vadd.f32 %v2586, %v2590
  %v3271 = vadd.f32 %v3270, %v2594
  %v3272 = vadd.f32 %v3271, %v2598
  %v3273 = vadd.f32 %v3272, %v2602
  %v3274 = vadd.f32 %v3273, %v2606
  %v3275 = vadd.f32 %v3274, %v2610
  %v3276 = vadd.f32 %v3275, %v2614
  %v3277 = vadd.f32 %v3276, %v2618
  %v3278 = vadd.f32 %v3277, %v2622
  %v3279 = vadd.f32 %v3278, %v2626
  %v3280 = vadd.f32 %v3279, %v2630
  %v3281 = vadd.f32 %v3280, %v2634
  %v3282 = vadd.f32 %v3281, %v2638
  %v3283 = vadd.f32 %v3282, %v2642
  %v3284 = vadd.f32 %v3283, %v2646
  %v3285 = vadd.f32 %v3284, %v2650
  %v3286 = vadd.f32 %v3285, %v2654
  %v3287 = vadd.f32 %v3286, %v2658
  %v3288 = vadd.f32 %v3287, %v2662
  %v3289 = vadd.f32 %v3288, %v2666
  %v3290 = vadd.f32 %v3289, %v2670
  %v3291 = vadd.f32 %v3290, %v2674
  %v3292 = vadd.f32 %v3291, %v2678
  %v3293 = vadd.f32 %v3292, %v2682
  %v3294 = vadd.f32 %v3293, %v2686
  %v3295 = vadd.f32 %v3294, %v2690
  %v3296 = vadd.f32 %v3295, %v2694
  %v3297 = vadd.f32 %v3296, %v2698
  %v3298 = vadd.f32 %v3297, %v2702
  %v3299 = vadd.f32 %v3298, %v2706
  %v3300 = vadd.f32 %v3299, %v2710
  %v3301 = vrot.slane %v3300, 4
  %v3302 = vadd.f32 %v3300, %v3301
  %v3303 = vrot.slane %v3302, 2
  %v3304 = vadd.f32 %v3302, %v3303
  %v3305 = vrot.slane %v3304, 1
  %v3306 = vadd.f32 %v3304, %v3305
  %v3311 = vcombine.low %v3195, %v3232
  %v3312 = vcombine.low %v3269, %v3306
  %v3314 = vunpack.c.l.s4 1966171168
  %v3315 = vunpack.c.0.s8 %v3314
  %v3316 = vlaneseq
  %v3317 = vshrl.u32 %v3316, 7
  %v3318 = vsub.s32 %v3315, %v3317
  %v3319 = vrot.slane %v3311, %v3318
  %v3321 = vunpack.c.l.s4 1966171168
  %v3322 = vunpack.c.0.s8 %v3321
  %v3323 = vlaneseq
  %v3324 = vshrl.u32 %v3323, 7
  %v3325 = vsub.s32 %v3322, %v3324
  %v3326 = vrot.slane %v3312, %v3325
  %v3327 = vcombine.low %v3319, %v3326
  %v3329 = vunpack.c.l.s4 1966171168
  %v3330 = vunpack.c.0.s8 %v3329
  %v3331 = vlaneseq
  %v3332 = vshrl.u32 %v3331, 7
  %v3333 = vsub.s32 %v3330, %v3332
  %v3334 = vrot.slane %v3327, %v3333
  %v3336 = vlaneseq
  %vm3337 = vcmp.ge.s32.totalorder %v3336, 0
  %vm3338 = vcmp.lt.s32.totalorder %v3336, 512
  %vm3339 = vmand %vm3337, %vm3338
  %3340 = vst.msk [vmem:[%s9] sm:$0xf] %vm3339, %v3334
  %v3341 = vmul.f32 %v2583, %v2583
  %v3342 = vmul.f32 %v2584, %v2584
  %v3343 = vmul.f32 %v2585, %v2585
  %v3344 = vmul.f32 %v2586, %v2586
  %v3345 = vmul.f32 %v2587, %v2587
  %v3346 = vmul.f32 %v2588, %v2588
  %v3347 = vmul.f32 %v2589, %v2589
  %v3348 = vmul.f32 %v2590, %v2590
  %v3349 = vmul.f32 %v2591, %v2591
  %v3350 = vmul.f32 %v2592, %v2592
  %v3351 = vmul.f32 %v2593, %v2593
  %v3352 = vmul.f32 %v2594, %v2594
  %v3353 = vmul.f32 %v2595, %v2595
  %v3354 = vmul.f32 %v2596, %v2596
  %v3355 = vmul.f32 %v2597, %v2597
  %v3356 = vmul.f32 %v2598, %v2598
  %v3357 = vmul.f32 %v2599, %v2599
  %v3358 = vmul.f32 %v2600, %v2600
  %v3359 = vmul.f32 %v2601, %v2601
  %v3360 = vmul.f32 %v2602, %v2602
  %v3361 = vmul.f32 %v2603, %v2603
  %v3362 = vmul.f32 %v2604, %v2604
  %v3363 = vmul.f32 %v2605, %v2605
  %v3364 = vmul.f32 %v2606, %v2606
  %v3365 = vmul.f32 %v2607, %v2607
  %v3366 = vmul.f32 %v2608, %v2608
  %v3367 = vmul.f32 %v2609, %v2609
  %v3368 = vmul.f32 %v2610, %v2610
  %v3369 = vmul.f32 %v2611, %v2611
  %v3370 = vmul.f32 %v2612, %v2612
  %v3371 = vmul.f32 %v2613, %v2613
  %v3372 = vmul.f32 %v2614, %v2614
  %v3373 = vmul.f32 %v2615, %v2615
  %v3374 = vmul.f32 %v2616, %v2616
  %v3375 = vmul.f32 %v2617, %v2617
  %v3376 = vmul.f32 %v2618, %v2618
  %v3377 = vmul.f32 %v2619, %v2619
  %v3378 = vmul.f32 %v2620, %v2620
  %v3379 = vmul.f32 %v2621, %v2621
  %v3380 = vmul.f32 %v2622, %v2622
  %v3381 = vmul.f32 %v2623, %v2623
  %v3382 = vmul.f32 %v2624, %v2624
  %v3383 = vmul.f32 %v2625, %v2625
  %v3384 = vmul.f32 %v2626, %v2626
  %v3385 = vmul.f32 %v2627, %v2627
  %v3386 = vmul.f32 %v2628, %v2628
  %v3387 = vmul.f32 %v2629, %v2629
  %v3388 = vmul.f32 %v2630, %v2630
  %v3389 = vmul.f32 %v2631, %v2631
  %v3390 = vmul.f32 %v2632, %v2632
  %v3391 = vmul.f32 %v2633, %v2633
  %v3392 = vmul.f32 %v2634, %v2634
  %v3393 = vmul.f32 %v2635, %v2635
  %v3394 = vmul.f32 %v2636, %v2636
  %v3395 = vmul.f32 %v2637, %v2637
  %v3396 = vmul.f32 %v2638, %v2638
  %v3397 = vmul.f32 %v2639, %v2639
  %v3398 = vmul.f32 %v2640, %v2640
  %v3399 = vmul.f32 %v2641, %v2641
  %v3400 = vmul.f32 %v2642, %v2642
  %v3401 = vmul.f32 %v2643, %v2643
  %v3402 = vmul.f32 %v2644, %v2644
  %v3403 = vmul.f32 %v2645, %v2645
  %v3404 = vmul.f32 %v2646, %v2646
  %v3405 = vmul.f32 %v2647, %v2647
  %v3406 = vmul.f32 %v2648, %v2648
  %v3407 = vmul.f32 %v2649, %v2649
  %v3408 = vmul.f32 %v2650, %v2650
  %v3409 = vmul.f32 %v2651, %v2651
  %v3410 = vmul.f32 %v2652, %v2652
  %v3411 = vmul.f32 %v2653, %v2653
  %v3412 = vmul.f32 %v2654, %v2654
  %v3413 = vmul.f32 %v2655, %v2655
  %v3414 = vmul.f32 %v2656, %v2656
  %v3415 = vmul.f32 %v2657, %v2657
  %v3416 = vmul.f32 %v2658, %v2658
  %v3417 = vmul.f32 %v2659, %v2659
  %v3418 = vmul.f32 %v2660, %v2660
  %v3419 = vmul.f32 %v2661, %v2661
  %v3420 = vmul.f32 %v2662, %v2662
  %v3421 = vmul.f32 %v2663, %v2663
  %v3422 = vmul.f32 %v2664, %v2664
  %v3423 = vmul.f32 %v2665, %v2665
  %v3424 = vmul.f32 %v2666, %v2666
  %v3425 = vmul.f32 %v2667, %v2667
  %v3426 = vmul.f32 %v2668, %v2668
  %v3427 = vmul.f32 %v2669, %v2669
  %v3428 = vmul.f32 %v2670, %v2670
  %v3429 = vmul.f32 %v2671, %v2671
  %v3430 = vmul.f32 %v2672, %v2672
  %v3431 = vmul.f32 %v2673, %v2673
  %v3432 = vmul.f32 %v2674, %v2674
  %v3433 = vmul.f32 %v2675, %v2675
  %v3434 = vmul.f32 %v2676, %v2676
  %v3435 = vmul.f32 %v2677, %v2677
  %v3436 = vmul.f32 %v2678, %v2678
  %v3437 = vmul.f32 %v2679, %v2679
  %v3438 = vmul.f32 %v2680, %v2680
  %v3439 = vmul.f32 %v2681, %v2681
  %v3440 = vmul.f32 %v2682, %v2682
  %v3441 = vmul.f32 %v2683, %v2683
  %v3442 = vmul.f32 %v2684, %v2684
  %v3443 = vmul.f32 %v2685, %v2685
  %v3444 = vmul.f32 %v2686, %v2686
  %v3445 = vmul.f32 %v2687, %v2687
  %v3446 = vmul.f32 %v2688, %v2688
  %v3447 = vmul.f32 %v2689, %v2689
  %v3448 = vmul.f32 %v2690, %v2690
  %v3449 = vmul.f32 %v2691, %v2691
  %v3450 = vmul.f32 %v2692, %v2692
  %v3451 = vmul.f32 %v2693, %v2693
  %v3452 = vmul.f32 %v2694, %v2694
  %v3453 = vmul.f32 %v2695, %v2695
  %v3454 = vmul.f32 %v2696, %v2696
  %v3455 = vmul.f32 %v2697, %v2697
  %v3456 = vmul.f32 %v2698, %v2698
  %v3457 = vmul.f32 %v2699, %v2699
  %v3458 = vmul.f32 %v2700, %v2700
  %v3459 = vmul.f32 %v2701, %v2701
  %v3460 = vmul.f32 %v2702, %v2702
  %v3461 = vmul.f32 %v2703, %v2703
  %v3462 = vmul.f32 %v2704, %v2704
  %v3463 = vmul.f32 %v2705, %v2705
  %v3464 = vmul.f32 %v2706, %v2706
  %v3465 = vmul.f32 %v2707, %v2707
  %v3466 = vmul.f32 %v2708, %v2708
  %v3467 = vmul.f32 %v2709, %v2709
  %v3468 = vmul.f32 %v2710, %v2710
  %v3469 = vadd.f32 %v3341, %v3345
  %v3470 = vadd.f32 %v3469, %v3349
  %v3471 = vadd.f32 %v3470, %v3353
  %v3472 = vadd.f32 %v3471, %v3357
  %v3473 = vadd.f32 %v3472, %v3361
  %v3474 = vadd.f32 %v3473, %v3365
  %v3475 = vadd.f32 %v3474, %v3369
  %v3476 = vadd.f32 %v3475, %v3373
  %v3477 = vadd.f32 %v3476, %v3377
  %v3478 = vadd.f32 %v3477, %v3381
  %v3479 = vadd.f32 %v3478, %v3385
  %v3480 = vadd.f32 %v3479, %v3389
  %v3481 = vadd.f32 %v3480, %v3393
  %v3482 = vadd.f32 %v3481, %v3397
  %v3483 = vadd.f32 %v3482, %v3401
  %v3484 = vadd.f32 %v3483, %v3405
  %v3485 = vadd.f32 %v3484, %v3409
  %v3486 = vadd.f32 %v3485, %v3413
  %v3487 = vadd.f32 %v3486, %v3417
  %v3488 = vadd.f32 %v3487, %v3421
  %v3489 = vadd.f32 %v3488, %v3425
  %v3490 = vadd.f32 %v3489, %v3429
  %v3491 = vadd.f32 %v3490, %v3433
  %v3492 = vadd.f32 %v3491, %v3437
  %v3493 = vadd.f32 %v3492, %v3441
  %v3494 = vadd.f32 %v3493, %v3445
  %v3495 = vadd.f32 %v3494, %v3449
  %v3496 = vadd.f32 %v3495, %v3453
  %v3497 = vadd.f32 %v3496, %v3457
  %v3498 = vadd.f32 %v3497, %v3461
  %v3499 = vadd.f32 %v3498, %v3465
  %v3500 = vrot.slane %v3499, 4
  %v3501 = vadd.f32 %v3499, %v3500
  %v3502 = vrot.slane %v3501, 2
  %v3503 = vadd.f32 %v3501, %v3502
  %v3504 = vrot.slane %v3503, 1
  %v3505 = vadd.f32 %v3503, %v3504
  %v3506 = vadd.f32 %v3342, %v3346
  %v3507 = vadd.f32 %v3506, %v3350
  %v3508 = vadd.f32 %v3507, %v3354
  %v3509 = vadd.f32 %v3508, %v3358
  %v3510 = vadd.f32 %v3509, %v3362
  %v3511 = vadd.f32 %v3510, %v3366
  %v3512 = vadd.f32 %v3511, %v3370
  %v3513 = vadd.f32 %v3512, %v3374
  %v3514 = vadd.f32 %v3513, %v3378
  %v3515 = vadd.f32 %v3514, %v3382
  %v3516 = vadd.f32 %v3515, %v3386
  %v3517 = vadd.f32 %v3516, %v3390
  %v3518 = vadd.f32 %v3517, %v3394
  %v3519 = vadd.f32 %v3518, %v3398
  %v3520 = vadd.f32 %v3519, %v3402
  %v3521 = vadd.f32 %v3520, %v3406
  %v3522 = vadd.f32 %v3521, %v3410
  %v3523 = vadd.f32 %v3522, %v3414
  %v3524 = vadd.f32 %v3523, %v3418
  %v3525 = vadd.f32 %v3524, %v3422
  %v3526 = vadd.f32 %v3525, %v3426
  %v3527 = vadd.f32 %v3526, %v3430
  %v3528 = vadd.f32 %v3527, %v3434
  %v3529 = vadd.f32 %v3528, %v3438
  %v3530 = vadd.f32 %v3529, %v3442
  %v3531 = vadd.f32 %v3530, %v3446
  %v3532 = vadd.f32 %v3531, %v3450
  %v3533 = vadd.f32 %v3532, %v3454
  %v3534 = vadd.f32 %v3533, %v3458
  %v3535 = vadd.f32 %v3534, %v3462
  %v3536 = vadd.f32 %v3535, %v3466
  %v3537 = vrot.slane %v3536, 4
  %v3538 = vadd.f32 %v3536, %v3537
  %v3539 = vrot.slane %v3538, 2
  %v3540 = vadd.f32 %v3538, %v3539
  %v3541 = vrot.slane %v3540, 1
  %v3542 = vadd.f32 %v3540, %v3541
  %v3543 = vadd.f32 %v3343, %v3347
  %v3544 = vadd.f32 %v3543, %v3351
  %v3545 = vadd.f32 %v3544, %v3355
  %v3546 = vadd.f32 %v3545, %v3359
  %v3547 = vadd.f32 %v3546, %v3363
  %v3548 = vadd.f32 %v3547, %v3367
  %v3549 = vadd.f32 %v3548, %v3371
  %v3550 = vadd.f32 %v3549, %v3375
  %v3551 = vadd.f32 %v3550, %v3379
  %v3552 = vadd.f32 %v3551, %v3383
  %v3553 = vadd.f32 %v3552, %v3387
  %v3554 = vadd.f32 %v3553, %v3391
  %v3555 = vadd.f32 %v3554, %v3395
  %v3556 = vadd.f32 %v3555, %v3399
  %v3557 = vadd.f32 %v3556, %v3403
  %v3558 = vadd.f32 %v3557, %v3407
  %v3559 = vadd.f32 %v3558, %v3411
  %v3560 = vadd.f32 %v3559, %v3415
  %v3561 = vadd.f32 %v3560, %v3419
  %v3562 = vadd.f32 %v3561, %v3423
  %v3563 = vadd.f32 %v3562, %v3427
  %v3564 = vadd.f32 %v3563, %v3431
  %v3565 = vadd.f32 %v3564, %v3435
  %v3566 = vadd.f32 %v3565, %v3439
  %v3567 = vadd.f32 %v3566, %v3443
  %v3568 = vadd.f32 %v3567, %v3447
  %v3569 = vadd.f32 %v3568, %v3451
  %v3570 = vadd.f32 %v3569, %v3455
  %v3571 = vadd.f32 %v3570, %v3459
  %v3572 = vadd.f32 %v3571, %v3463
  %v3573 = vadd.f32 %v3572, %v3467
  %v3574 = vrot.slane %v3573, 4
  %v3575 = vadd.f32 %v3573, %v3574
  %v3576 = vrot.slane %v3575, 2
  %v3577 = vadd.f32 %v3575, %v3576
  %v3578 = vrot.slane %v3577, 1
  %v3579 = vadd.f32 %v3577, %v3578
  %v3580 = vadd.f32 %v3344, %v3348
  %v3581 = vadd.f32 %v3580, %v3352
  %v3582 = vadd.f32 %v3581, %v3356
  %v3583 = vadd.f32 %v3582, %v3360
  %v3584 = vadd.f32 %v3583, %v3364
  %v3585 = vadd.f32 %v3584, %v3368
  %v3586 = vadd.f32 %v3585, %v3372
  %v3587 = vadd.f32 %v3586, %v3376
  %v3588 = vadd.f32 %v3587, %v3380
  %v3589 = vadd.f32 %v3588, %v3384
  %v3590 = vadd.f32 %v3589, %v3388
  %v3591 = vadd.f32 %v3590, %v3392
  %v3592 = vadd.f32 %v3591, %v3396
  %v3593 = vadd.f32 %v3592, %v3400
  %v3594 = vadd.f32 %v3593, %v3404
  %v3595 = vadd.f32 %v3594, %v3408
  %v3596 = vadd.f32 %v3595, %v3412
  %v3597 = vadd.f32 %v3596, %v3416
  %v3598 = vadd.f32 %v3597, %v3420
  %v3599 = vadd.f32 %v3598, %v3424
  %v3600 = vadd.f32 %v3599, %v3428
  %v3601 = vadd.f32 %v3600, %v3432
  %v3602 = vadd.f32 %v3601, %v3436
  %v3603 = vadd.f32 %v3602, %v3440
  %v3604 = vadd.f32 %v3603, %v3444
  %v3605 = vadd.f32 %v3604, %v3448
  %v3606 = vadd.f32 %v3605, %v3452
  %v3607 = vadd.f32 %v3606, %v3456
  %v3608 = vadd.f32 %v3607, %v3460
  %v3609 = vadd.f32 %v3608, %v3464
  %v3610 = vadd.f32 %v3609, %v3468
  %v3611 = vrot.slane %v3610, 4
  %v3612 = vadd.f32 %v3610, %v3611
  %v3613 = vrot.slane %v3612, 2
  %v3614 = vadd.f32 %v3612, %v3613
  %v3615 = vrot.slane %v3614, 1
  %v3616 = vadd.f32 %v3614, %v3615
  %v3621 = vcombine.low %v3505, %v3542
  %v3622 = vcombine.low %v3579, %v3616
  %v3624 = vunpack.c.l.s4 1966171168
  %v3625 = vunpack.c.0.s8 %v3624
  %v3626 = vlaneseq
  %v3627 = vshrl.u32 %v3626, 7
  %v3628 = vsub.s32 %v3625, %v3627
  %v3629 = vrot.slane %v3621, %v3628
  %v3631 = vunpack.c.l.s4 1966171168
  %v3632 = vunpack.c.0.s8 %v3631
  %v3633 = vlaneseq
  %v3634 = vshrl.u32 %v3633, 7
  %v3635 = vsub.s32 %v3632, %v3634
  %v3636 = vrot.slane %v3622, %v3635
  %v3637 = vcombine.low %v3629, %v3636
  %v3639 = vunpack.c.l.s4 1966171168
  %v3640 = vunpack.c.0.s8 %v3639
  %v3641 = vlaneseq
  %v3642 = vshrl.u32 %v3641, 7
  %v3643 = vsub.s32 %v3640, %v3642
  %v3644 = vrot.slane %v3637, %v3643
  %3646 = vst.msk [vmem:[%s10] sm:$0xf] %vm3339, %v3644
  // Predicated region
  $region34: #{encoder_forward.2} parent=0 // pred_check
    _
  $region35: #{encoder_forward.2} parent=0 // pred_check_branch
    %3648 = sbr.rel (0) target = $region37
  $region36: #{encoder_forward.2} parent=0 // pred_region
    _
  $region37: #{encoder_forward.2} parent=0 // pred_fallthru
    _
  // Predicated region
  $region38: #{encoder_forward.2} parent=0 // pred_check
    _
  $region39: #{encoder_forward.2} parent=0 // pred_check_branch
    %3650 = sbr.rel (0) target = $region41
  $region40: #{encoder_forward.2} parent=0 // pred_region
    _
  $region41: #{encoder_forward.2} parent=0 // pred_fallthru
    _
  // Predicated region
  $region42: #{encoder_forward.2} parent=0 // pred_check
    _
  $region43: #{encoder_forward.2} parent=0 // pred_check_branch
    %3652 = sbr.rel (0) target = $region45
  $region44: #{encoder_forward.2} parent=0 // pred_region
    _
  $region45: #{encoder_forward.2} parent=0 // pred_fallthru
    _
  // Predicated region
  $region46: #{encoder_forward.2} parent=0 // pred_check
    _
  $region47: #{encoder_forward.2} parent=0 // pred_check_branch
    %3654 = sbr.rel (0) target = $region49
  $region48: #{encoder_forward.2} parent=0 // pred_region
    _
  $region49: #{encoder_forward.2} parent=0 // pred_fallthru
    _
  // Predicated region
  $region50: #{encoder_forward.2} parent=0 // pred_check
    _
  $region51: #{encoder_forward.2} parent=0 // pred_check_branch
    %3656 = sbr.rel (0) target = $region53
  $region52: #{encoder_forward.2} parent=0 // pred_region
    _
  $region53: #{encoder_forward.2} parent=0 // pred_fallthru
    _
  // Predicated region
  $region54: #{encoder_forward.2} parent=0 // pred_check
    _
  $region55: #{encoder_forward.2} parent=0 // pred_check_branch
    %3658 = sbr.rel (0) target = $region57
  $region56: #{encoder_forward.2} parent=0 // pred_region
    _
  $region57: #{encoder_forward.2} parent=0 // pred_fallthru
    _

</llo_original>
